<compile_context>
chip_gen: v6e
topology: v6e:2x2x1
jax: 0.10.0
libtpu: 0.0.40
codegen_flags: <defaults>
</compile_context>

<pallas_src>
import functools

import jax
import jax.numpy as jnp
from jax import lax
from jax.experimental import pallas as pl
from jax.experimental.pallas import tpu as pltpu

_LANE = 128
_SUB_BF16 = 16   # bf16 packs 2 rows/sublane -> pad second-minor to 16


def _round_up(x, m):
    return (x + m - 1) // m * m


def _tpu_vmem_capacity():
    try:
        return int(pltpu.get_tpu_info().vmem_capacity_bytes)
    except Exception:
        return 64 * 1024 * 1024


_VMEM_CAP = _tpu_vmem_capacity()
_VMEM_LIMIT = min(_VMEM_CAP // 2, 100 * 1024 * 1024)   # 64 MiB on 128 MiB parts, 32 MiB on v7x
_TM_MAX = 512 if _VMEM_CAP >= 96 * 1024 * 1024 else 256


def _pick_m_tiling(m):
    """Even M tiling: grid_m tiles of TM (multiple of 16), Mpad = grid_m*TM."""
    grid_m = max(1, -(-m // _TM_MAX))
    tm = _round_up(-(-m // grid_m), _SUB_BF16)
    return grid_m, tm, grid_m * tm


# ----------------------------------------------------------------------------
# Pallas kernels
# ----------------------------------------------------------------------------
def _fused_matmul_kernel(*refs, n_branch, act):
    """sum_i(x_i @ w_i) + bias + activation.  bf16 MXU inputs, f32 math,
    cast to the output dtype only at the store."""
    x_refs = refs[:n_branch]
    w_refs = refs[n_branch:2 * n_branch]
    b_ref = refs[2 * n_branch]
    o_ref = refs[2 * n_branch + 1]

    acc = jnp.dot(x_refs[0][...], w_refs[0][...],
                  preferred_element_type=jnp.float32)
    for xr, wr in zip(x_refs[1:], w_refs[1:]):
        acc = acc + jnp.dot(xr[...], wr[...],
                            preferred_element_type=jnp.float32)
    acc = acc + b_ref[...]                      # f32 epilogue (v5e-safe)
    if act == "relu":
        acc = jnp.maximum(acc, 0.0)
    elif act == "sigmoid":
        acc = jax.nn.sigmoid(acc)
    o_ref[...] = acc.astype(o_ref.dtype)


def _wave_max_kernel(x_ref, w_ref, b_ref, mx_ref, *, m_valid, n_valid, tm):
    """Pass 1 of the wave head: masked global max of |high-band coefs|.

    Output block (1,1) stays resident across the (arbitrary) M grid axis and
    is accumulated in place.  Column / row masks are narrow broadcast vectors.
    """
    i = pl.program_id(0)

    @pl.when(i == 0)
    def _():
        mx_ref[...] = jnp.zeros_like(mx_ref)

    acc = jnp.dot(x_ref[...], w_ref[...],
                  preferred_element_type=jnp.float32) + b_ref[...]
    col = lax.broadcasted_iota(jnp.int32, (1, acc.shape[1]), 1)
    is_high_col = (col >= 1) & (col < n_valid)                    # (1, Npad)
    row = i * tm + lax.broadcasted_iota(jnp.int32, (acc.shape[0], 1), 0)
    valid_row = row < m_valid                                     # (TM, 1)
    mask = is_high_col & valid_row
    tile_max = jnp.max(jnp.where(mask, jnp.abs(acc), 0.0))
    mx_ref[...] = jnp.maximum(mx_ref[...], tile_max)


def _wave_apply_kernel(t_ref, mx_ref, x_ref, w_ref, b_ref, o_ref, *, n_valid):
    """Pass 2 of the wave head: recompute conv matmul, zero high-band coefs
    with |coef| <= thresh_ratio * global_max (LL band + padding untouched)."""
    acc = jnp.dot(x_ref[...], w_ref[...],
                  preferred_element_type=jnp.float32) + b_ref[...]
    col = lax.broadcasted_iota(jnp.int32, (1, acc.shape[1]), 1)
    is_high = (col >= 1) & (col < n_valid)                        # (1, Npad)
    thr = t_ref[0] * mx_ref[0, 0]
    keep = jnp.logical_or(jnp.logical_not(is_high), jnp.abs(acc) > thr)
    o_ref[...] = jnp.where(keep, acc, 0.0).astype(o_ref.dtype)


# ----------------------------------------------------------------------------
# Kernel wrappers (padding / tiling)
# ----------------------------------------------------------------------------
def fused_conv_matmul(patches_list, layer, act, out_dtype):
    """Multi-branch fused matmul: sum_i(patches_i @ w_i) + bias, activation."""
    ws, b = layer["ws"], layer["b"]
    Npad, cout = layer["npad"], layer["cout"]
    n_branch = len(ws)
    M = patches_list[0].shape[0]

    grid_m, TM, Mpad = _pick_m_tiling(M)

    xs = []
    for p, w in zip(patches_list, ws):
        K, Kpad = p.shape[1], w.shape[0]
        xs.append(jnp.pad(p.astype(jnp.bfloat16),
                          ((0, Mpad - M), (0, Kpad - K))))

    in_specs = []
    for x in xs:
        in_specs.append(pl.BlockSpec((TM, x.shape[1]), lambda i: (i, 0)))
    for w in ws:
        # Grid-invariant weights; the pipeliner keeps them resident.
        in_specs.append(pl.BlockSpec((w.shape[0], Npad), lambda i: (0, 0)))
    in_specs.append(pl.BlockSpec((1, Npad), lambda i: (0, 0)))

    ktot = sum(w.shape[0] for w in ws)
    cost = pl.CostEstimate(
        flops=2 * Mpad * ktot * Npad,
        transcendentals=Mpad * Npad if act == "sigmoid" else 0,
        bytes_accessed=(sum(x.size * 2 for x in xs)
                        + sum(w.size * 2 for w in ws)
                        + b.size * 4
                        + Mpad * Npad * jnp.dtype(out_dtype).itemsize))

    kernel = functools.partial(_fused_matmul_kernel, n_branch=n_branch, act=act)
    out = pl.pallas_call(
        kernel,
        out_shape=jax.ShapeDtypeStruct((Mpad, Npad), out_dtype),
        grid=(grid_m,),
        in_specs=in_specs,
        out_specs=pl.BlockSpec((TM, Npad), lambda i: (i, 0)),
        compiler_params=pltpu.CompilerParams(
            dimension_semantics=("parallel",),
            vmem_limit_bytes=_VMEM_LIMIT),
        cost_estimate=cost,
    )(*xs, *ws, b)
    return out[:M, :cout]


def wave_conv_thresh(x, layer, thresh_ratio, padding=1):
    """Wave coefficient head: tiled conv + sparse thresholding in two passes.

    Pass 1 reduces the masked global max of |high-band coefs| (post-bias);
    pass 2 recomputes the tiny matmul and applies the threshold, so the padded
    f32 coefficient block is never round-tripped through HBM.
    """
    # TODO(synk): global max is over the whole (batch*spatial) tensor — if the
    # PyTorch reference thresholds per-sample this diverges for batch > 1.
    kh, kw = layer["kh"], layer["kw"]
    p, (N, Ho, Wo) = _im2col(x.astype(jnp.bfloat16), kh, kw, 1, padding)
    M, K = p.shape
    w, b = layer["ws"][0], layer["b"]
    Kpad, Npad = w.shape
    cout = layer["cout"]

    grid_m, TM, Mpad = _pick_m_tiling(M)
    p = jnp.pad(p, ((0, Mpad - M), (0, Kpad - K)))
    t = jnp.reshape(jnp.asarray(thresh_ratio, jnp.float32), (1,))

    x_spec = pl.BlockSpec((TM, Kpad), lambda i: (i, 0))
    w_spec = pl.BlockSpec((Kpad, Npad), lambda i: (0, 0))
    b_spec = pl.BlockSpec((1, Npad), lambda i: (0, 0))
    matmul_bytes = p.size * 2 + w.size * 2 + b.size * 4

    mx = pl.pallas_call(
        functools.partial(_wave_max_kernel, m_valid=M, n_valid=cout, tm=TM),
        out_shape=jax.ShapeDtypeStruct((1, 1), jnp.float32),
        grid=(grid_m,),
        in_specs=[x_spec, w_spec, b_spec],
        out_specs=pl.BlockSpec((1, 1), lambda i: (0, 0)),
        compiler_params=pltpu.CompilerParams(
            dimension_semantics=("arbitrary",),   # output-resident reduction
            vmem_limit_bytes=_VMEM_LIMIT),
        cost_estimate=pl.CostEstimate(flops=2 * Mpad * Kpad * Npad,
                                      transcendentals=0,
                                      bytes_accessed=matmul_bytes + 4),
    )(p, w, b)

    out = pl.pallas_call(
        functools.partial(_wave_apply_kernel, n_valid=cout),
        out_shape=jax.ShapeDtypeStruct((Mpad, Npad), jnp.bfloat16),
        grid=(grid_m,),
        in_specs=[
            pl.BlockSpec(memory_space=pltpu.MemorySpace.SMEM),   # thresh_ratio
            pl.BlockSpec(memory_space=pltpu.MemorySpace.SMEM),   # global max
            x_spec, w_spec, b_spec],
        out_specs=pl.BlockSpec((TM, Npad), lambda i: (i, 0)),
        compiler_params=pltpu.CompilerParams(
            dimension_semantics=("parallel",),
            vmem_limit_bytes=_VMEM_LIMIT),
        cost_estimate=pl.CostEstimate(flops=2 * Mpad * Kpad * Npad,
                                      transcendentals=0,
                                      bytes_accessed=matmul_bytes
                                      + Mpad * Npad * 2),
    )(t, mx, p, w, b)
    return out[:M, :cout].reshape(N, Ho, Wo, cout)


# ----------------------------------------------------------------------------
# Conv glue (im2col gathers in plain JAX, matmuls in Pallas)
# ----------------------------------------------------------------------------
def _im2col(x, kh, kw, stride, padding):
    N, H, W, C = x.shape
    xp = jnp.pad(x, ((0, 0), (padding, padding), (padding, padding), (0, 0)))
    Ho = (H + 2 * padding - kh) // stride + 1
    Wo = (W + 2 * padding - kw) // stride + 1
    cols = []
    for i in range(kh):
        for j in range(kw):
            cols.append(xp[:, i:i + stride * Ho:stride,
                           j:j + stride * Wo:stride, :])
    patches = jnp.concatenate(cols, axis=-1)          # [N, Ho, Wo, kh*kw*C]
    return patches.reshape(N * Ho * Wo, kh * kw * C), (N, Ho, Wo)


def _im2col_up2(x, kh, kw, padding):
    """im2col of a nearest-2x upsample of x (stride-1 conv) WITHOUT
    materializing the 4x-larger upsampled tensor in HBM."""
    N, H, W, C = x.shape
    Hu, Wu = 2 * H, 2 * W
    Ho = Hu + 2 * padding - kh + 1
    Wo = Wu + 2 * padding - kw + 1
    cols = []
    for i in range(kh):
        r = jnp.arange(Ho) + i - padding                 # upsampled-space rows
        rs = jnp.clip(r // 2, 0, H - 1)
        rmask = (r >= 0) & (r < Hu)
        for j in range(kw):
            q = jnp.arange(Wo) + j - padding
            qs = jnp.clip(q // 2, 0, W - 1)
            qmask = (q >= 0) & (q < Wu)
            sl = jnp.take(jnp.take(x, rs, axis=1), qs, axis=2)   # [N,Ho,Wo,C]
            m = (rmask[:, None] & qmask[None, :])[None, :, :, None]
            cols.append(jnp.where(m, sl, 0).astype(x.dtype))
    patches = jnp.concatenate(cols, axis=-1)
    return patches.reshape(N * Ho * Wo, kh * kw * C), (N, Ho, Wo)


def conv2d(layer, xs, *, up2=None, stride=1, padding=1, act="none",
           out_dtype=jnp.bfloat16):
    """Conv over channel-concatenated branches (no concat materialized).
    Branches flagged in `up2` are nearest-2x upsampled inside the gather."""
    if not isinstance(xs, (list, tuple)):
        xs = [xs]
    if up2 is None:
        up2 = [False] * len(xs)
    kh, kw = layer["kh"], layer["kw"]
    patches_list, shapes = [], None
    for xb, u in zip(xs, up2):
        xb = xb.astype(jnp.bfloat16)       # cast BEFORE building patches
        if u:
            p, shapes = _im2col_up2(xb, kh, kw, padding)
        else:
            p, shapes = _im2col(xb, kh, kw, stride, padding)
        patches_list.append(p)
    out = fused_conv_matmul(patches_list, layer, act=act, out_dtype=out_dtype)
    N, Ho, Wo = shapes
    return out.reshape(N, Ho, Wo, layer["cout"])


def upsample_nearest2(x):
    return jnp.repeat(jnp.repeat(x, 2, axis=1), 2, axis=2)


# ----------------------------------------------------------------------------
# Parameters: raw init + one-time preparation (pad / reshape / bf16 cast)
# ----------------------------------------------------------------------------
def init_params(key):
    def conv(key, kh, kw, cin, cout):
        kw_, kb_ = jax.random.split(key)
        w = 0.1 * jax.random.normal(kw_, (kh, kw, cin, cout), jnp.float32)
        b = 0.01 * jax.random.normal(kb_, (cout,), jnp.float32)
        return w, b

    keys = jax.random.split(key, 8)
    p = {}
    # DenseEncoder stand-in, num_ch_enc = (16, 32, 64)
    p["enc1_w"], p["enc1_b"] = conv(keys[0], 3, 3, 3, 16)
    p["enc2_w"], p["enc2_b"] = conv(keys[1], 3, 3, 16, 32)
    p["enc3_w"], p["enc3_b"] = conv(keys[2], 3, 3, 32, 64)
    # SparseDecoderWave stand-in, decoder_width = 0.5
    p["dec3_w"], p["dec3_b"] = conv(keys[3], 3, 3, 64, 32)
    p["dec2_w"], p["dec2_b"] = conv(keys[4], 3, 3, 64, 16)
    p["wave_w"], p["wave_b"] = conv(keys[5], 3, 3, 16, 4)     # LL, LH, HL, HH
    p["out_w"], p["out_b"] = conv(keys[6], 3, 3, 36, 1)       # disparity head
    return p


def _prepare_conv(w, b, split_cins):
    """One-time: split by branch channel ranges, reshape to matmul matrices,
    pad K to x16 / Cout to x128 lanes, cast weights to bf16, bias to f32."""
    kh, kw, cin, cout = w.shape
    assert sum(split_cins) == cin, (split_cins, cin)
    npad = _round_up(cout, _LANE)
    ws, off = [], 0
    for ci in split_cins:
        k = kh * kw * ci
        wm = w[:, :, off:off + ci, :].reshape(k, cout)
        kpad = _round_up(k, _SUB_BF16)
        ws.append(jnp.pad(wm, ((0, kpad - k), (0, npad - cout)))
                  .astype(jnp.bfloat16))
        off += ci
    bpad = jnp.pad(b.astype(jnp.float32), (0, npad - cout)).reshape(1, npad)
    return dict(ws=ws, b=bpad, cout=cout, kh=kh, kw=kw, npad=npad)


def prepare_params(p):
    return {
        "enc1": _prepare_conv(p["enc1_w"], p["enc1_b"], (3,)),
        "enc2": _prepare_conv(p["enc2_w"], p["enc2_b"], (16,)),
        "enc3": _prepare_conv(p["enc3_w"], p["enc3_b"], (32,)),
        "dec3": _prepare_conv(p["dec3_w"], p["dec3_b"], (64,)),
        "dec2": _prepare_conv(p["dec2_w"], p["dec2_b"], (32, 32)),
        "wave": _prepare_conv(p["wave_w"], p["wave_b"], (16,)),
        "out": _prepare_conv(p["out_w"], p["out_b"], (16, 4, 16)),
    }


# ----------------------------------------------------------------------------
# SparseModel forward: decoder(encoder(x), thresh_ratio)
# ----------------------------------------------------------------------------
_IMAGENET_MEAN = jnp.array([0.485, 0.456, 0.406], jnp.float32)
_IMAGENET_STD = jnp.array([0.229, 0.224, 0.225], jnp.float32)


def sparse_model_forward(prep, x_nchw, thresh_ratio=0.1):
    # PyTorch conv inputs are NCHW; convert to NHWC for the Pallas kernels.
    x = jnp.transpose(x_nchw, (0, 2, 3, 1)).astype(jnp.float32)

    # ---- DenseEncoder (normalize_input=True) ----
    x = ((x - _IMAGENET_MEAN) / _IMAGENET_STD).astype(jnp.bfloat16)
    f1 = conv2d(prep["enc1"], x, stride=2, act="relu")    # N,8,8,16  (bf16)
    f2 = conv2d(prep["enc2"], f1, stride=2, act="relu")   # N,4,4,32
    f3 = conv2d(prep["enc3"], f2, stride=2, act="relu")   # N,2,2,64

    # ---- SparseDecoderWave (decoder_width=0.5) ----
    u3 = conv2d(prep["dec3"], f3, act="relu")             # N,2,2,32
    # concat([upsample(u3), f2]) + conv: upsample folded into the gather,
    # concat fused as split-K dual-dot accumulation.
    u2 = conv2d(prep["dec2"], [u3, f2], up2=[True, False], act="relu")  # N,4,4,16

    # Wavelet coefficient head: conv + sparse thresholding of the three
    # high-frequency bands (LL band untouched), driven by thresh_ratio.
    coefs = wave_conv_thresh(u2, prep["wave"], thresh_ratio)            # N,4,4,4

    # concat([upsample(concat(u2, coefs)), f1]) + conv: upsamples folded into
    # the per-branch gathers, concat fused as 3-way split-K.
    disp = conv2d(prep["out"], [u2, coefs, f1], up2=[True, True, False],
                  act="sigmoid", out_dtype=jnp.float32)                 # N,8,8,1
    disp = upsample_nearest2(disp)                                      # N,16,16,1

    # back to NCHW to match the PyTorch convention.
    return jnp.transpose(disp, (0, 3, 1, 2))


if __name__ == "__main__":
    key = jax.random.PRNGKey(0)
    k_params, k_x = jax.random.split(key)
    raw_params = init_params(k_params)
    prep = prepare_params(raw_params)          # one-time weight preparation
    x = jax.random.normal(k_x, (2, 3, 16, 16), jnp.float32)  # NCHW input

    fwd = jax.jit(functools.partial(sparse_model_forward, prep,
                                    thresh_ratio=0.1))
    out = fwd(x)
    out = jax.block_until_ready(out)
    assert out.shape == (2, 1, 16, 16), out.shape
    assert jnp.all(jnp.isfinite(out))
    print("KERNEL_OK")
</pallas_src>

<mosaic_0001>
module attributes {stable_mosaic.version = 11 : i64} {
  func.func @_fused_matmul_kernel(%arg0: i32, %arg1: memref<128x32xbf16, #tpu.memory_space<vmem>>, %arg2: memref<32x128xbf16, #tpu.memory_space<vmem>>, %arg3: memref<1x128xf32, #tpu.memory_space<vmem>>, %arg4: memref<128x128xbf16, #tpu.memory_space<vmem>>) attributes {dimension_semantics = [#tpu.dimension_semantics<parallel>], iteration_bounds = array<i64: 1>, scalar_prefetch = 0 : i64, scratch_operands = 0 : i64, tpu.core_type = #tpu.core_type<tc>, window_params = [{transform_indices = @transform_0, window_bounds = array<i64: 128, 32>}, {pipeline_mode = #tpu.pipeline_mode<synchronous>, transform_indices = @transform_1, window_bounds = array<i64: 32, 128>}, {pipeline_mode = #tpu.pipeline_mode<synchronous>, transform_indices = @transform_2, window_bounds = array<i64: 1, 128>}, {transform_indices = @transform_3, window_bounds = array<i64: 128, 128>}]} {
    %c0 = arith.constant 0 : index
    %c0_0 = arith.constant 0 : index
    %0 = vector.load %arg1[%c0, %c0_0] : memref<128x32xbf16, #tpu.memory_space<vmem>>, vector<128x32xbf16>
    %c0_1 = arith.constant 0 : index
    %c0_2 = arith.constant 0 : index
    %1 = vector.load %arg2[%c0_1, %c0_2] : memref<32x128xbf16, #tpu.memory_space<vmem>>, vector<32x128xbf16>
    %cst = arith.constant dense<0.000000e+00> : vector<128x128xf32>
    %2 = tpu.matmul %0, %1, %cst {dimension_numbers = #tpu.dot_dimension_numbers<[1], [0], [0], [1], [0, 0, 1, 1], [], []>} : vector<128x32xbf16>, vector<32x128xbf16>, vector<128x128xf32> -> vector<128x128xf32>
    %c0_3 = arith.constant 0 : index
    %c0_4 = arith.constant 0 : index
    %3 = vector.load %arg3[%c0_3, %c0_4] : memref<1x128xf32, #tpu.memory_space<vmem>>, vector<1x128xf32>
    %4 = vector.broadcast %3 : vector<1x128xf32> to vector<128x128xf32>
    %5 = arith.addf %2, %4 : vector<128x128xf32>
    %cst_5 = arith.constant 0.000000e+00 : f32
    %6 = vector.broadcast %cst_5 : f32 to vector<128x128xf32>
    %7 = arith.maximumf %5, %6 : vector<128x128xf32>
    %8 = arith.truncf %7 : vector<128x128xf32> to vector<128x128xbf16>
    %c0_6 = arith.constant 0 : index
    %c0_7 = arith.constant 0 : index
    %9 = vector.load %arg4[%c0_6, %c0_7] : memref<128x128xbf16, #tpu.memory_space<vmem>>, vector<128x128xbf16>
    tpu.vector_store %arg4[%c0_6, %c0_7], %8 {strides = array<i32>} : memref<128x128xbf16, #tpu.memory_space<vmem>>, vector<128x128xbf16>,
    return
  }
  func.func @transform_0(%arg0: i32) -> (i32, i32) {
    %c0_i32 = arith.constant 0 : i32
    %c0_i32_0 = arith.constant 0 : i32
    return %arg0, %c0_i32 : i32, i32
  }
  func.func @transform_1(%arg0: i32) -> (i32, i32) {
    %c0_i32 = arith.constant 0 : i32
    %c0_i32_0 = arith.constant 0 : i32
    %c0_i32_1 = arith.constant 0 : i32
    return %c0_i32, %c0_i32_0 : i32, i32
  }
  func.func @transform_2(%arg0: i32) -> (i32, i32) {
    %c0_i32 = arith.constant 0 : i32
    %c0_i32_0 = arith.constant 0 : i32
    %c0_i32_1 = arith.constant 0 : i32
    return %c0_i32, %c0_i32_0 : i32, i32
  }
  func.func @transform_3(%arg0: i32) -> (i32, i32) {
    %c0_i32 = arith.constant 0 : i32
    %c0_i32_0 = arith.constant 0 : i32
    return %arg0, %c0_i32 : i32, i32
  }
}

module attributes {stable_mosaic.version = 11 : i64} {
  func.func @_fused_matmul_kernel(%arg0: i32, %arg1: memref<32x144xbf16, #tpu.memory_space<vmem>>, %arg2: memref<144x128xbf16, #tpu.memory_space<vmem>>, %arg3: memref<1x128xf32, #tpu.memory_space<vmem>>, %arg4: memref<32x128xbf16, #tpu.memory_space<vmem>>) attributes {dimension_semantics = [#tpu.dimension_semantics<parallel>], iteration_bounds = array<i64: 1>, scalar_prefetch = 0 : i64, scratch_operands = 0 : i64, tpu.core_type = #tpu.core_type<tc>, window_params = [{transform_indices = @transform_0, window_bounds = array<i64: 32, 144>}, {pipeline_mode = #tpu.pipeline_mode<synchronous>, transform_indices = @transform_1, window_bounds = array<i64: 144, 128>}, {pipeline_mode = #tpu.pipeline_mode<synchronous>, transform_indices = @transform_2, window_bounds = array<i64: 1, 128>}, {transform_indices = @transform_3, window_bounds = array<i64: 32, 128>}]} {
    %c0 = arith.constant 0 : index
    %c0_0 = arith.constant 0 : index
    %0 = vector.load %arg1[%c0, %c0_0] : memref<32x144xbf16, #tpu.memory_space<vmem>>, vector<32x144xbf16>
    %c0_1 = arith.constant 0 : index
    %c0_2 = arith.constant 0 : index
    %1 = vector.load %arg2[%c0_1, %c0_2] : memref<144x128xbf16, #tpu.memory_space<vmem>>, vector<144x128xbf16>
    %cst = arith.constant dense<0.000000e+00> : vector<32x128xf32>
    %2 = tpu.matmul %0, %1, %cst {dimension_numbers = #tpu.dot_dimension_numbers<[1], [0], [0], [1], [0, 0, 1, 1], [], []>} : vector<32x144xbf16>, vector<144x128xbf16>, vector<32x128xf32> -> vector<32x128xf32>
    %c0_3 = arith.constant 0 : index
    %c0_4 = arith.constant 0 : index
    %3 = vector.load %arg3[%c0_3, %c0_4] : memref<1x128xf32, #tpu.memory_space<vmem>>, vector<1x128xf32>
    %4 = vector.broadcast %3 : vector<1x128xf32> to vector<32x128xf32>
    %5 = arith.addf %2, %4 : vector<32x128xf32>
    %cst_5 = arith.constant 0.000000e+00 : f32
    %6 = vector.broadcast %cst_5 : f32 to vector<32x128xf32>
    %7 = arith.maximumf %5, %6 : vector<32x128xf32>
    %8 = arith.truncf %7 : vector<32x128xf32> to vector<32x128xbf16>
    %c0_6 = arith.constant 0 : index
    %c0_7 = arith.constant 0 : index
    %9 = vector.load %arg4[%c0_6, %c0_7] : memref<32x128xbf16, #tpu.memory_space<vmem>>, vector<32x128xbf16>
    tpu.vector_store %arg4[%c0_6, %c0_7], %8 {strides = array<i32>} : memref<32x128xbf16, #tpu.memory_space<vmem>>, vector<32x128xbf16>,
    return
  }
  func.func @transform_0(%arg0: i32) -> (i32, i32) {
    %c0_i32 = arith.constant 0 : i32
    %c0_i32_0 = arith.constant 0 : i32
    return %arg0, %c0_i32 : i32, i32
  }
  func.func @transform_1(%arg0: i32) -> (i32, i32) {
    %c0_i32 = arith.constant 0 : i32
    %c0_i32_0 = arith.constant 0 : i32
    %c0_i32_1 = arith.constant 0 : i32
    return %c0_i32, %c0_i32_0 : i32, i32
  }
  func.func @transform_2(%arg0: i32) -> (i32, i32) {
    %c0_i32 = arith.constant 0 : i32
    %c0_i32_0 = arith.constant 0 : i32
    %c0_i32_1 = arith.constant 0 : i32
    return %c0_i32, %c0_i32_0 : i32, i32
  }
  func.func @transform_3(%arg0: i32) -> (i32, i32) {
    %c0_i32 = arith.constant 0 : i32
    %c0_i32_0 = arith.constant 0 : i32
    return %arg0, %c0_i32 : i32, i32
  }
}

module attributes {stable_mosaic.version = 11 : i64} {
  func.func @_fused_matmul_kernel(%arg0: i32, %arg1: memref<16x288xbf16, #tpu.memory_space<vmem>>, %arg2: memref<288x128xbf16, #tpu.memory_space<vmem>>, %arg3: memref<1x128xf32, #tpu.memory_space<vmem>>, %arg4: memref<16x128xbf16, #tpu.memory_space<vmem>>) attributes {dimension_semantics = [#tpu.dimension_semantics<parallel>], iteration_bounds = array<i64: 1>, scalar_prefetch = 0 : i64, scratch_operands = 0 : i64, tpu.core_type = #tpu.core_type<tc>, window_params = [{transform_indices = @transform_0, window_bounds = array<i64: 16, 288>}, {pipeline_mode = #tpu.pipeline_mode<synchronous>, transform_indices = @transform_1, window_bounds = array<i64: 288, 128>}, {pipeline_mode = #tpu.pipeline_mode<synchronous>, transform_indices = @transform_2, window_bounds = array<i64: 1, 128>}, {transform_indices = @transform_3, window_bounds = array<i64: 16, 128>}]} {
    %c0 = arith.constant 0 : index
    %c0_0 = arith.constant 0 : index
    %0 = vector.load %arg1[%c0, %c0_0] : memref<16x288xbf16, #tpu.memory_space<vmem>>, vector<16x288xbf16>
    %c0_1 = arith.constant 0 : index
    %c0_2 = arith.constant 0 : index
    %1 = vector.load %arg2[%c0_1, %c0_2] : memref<288x128xbf16, #tpu.memory_space<vmem>>, vector<288x128xbf16>
    %cst = arith.constant dense<0.000000e+00> : vector<16x128xf32>
    %2 = tpu.matmul %0, %1, %cst {dimension_numbers = #tpu.dot_dimension_numbers<[1], [0], [0], [1], [0, 0, 1, 1], [], []>} : vector<16x288xbf16>, vector<288x128xbf16>, vector<16x128xf32> -> vector<16x128xf32>
    %c0_3 = arith.constant 0 : index
    %c0_4 = arith.constant 0 : index
    %3 = vector.load %arg3[%c0_3, %c0_4] : memref<1x128xf32, #tpu.memory_space<vmem>>, vector<1x128xf32>
    %4 = vector.broadcast %3 : vector<1x128xf32> to vector<16x128xf32>
    %5 = arith.addf %2, %4 : vector<16x128xf32>
    %cst_5 = arith.constant 0.000000e+00 : f32
    %6 = vector.broadcast %cst_5 : f32 to vector<16x128xf32>
    %7 = arith.maximumf %5, %6 : vector<16x128xf32>
    %8 = arith.truncf %7 : vector<16x128xf32> to vector<16x128xbf16>
    %c0_6 = arith.constant 0 : index
    %c0_7 = arith.constant 0 : index
    %9 = vector.load %arg4[%c0_6, %c0_7] : memref<16x128xbf16, #tpu.memory_space<vmem>>, vector<16x128xbf16>
    tpu.vector_store %arg4[%c0_6, %c0_7], %8 {strides = array<i32>} : memref<16x128xbf16, #tpu.memory_space<vmem>>, vector<16x128xbf16>,
    return
  }
  func.func @transform_0(%arg0: i32) -> (i32, i32) {
    %c0_i32 = arith.constant 0 : i32
    %c0_i32_0 = arith.constant 0 : i32
    return %arg0, %c0_i32 : i32, i32
  }
  func.func @transform_1(%arg0: i32) -> (i32, i32) {
    %c0_i32 = arith.constant 0 : i32
    %c0_i32_0 = arith.constant 0 : i32
    %c0_i32_1 = arith.constant 0 : i32
    return %c0_i32, %c0_i32_0 : i32, i32
  }
  func.func @transform_2(%arg0: i32) -> (i32, i32) {
    %c0_i32 = arith.constant 0 : i32
    %c0_i32_0 = arith.constant 0 : i32
    %c0_i32_1 = arith.constant 0 : i32
    return %c0_i32, %c0_i32_0 : i32, i32
  }
  func.func @transform_3(%arg0: i32) -> (i32, i32) {
    %c0_i32 = arith.constant 0 : i32
    %c0_i32_0 = arith.constant 0 : i32
    return %arg0, %c0_i32 : i32, i32
  }
}

module attributes {stable_mosaic.version = 11 : i64} {
  func.func @_fused_matmul_kernel(%arg0: i32, %arg1: memref<16x576xbf16, #tpu.memory_space<vmem>>, %arg2: memref<576x128xbf16, #tpu.memory_space<vmem>>, %arg3: memref<1x128xf32, #tpu.memory_space<vmem>>, %arg4: memref<16x128xbf16, #tpu.memory_space<vmem>>) attributes {dimension_semantics = [#tpu.dimension_semantics<parallel>], iteration_bounds = array<i64: 1>, scalar_prefetch = 0 : i64, scratch_operands = 0 : i64, tpu.core_type = #tpu.core_type<tc>, window_params = [{transform_indices = @transform_0, window_bounds = array<i64: 16, 576>}, {pipeline_mode = #tpu.pipeline_mode<synchronous>, transform_indices = @transform_1, window_bounds = array<i64: 576, 128>}, {pipeline_mode = #tpu.pipeline_mode<synchronous>, transform_indices = @transform_2, window_bounds = array<i64: 1, 128>}, {transform_indices = @transform_3, window_bounds = array<i64: 16, 128>}]} {
    %c0 = arith.constant 0 : index
    %c0_0 = arith.constant 0 : index
    %0 = vector.load %arg1[%c0, %c0_0] : memref<16x576xbf16, #tpu.memory_space<vmem>>, vector<16x576xbf16>
    %c0_1 = arith.constant 0 : index
    %c0_2 = arith.constant 0 : index
    %1 = vector.load %arg2[%c0_1, %c0_2] : memref<576x128xbf16, #tpu.memory_space<vmem>>, vector<576x128xbf16>
    %cst = arith.constant dense<0.000000e+00> : vector<16x128xf32>
    %2 = tpu.matmul %0, %1, %cst {dimension_numbers = #tpu.dot_dimension_numbers<[1], [0], [0], [1], [0, 0, 1, 1], [], []>} : vector<16x576xbf16>, vector<576x128xbf16>, vector<16x128xf32> -> vector<16x128xf32>
    %c0_3 = arith.constant 0 : index
    %c0_4 = arith.constant 0 : index
    %3 = vector.load %arg3[%c0_3, %c0_4] : memref<1x128xf32, #tpu.memory_space<vmem>>, vector<1x128xf32>
    %4 = vector.broadcast %3 : vector<1x128xf32> to vector<16x128xf32>
    %5 = arith.addf %2, %4 : vector<16x128xf32>
    %cst_5 = arith.constant 0.000000e+00 : f32
    %6 = vector.broadcast %cst_5 : f32 to vector<16x128xf32>
    %7 = arith.maximumf %5, %6 : vector<16x128xf32>
    %8 = arith.truncf %7 : vector<16x128xf32> to vector<16x128xbf16>
    %c0_6 = arith.constant 0 : index
    %c0_7 = arith.constant 0 : index
    %9 = vector.load %arg4[%c0_6, %c0_7] : memref<16x128xbf16, #tpu.memory_space<vmem>>, vector<16x128xbf16>
    tpu.vector_store %arg4[%c0_6, %c0_7], %8 {strides = array<i32>} : memref<16x128xbf16, #tpu.memory_space<vmem>>, vector<16x128xbf16>,
    return
  }
  func.func @transform_0(%arg0: i32) -> (i32, i32) {
    %c0_i32 = arith.constant 0 : i32
    %c0_i32_0 = arith.constant 0 : i32
    return %arg0, %c0_i32 : i32, i32
  }
  func.func @transform_1(%arg0: i32) -> (i32, i32) {
    %c0_i32 = arith.constant 0 : i32
    %c0_i32_0 = arith.constant 0 : i32
    %c0_i32_1 = arith.constant 0 : i32
    return %c0_i32, %c0_i32_0 : i32, i32
  }
  func.func @transform_2(%arg0: i32) -> (i32, i32) {
    %c0_i32 = arith.constant 0 : i32
    %c0_i32_0 = arith.constant 0 : i32
    %c0_i32_1 = arith.constant 0 : i32
    return %c0_i32, %c0_i32_0 : i32, i32
  }
  func.func @transform_3(%arg0: i32) -> (i32, i32) {
    %c0_i32 = arith.constant 0 : i32
    %c0_i32_0 = arith.constant 0 : i32
    return %arg0, %c0_i32 : i32, i32
  }
}

module attributes {stable_mosaic.version = 11 : i64} {
  func.func @_fused_matmul_kernel(%arg0: i32, %arg1: memref<32x288xbf16, #tpu.memory_space<vmem>>, %arg2: memref<32x288xbf16, #tpu.memory_space<vmem>>, %arg3: memref<288x128xbf16, #tpu.memory_space<vmem>>, %arg4: memref<288x128xbf16, #tpu.memory_space<vmem>>, %arg5: memref<1x128xf32, #tpu.memory_space<vmem>>, %arg6: memref<32x128xbf16, #tpu.memory_space<vmem>>) attributes {dimension_semantics = [#tpu.dimension_semantics<parallel>], iteration_bounds = array<i64: 1>, scalar_prefetch = 0 : i64, scratch_operands = 0 : i64, tpu.core_type = #tpu.core_type<tc>, window_params = [{transform_indices = @transform_0, window_bounds = array<i64: 32, 288>}, {transform_indices = @transform_1, window_bounds = array<i64: 32, 288>}, {pipeline_mode = #tpu.pipeline_mode<synchronous>, transform_indices = @transform_2, window_bounds = array<i64: 288, 128>}, {pipeline_mode = #tpu.pipeline_mode<synchronous>, transform_indices = @transform_3, window_bounds = array<i64: 288, 128>}, {pipeline_mode = #tpu.pipeline_mode<synchronous>, transform_indices = @transform_4, window_bounds = array<i64: 1, 128>}, {transform_indices = @transform_5, window_bounds = array<i64: 32, 128>}]} {
    %c0 = arith.constant 0 : index
    %c0_0 = arith.constant 0 : index
    %0 = vector.load %arg1[%c0, %c0_0] : memref<32x288xbf16, #tpu.memory_space<vmem>>, vector<32x288xbf16>
    %c0_1 = arith.constant 0 : index
    %c0_2 = arith.constant 0 : index
    %1 = vector.load %arg3[%c0_1, %c0_2] : memref<288x128xbf16, #tpu.memory_space<vmem>>, vector<288x128xbf16>
    %cst = arith.constant dense<0.000000e+00> : vector<32x128xf32>
    %2 = tpu.matmul %0, %1, %cst {dimension_numbers = #tpu.dot_dimension_numbers<[1], [0], [0], [1], [0, 0, 1, 1], [], []>} : vector<32x288xbf16>, vector<288x128xbf16>, vector<32x128xf32> -> vector<32x128xf32>
    %c0_3 = arith.constant 0 : index
    %c0_4 = arith.constant 0 : index
    %3 = vector.load %arg2[%c0_3, %c0_4] : memref<32x288xbf16, #tpu.memory_space<vmem>>, vector<32x288xbf16>
    %c0_5 = arith.constant 0 : index
    %c0_6 = arith.constant 0 : index
    %4 = vector.load %arg4[%c0_5, %c0_6] : memref<288x128xbf16, #tpu.memory_space<vmem>>, vector<288x128xbf16>
    %cst_7 = arith.constant dense<0.000000e+00> : vector<32x128xf32>
    %5 = tpu.matmul %3, %4, %cst_7 {dimension_numbers = #tpu.dot_dimension_numbers<[1], [0], [0], [1], [0, 0, 1, 1], [], []>} : vector<32x288xbf16>, vector<288x128xbf16>, vector<32x128xf32> -> vector<32x128xf32>
    %6 = arith.addf %2, %5 : vector<32x128xf32>
    %c0_8 = arith.constant 0 : index
    %c0_9 = arith.constant 0 : index
    %7 = vector.load %arg5[%c0_8, %c0_9] : memref<1x128xf32, #tpu.memory_space<vmem>>, vector<1x128xf32>
    %8 = vector.broadcast %7 : vector<1x128xf32> to vector<32x128xf32>
    %9 = arith.addf %6, %8 : vector<32x128xf32>
    %cst_10 = arith.constant 0.000000e+00 : f32
    %10 = vector.broadcast %cst_10 : f32 to vector<32x128xf32>
    %11 = arith.maximumf %9, %10 : vector<32x128xf32>
    %12 = arith.truncf %11 : vector<32x128xf32> to vector<32x128xbf16>
    %c0_11 = arith.constant 0 : index
    %c0_12 = arith.constant 0 : index
    %13 = vector.load %arg6[%c0_11, %c0_12] : memref<32x128xbf16, #tpu.memory_space<vmem>>, vector<32x128xbf16>
    tpu.vector_store %arg6[%c0_11, %c0_12], %12 {strides = array<i32>} : memref<32x128xbf16, #tpu.memory_space<vmem>>, vector<32x128xbf16>,
    return
  }
  func.func @transform_0(%arg0: i32) -> (i32, i32) {
    %c0_i32 = arith.constant 0 : i32
    %c0_i32_0 = arith.constant 0 : i32
    return %arg0, %c0_i32 : i32, i32
  }
  func.func @transform_1(%arg0: i32) -> (i32, i32) {
    %c0_i32 = arith.constant 0 : i32
    %c0_i32_0 = arith.constant 0 : i32
    return %arg0, %c0_i32 : i32, i32
  }
  func.func @transform_2(%arg0: i32) -> (i32, i32) {
    %c0_i32 = arith.constant 0 : i32
    %c0_i32_0 = arith.constant 0 : i32
    %c0_i32_1 = arith.constant 0 : i32
    return %c0_i32, %c0_i32_0 : i32, i32
  }
  func.func @transform_3(%arg0: i32) -> (i32, i32) {
    %c0_i32 = arith.constant 0 : i32
    %c0_i32_0 = arith.constant 0 : i32
    %c0_i32_1 = arith.constant 0 : i32
    return %c0_i32, %c0_i32_0 : i32, i32
  }
  func.func @transform_4(%arg0: i32) -> (i32, i32) {
    %c0_i32 = arith.constant 0 : i32
    %c0_i32_0 = arith.constant 0 : i32
    %c0_i32_1 = arith.constant 0 : i32
    return %c0_i32, %c0_i32_0 : i32, i32
  }
  func.func @transform_5(%arg0: i32) -> (i32, i32) {
    %c0_i32 = arith.constant 0 : i32
    %c0_i32_0 = arith.constant 0 : i32
    return %arg0, %c0_i32 : i32, i32
  }
}

module attributes {stable_mosaic.version = 11 : i64} {
  func.func @_wave_max_kernel(%arg0: i32, %arg1: memref<32x144xbf16, #tpu.memory_space<vmem>>, %arg2: memref<144x128xbf16, #tpu.memory_space<vmem>>, %arg3: memref<1x128xf32, #tpu.memory_space<vmem>>, %arg4: memref<1x1xf32, #tpu.memory_space<vmem>>) attributes {dimension_semantics = [#tpu.dimension_semantics<arbitrary>], iteration_bounds = array<i64: 1>, scalar_prefetch = 0 : i64, scratch_operands = 0 : i64, tpu.core_type = #tpu.core_type<tc>, window_params = [{transform_indices = @transform_0, window_bounds = array<i64: 32, 144>}, {pipeline_mode = #tpu.pipeline_mode<synchronous>, transform_indices = @transform_1, window_bounds = array<i64: 144, 128>}, {pipeline_mode = #tpu.pipeline_mode<synchronous>, transform_indices = @transform_2, window_bounds = array<i64: 1, 128>}, {pipeline_mode = #tpu.pipeline_mode<synchronous>, transform_indices = @transform_3, window_bounds = array<i64: 1, 1>}]} {
    %c0_i32 = arith.constant 0 : i32
    %0 = arith.cmpi eq, %arg0, %c0_i32 : i32
    %1 = arith.extui %0 : i1 to i32
    %c0_i32_0 = arith.constant 0 : i32
    %2 = arith.cmpi ne, %1, %c0_i32_0 : i32
    scf.if %2 {
      %cst_13 = arith.constant 0.000000e+00 : f32
      %35 = vector.broadcast %cst_13 : f32 to vector<1x1xf32>
      %c0_14 = arith.constant 0 : index
      %c0_15 = arith.constant 0 : index
      %36 = vector.load %arg4[%c0_14, %c0_15] : memref<1x1xf32, #tpu.memory_space<vmem>>, vector<1x1xf32>
      tpu.vector_store %arg4[%c0_14, %c0_15], %35 {strides = array<i32>} : memref<1x1xf32, #tpu.memory_space<vmem>>, vector<1x1xf32>,
    } else {
    }
    %c0 = arith.constant 0 : index
    %c0_1 = arith.constant 0 : index
    %3 = vector.load %arg1[%c0, %c0_1] : memref<32x144xbf16, #tpu.memory_space<vmem>>, vector<32x144xbf16>
    %c0_2 = arith.constant 0 : index
    %c0_3 = arith.constant 0 : index
    %4 = vector.load %arg2[%c0_2, %c0_3] : memref<144x128xbf16, #tpu.memory_space<vmem>>, vector<144x128xbf16>
    %cst = arith.constant dense<0.000000e+00> : vector<32x128xf32>
    %5 = tpu.matmul %3, %4, %cst {dimension_numbers = #tpu.dot_dimension_numbers<[1], [0], [0], [1], [0, 0, 1, 1], [], []>} : vector<32x144xbf16>, vector<144x128xbf16>, vector<32x128xf32> -> vector<32x128xf32>
    %c0_4 = arith.constant 0 : index
    %c0_5 = arith.constant 0 : index
    %6 = vector.load %arg3[%c0_4, %c0_5] : memref<1x128xf32, #tpu.memory_space<vmem>>, vector<1x128xf32>
    %7 = vector.broadcast %6 : vector<1x128xf32> to vector<32x128xf32>
    %8 = arith.addf %5, %7 : vector<32x128xf32>
    %9 = tpu.iota {dimensions = array<i32: 1>} : vector<1x128xi32>
    %c1_i32 = arith.constant 1 : i32
    %10 = vector.broadcast %c1_i32 : i32 to vector<1x128xi32>
    %11 = arith.cmpi sge, %9, %10 : vector<1x128xi32>
    %c4_i32 = arith.constant 4 : i32
    %12 = vector.broadcast %c4_i32 : i32 to vector<1x128xi32>
    %13 = arith.cmpi slt, %9, %12 : vector<1x128xi32>
    %14 = arith.andi %11, %13 : vector<1x128xi1>
    %c32_i32 = arith.constant 32 : i32
    %15 = arith.muli %arg0, %c32_i32 : i32
    %16 = tpu.iota {dimensions = array<i32: 0>} : vector<32x1xi32>
    %17 = vector.broadcast %15 : i32 to vector<32x1xi32>
    %18 = arith.addi %17, %16 : vector<32x1xi32>
    %c32_i32_6 = arith.constant 32 : i32
    %19 = vector.broadcast %c32_i32_6 : i32 to vector<32x1xi32>
    %20 = arith.cmpi slt, %18, %19 : vector<32x1xi32>
    %21 = vector.broadcast %14 : vector<1x128xi1> to vector<32x128xi1>
    %22 = vector.broadcast %20 : vector<32x1xi1> to vector<32x128xi1>
    %23 = arith.andi %21, %22 : vector<32x128xi1>
    %24 = math.absf %8 : vector<32x128xf32>
    %cst_7 = arith.constant 0.000000e+00 : f32
    %25 = vector.broadcast %cst_7 : f32 to vector<32x128xf32>
    %26 = arith.select %23, %24, %25 : vector<32x128xi1>, vector<32x128xf32>
    %27 = vector.shape_cast %26 : vector<32x128xf32> to vector<1x32x128xf32>
    %cst_8 = arith.constant dense<0xFF800000> : vector<1xf32>
    %28 = vector.multi_reduction <maximumf>, %27, %cst_8 [1, 2] : vector<1x32x128xf32> to vector<1xf32>
    %29 = vector.shape_cast %28 : vector<1xf32> to vector<1x1x1xf32>
    %30 = vector.extract %29[0, 0, 0] : f32 from vector<1x1x1xf32>
    %c0_9 = arith.constant 0 : index
    %c0_10 = arith.constant 0 : index
    %31 = vector.load %arg4[%c0_9, %c0_10] : memref<1x1xf32, #tpu.memory_space<vmem>>, vector<1x1xf32>
    %32 = vector.broadcast %30 : f32 to vector<1x1xf32>
    %33 = arith.maximumf %31, %32 : vector<1x1xf32>
    %c0_11 = arith.constant 0 : index
    %c0_12 = arith.constant 0 : index
    %34 = vector.load %arg4[%c0_11, %c0_12] : memref<1x1xf32, #tpu.memory_space<vmem>>, vector<1x1xf32>
    tpu.vector_store %arg4[%c0_11, %c0_12], %33 {strides = array<i32>} : memref<1x1xf32, #tpu.memory_space<vmem>>, vector<1x1xf32>,
    return
  }
  func.func @transform_0(%arg0: i32) -> (i32, i32) {
    %c0_i32 = arith.constant 0 : i32
    %c0_i32_0 = arith.constant 0 : i32
    return %arg0, %c0_i32 : i32, i32
  }
  func.func @transform_1(%arg0: i32) -> (i32, i32) {
    %c0_i32 = arith.constant 0 : i32
    %c0_i32_0 = arith.constant 0 : i32
    %c0_i32_1 = arith.constant 0 : i32
    return %c0_i32, %c0_i32_0 : i32, i32
  }
  func.func @transform_2(%arg0: i32) -> (i32, i32) {
    %c0_i32 = arith.constant 0 : i32
    %c0_i32_0 = arith.constant 0 : i32
    %c0_i32_1 = arith.constant 0 : i32
    return %c0_i32, %c0_i32_0 : i32, i32
  }
  func.func @transform_3(%arg0: i32) -> (i32, i32) {
    %c0_i32 = arith.constant 0 : i32
    %c0_i32_0 = arith.constant 0 : i32
    %c0_i32_1 = arith.constant 0 : i32
    return %c0_i32, %c0_i32_0 : i32, i32
  }
}

module attributes {stable_mosaic.version = 11 : i64} {
  func.func @_wave_apply_kernel(%arg0: i32, %arg1: memref<1xf32, #tpu.memory_space<smem>>, %arg2: memref<1x1xf32, #tpu.memory_space<smem>>, %arg3: memref<32x144xbf16, #tpu.memory_space<vmem>>, %arg4: memref<144x128xbf16, #tpu.memory_space<vmem>>, %arg5: memref<1x128xf32, #tpu.memory_space<vmem>>, %arg6: memref<32x128xbf16, #tpu.memory_space<vmem>>) attributes {dimension_semantics = [#tpu.dimension_semantics<parallel>], iteration_bounds = array<i64: 1>, scalar_prefetch = 0 : i64, scratch_operands = 0 : i64, tpu.core_type = #tpu.core_type<tc>, window_params = [{transform_indices = @transform_0, window_bounds = array<i64: 1>}, {transform_indices = @transform_1, window_bounds = array<i64: 1, 1>}, {transform_indices = @transform_2, window_bounds = array<i64: 32, 144>}, {pipeline_mode = #tpu.pipeline_mode<synchronous>, transform_indices = @transform_3, window_bounds = array<i64: 144, 128>}, {pipeline_mode = #tpu.pipeline_mode<synchronous>, transform_indices = @transform_4, window_bounds = array<i64: 1, 128>}, {transform_indices = @transform_5, window_bounds = array<i64: 32, 128>}]} {
    %c0 = arith.constant 0 : index
    %c0_0 = arith.constant 0 : index
    %0 = vector.load %arg3[%c0, %c0_0] : memref<32x144xbf16, #tpu.memory_space<vmem>>, vector<32x144xbf16>
    %c0_1 = arith.constant 0 : index
    %c0_2 = arith.constant 0 : index
    %1 = vector.load %arg4[%c0_1, %c0_2] : memref<144x128xbf16, #tpu.memory_space<vmem>>, vector<144x128xbf16>
    %cst = arith.constant dense<0.000000e+00> : vector<32x128xf32>
    %2 = tpu.matmul %0, %1, %cst {dimension_numbers = #tpu.dot_dimension_numbers<[1], [0], [0], [1], [0, 0, 1, 1], [], []>} : vector<32x144xbf16>, vector<144x128xbf16>, vector<32x128xf32> -> vector<32x128xf32>
    %c0_3 = arith.constant 0 : index
    %c0_4 = arith.constant 0 : index
    %3 = vector.load %arg5[%c0_3, %c0_4] : memref<1x128xf32, #tpu.memory_space<vmem>>, vector<1x128xf32>
    %4 = vector.broadcast %3 : vector<1x128xf32> to vector<32x128xf32>
    %5 = arith.addf %2, %4 : vector<32x128xf32>
    %6 = tpu.iota {dimensions = array<i32: 1>} : vector<1x128xi32>
    %c1_i32 = arith.constant 1 : i32
    %7 = vector.broadcast %c1_i32 : i32 to vector<1x128xi32>
    %8 = arith.cmpi sge, %6, %7 : vector<1x128xi32>
    %c4_i32 = arith.constant 4 : i32
    %9 = vector.broadcast %c4_i32 : i32 to vector<1x128xi32>
    %10 = arith.cmpi slt, %6, %9 : vector<1x128xi32>
    %11 = arith.andi %8, %10 : vector<1x128xi1>
    %c0_5 = arith.constant 0 : index
    %12 = memref.load %arg1[%c0_5] : memref<1xf32, #tpu.memory_space<smem>>
    %c0_6 = arith.constant 0 : index
    %c0_7 = arith.constant 0 : index
    %13 = memref.load %arg2[%c0_6, %c0_7] : memref<1x1xf32, #tpu.memory_space<smem>>
    %14 = arith.mulf %12, %13 : f32
    %cst_8 = arith.constant dense<true> : vector<1x128xi1>
    %15 = arith.xori %11, %cst_8 : vector<1x128xi1>
    %16 = math.absf %5 : vector<32x128xf32>
    %17 = vector.broadcast %14 : f32 to vector<32x128xf32>
    %18 = arith.cmpf ogt, %16, %17 : vector<32x128xf32>
    %19 = vector.broadcast %15 : vector<1x128xi1> to vector<32x128xi1>
    %20 = arith.ori %19, %18 : vector<32x128xi1>
    %cst_9 = arith.constant 0.000000e+00 : f32
    %21 = vector.broadcast %cst_9 : f32 to vector<32x128xf32>
    %22 = arith.select %20, %5, %21 : vector<32x128xi1>, vector<32x128xf32>
    %23 = arith.truncf %22 : vector<32x128xf32> to vector<32x128xbf16>
    %c0_10 = arith.constant 0 : index
    %c0_11 = arith.constant 0 : index
    %24 = vector.load %arg6[%c0_10, %c0_11] : memref<32x128xbf16, #tpu.memory_space<vmem>>, vector<32x128xbf16>
    tpu.vector_store %arg6[%c0_10, %c0_11], %23 {strides = array<i32>} : memref<32x128xbf16, #tpu.memory_space<vmem>>, vector<32x128xbf16>,
    return
  }
  func.func @transform_0(%arg0: i32) -> i32 {
    %c0_i32 = arith.constant 0 : i32
    %c0_i32_0 = arith.constant 0 : i32
    return %c0_i32 : i32
  }
  func.func @transform_1(%arg0: i32) -> (i32, i32) {
    %c0_i32 = arith.constant 0 : i32
    %c0_i32_0 = arith.constant 0 : i32
    %c0_i32_1 = arith.constant 0 : i32
    return %c0_i32, %c0_i32_0 : i32, i32
  }
  func.func @transform_2(%arg0: i32) -> (i32, i32) {
    %c0_i32 = arith.constant 0 : i32
    %c0_i32_0 = arith.constant 0 : i32
    return %arg0, %c0_i32 : i32, i32
  }
  func.func @transform_3(%arg0: i32) -> (i32, i32) {
    %c0_i32 = arith.constant 0 : i32
    %c0_i32_0 = arith.constant 0 : i32
    %c0_i32_1 = arith.constant 0 : i32
    return %c0_i32, %c0_i32_0 : i32, i32
  }
  func.func @transform_4(%arg0: i32) -> (i32, i32) {
    %c0_i32 = arith.constant 0 : i32
    %c0_i32_0 = arith.constant 0 : i32
    %c0_i32_1 = arith.constant 0 : i32
    return %c0_i32, %c0_i32_0 : i32, i32
  }
  func.func @transform_5(%arg0: i32) -> (i32, i32) {
    %c0_i32 = arith.constant 0 : i32
    %c0_i32_0 = arith.constant 0 : i32
    return %arg0, %c0_i32 : i32, i32
  }
}

module attributes {stable_mosaic.version = 11 : i64} {
  func.func @_fused_matmul_kernel(%arg0: i32, %arg1: memref<128x144xbf16, #tpu.memory_space<vmem>>, %arg2: memref<128x48xbf16, #tpu.memory_space<vmem>>, %arg3: memref<128x144xbf16, #tpu.memory_space<vmem>>, %arg4: memref<144x128xbf16, #tpu.memory_space<vmem>>, %arg5: memref<48x128xbf16, #tpu.memory_space<vmem>>, %arg6: memref<144x128xbf16, #tpu.memory_space<vmem>>, %arg7: memref<1x128xf32, #tpu.memory_space<vmem>>, %arg8: memref<128x128xf32, #tpu.memory_space<vmem>>) attributes {dimension_semantics = [#tpu.dimension_semantics<parallel>], iteration_bounds = array<i64: 1>, scalar_prefetch = 0 : i64, scratch_operands = 0 : i64, tpu.core_type = #tpu.core_type<tc>, window_params = [{transform_indices = @transform_0, window_bounds = array<i64: 128, 144>}, {transform_indices = @transform_1, window_bounds = array<i64: 128, 48>}, {transform_indices = @transform_2, window_bounds = array<i64: 128, 144>}, {pipeline_mode = #tpu.pipeline_mode<synchronous>, transform_indices = @transform_3, window_bounds = array<i64: 144, 128>}, {pipeline_mode = #tpu.pipeline_mode<synchronous>, transform_indices = @transform_4, window_bounds = array<i64: 48, 128>}, {pipeline_mode = #tpu.pipeline_mode<synchronous>, transform_indices = @transform_5, window_bounds = array<i64: 144, 128>}, {pipeline_mode = #tpu.pipeline_mode<synchronous>, transform_indices = @transform_6, window_bounds = array<i64: 1, 128>}, {transform_indices = @transform_7, window_bounds = array<i64: 128, 128>}]} {
    %c0 = arith.constant 0 : index
    %c0_0 = arith.constant 0 : index
    %0 = vector.load %arg1[%c0, %c0_0] : memref<128x144xbf16, #tpu.memory_space<vmem>>, vector<128x144xbf16>
    %c0_1 = arith.constant 0 : index
    %c0_2 = arith.constant 0 : index
    %1 = vector.load %arg4[%c0_1, %c0_2] : memref<144x128xbf16, #tpu.memory_space<vmem>>, vector<144x128xbf16>
    %cst = arith.constant dense<0.000000e+00> : vector<128x128xf32>
    %2 = tpu.matmul %0, %1, %cst {dimension_numbers = #tpu.dot_dimension_numbers<[1], [0], [0], [1], [0, 0, 1, 1], [], []>} : vector<128x144xbf16>, vector<144x128xbf16>, vector<128x128xf32> -> vector<128x128xf32>
    %c0_3 = arith.constant 0 : index
    %c0_4 = arith.constant 0 : index
    %3 = vector.load %arg2[%c0_3, %c0_4] : memref<128x48xbf16, #tpu.memory_space<vmem>>, vector<128x48xbf16>
    %c0_5 = arith.constant 0 : index
    %c0_6 = arith.constant 0 : index
    %4 = vector.load %arg5[%c0_5, %c0_6] : memref<48x128xbf16, #tpu.memory_space<vmem>>, vector<48x128xbf16>
    %cst_7 = arith.constant dense<0.000000e+00> : vector<128x128xf32>
    %5 = tpu.matmul %3, %4, %cst_7 {dimension_numbers = #tpu.dot_dimension_numbers<[1], [0], [0], [1], [0, 0, 1, 1], [], []>} : vector<128x48xbf16>, vector<48x128xbf16>, vector<128x128xf32> -> vector<128x128xf32>
    %6 = arith.addf %2, %5 : vector<128x128xf32>
    %c0_8 = arith.constant 0 : index
    %c0_9 = arith.constant 0 : index
    %7 = vector.load %arg3[%c0_8, %c0_9] : memref<128x144xbf16, #tpu.memory_space<vmem>>, vector<128x144xbf16>
    %c0_10 = arith.constant 0 : index
    %c0_11 = arith.constant 0 : index
    %8 = vector.load %arg6[%c0_10, %c0_11] : memref<144x128xbf16, #tpu.memory_space<vmem>>, vector<144x128xbf16>
    %cst_12 = arith.constant dense<0.000000e+00> : vector<128x128xf32>
    %9 = tpu.matmul %7, %8, %cst_12 {dimension_numbers = #tpu.dot_dimension_numbers<[1], [0], [0], [1], [0, 0, 1, 1], [], []>} : vector<128x144xbf16>, vector<144x128xbf16>, vector<128x128xf32> -> vector<128x128xf32>
    %10 = arith.addf %6, %9 : vector<128x128xf32>
    %c0_13 = arith.constant 0 : index
    %c0_14 = arith.constant 0 : index
    %11 = vector.load %arg7[%c0_13, %c0_14] : memref<1x128xf32, #tpu.memory_space<vmem>>, vector<1x128xf32>
    %12 = vector.broadcast %11 : vector<1x128xf32> to vector<128x128xf32>
    %13 = arith.addf %10, %12 : vector<128x128xf32>
    %14 = arith.negf %13 : vector<128x128xf32>
    %15 = math.exp %14 : vector<128x128xf32>
    %cst_15 = arith.constant 1.000000e+00 : f32
    %16 = vector.broadcast %cst_15 : f32 to vector<128x128xf32>
    %17 = arith.addf %16, %15 : vector<128x128xf32>
    %18 = arith.divf %16, %17 : vector<128x128xf32>
    %c0_16 = arith.constant 0 : index
    %c0_17 = arith.constant 0 : index
    %19 = vector.load %arg8[%c0_16, %c0_17] : memref<128x128xf32, #tpu.memory_space<vmem>>, vector<128x128xf32>
    tpu.vector_store %arg8[%c0_16, %c0_17], %18 {strides = array<i32>} : memref<128x128xf32, #tpu.memory_space<vmem>>, vector<128x128xf32>,
    return
  }
  func.func @transform_0(%arg0: i32) -> (i32, i32) {
    %c0_i32 = arith.constant 0 : i32
    %c0_i32_0 = arith.constant 0 : i32
    return %arg0, %c0_i32 : i32, i32
  }
  func.func @transform_1(%arg0: i32) -> (i32, i32) {
    %c0_i32 = arith.constant 0 : i32
    %c0_i32_0 = arith.constant 0 : i32
    return %arg0, %c0_i32 : i32, i32
  }
  func.func @transform_2(%arg0: i32) -> (i32, i32) {
    %c0_i32 = arith.constant 0 : i32
    %c0_i32_0 = arith.constant 0 : i32
    return %arg0, %c0_i32 : i32, i32
  }
  func.func @transform_3(%arg0: i32) -> (i32, i32) {
    %c0_i32 = arith.constant 0 : i32
    %c0_i32_0 = arith.constant 0 : i32
    %c0_i32_1 = arith.constant 0 : i32
    return %c0_i32, %c0_i32_0 : i32, i32
  }
  func.func @transform_4(%arg0: i32) -> (i32, i32) {
    %c0_i32 = arith.constant 0 : i32
    %c0_i32_0 = arith.constant 0 : i32
    %c0_i32_1 = arith.constant 0 : i32
    return %c0_i32, %c0_i32_0 : i32, i32
  }
  func.func @transform_5(%arg0: i32) -> (i32, i32) {
    %c0_i32 = arith.constant 0 : i32
    %c0_i32_0 = arith.constant 0 : i32
    %c0_i32_1 = arith.constant 0 : i32
    return %c0_i32, %c0_i32_0 : i32, i32
  }
  func.func @transform_6(%arg0: i32) -> (i32, i32) {
    %c0_i32 = arith.constant 0 : i32
    %c0_i32_0 = arith.constant 0 : i32
    %c0_i32_1 = arith.constant 0 : i32
    return %c0_i32, %c0_i32_0 : i32, i32
  }
  func.func @transform_7(%arg0: i32) -> (i32, i32) {
    %c0_i32 = arith.constant 0 : i32
    %c0_i32_0 = arith.constant 0 : i32
    return %arg0, %c0_i32 : i32, i32
  }
}

</mosaic_0001>

<llo_original>
// kernel: sparse_model_forward.8
$region0: #{sparse_model_forward.8}
  #allocation0 [shape = 'u32[]', space=smem, size = 0x4, offset = 0x4, fixed_abs, tag = 'smem constant byte address 0x4 - core index']
  #allocation1 [shape = 'u32[144,128]{1,0:T(1,128)}', space=vmem, size = 0x12000, scoped, tag = 'internal scratch']
  %s0 = inlined_call_operand.vmem [shape: bf16[128,32], index: 0, kind: input, shape index: {}]
  %s1 = inlined_call_operand.vmem [shape: bf16[32,128], index: 1, kind: input, shape index: {}]
  %s2 = inlined_call_operand.vmem [shape: f32[1,128], index: 2, kind: input, shape index: {}]
  %s3 = inlined_call_operand.vmem [shape: bf16[128,128], index: 3, kind: output, shape index: {}]
  %s4 = sld [smem:[#allocation0]]
  $region22: #{sparse_model_forward.8} parent=0
    _
  %s6 = ssub.s32 1, %s4
  %s7 = scalar_select 0, %s6, %s4
  // Predicated region
  $region2: #{sparse_model_forward.8} parent=0 // pred_check
    _
  $region3: #{sparse_model_forward.8} parent=0 // pred_check_branch
    %9 = sbr.rel (0) target = $region5
  $region4: #{sparse_model_forward.8} parent=0 // pred_region
    _
  $region5: #{sparse_model_forward.8} parent=0 // pred_fallthru
    _
  // Predicated region
  $region6: #{sparse_model_forward.8} parent=0 // pred_check
    _
  $region7: #{sparse_model_forward.8} parent=0 // pred_check_branch
    %11 = sbr.rel (0) target = $region9
  $region8: #{sparse_model_forward.8} parent=0 // pred_region
    _
  $region9: #{sparse_model_forward.8} parent=0 // pred_fallthru
    _
  // Predicated region
  $region10: #{sparse_model_forward.8} parent=0 // pred_check
    _
  $region11: #{sparse_model_forward.8} parent=0 // pred_check_branch
    %13 = sbr.rel (0) target = $region13
  $region12: #{sparse_model_forward.8} parent=0 // pred_region
    _
  $region13: #{sparse_model_forward.8} parent=0 // pred_fallthru
    _
  %v15 = vld [vmem:[%s0] sm:$0xf]
  %v16 = vld [vmem:[%s0 + $0x4] sm:$0xf]
  %v17 = vld [vmem:[%s0 + $0x8] sm:$0xf]
  %v18 = vld [vmem:[%s0 + $0xc] sm:$0xf]
  %v19 = vld [vmem:[%s0 + $0x10] sm:$0xf]
  %v20 = vld [vmem:[%s0 + $0x14] sm:$0xf]
  %v21 = vld [vmem:[%s0 + $0x18] sm:$0xf]
  %v22 = vld [vmem:[%s0 + $0x1c] sm:$0xf]
  %v23 = vld [vmem:[%s0 + $0x20] sm:$0xf]
  %v24 = vld [vmem:[%s0 + $0x24] sm:$0xf]
  %v25 = vld [vmem:[%s0 + $0x28] sm:$0xf]
  %v26 = vld [vmem:[%s0 + $0x2c] sm:$0xf]
  %v27 = vld [vmem:[%s0 + $0x30] sm:$0xf]
  %v28 = vld [vmem:[%s0 + $0x34] sm:$0xf]
  %v29 = vld [vmem:[%s0 + $0x38] sm:$0xf]
  %v30 = vld [vmem:[%s0 + $0x3c] sm:$0xf]
  %v31 = vld [vmem:[%s1] sm:$0xf]
  %v32 = vld [vmem:[%s1 + $0x4] sm:$0xf]
  %v33 = vld [vmem:[%s1 + $0x8] sm:$0xf]
  %v34 = vld [vmem:[%s1 + $0xc] sm:$0xf]
  %v35 = vld [vmem:[%s2] sm:$0x1]
  %v37 = vlaneseq
  %v38 = vshrl.u32 %v37, 7
  %v39 = vsub.s32 0, %v38
  %v40 = vrot.slane %v35, %v39
  %v58 = vunpack.c.l.b16 %v15
  %v59 = vunpack.c.l.b16 %v16
  %v60 = vunpack.c.l.b16 %v17
  %v61 = vunpack.c.l.b16 %v18
  %v62 = vunpack.c.l.b16 %v19
  %v63 = vunpack.c.l.b16 %v20
  %v64 = vunpack.c.l.b16 %v21
  %v65 = vunpack.c.l.b16 %v22
  %v66 = vunpack.c.l.b16 %v23
  %v67 = vunpack.c.l.b16 %v24
  %v68 = vunpack.c.l.b16 %v25
  %v69 = vunpack.c.l.b16 %v26
  %v70 = vunpack.c.l.b16 %v27
  %v71 = vunpack.c.l.b16 %v28
  %v72 = vunpack.c.l.b16 %v29
  %v73 = vunpack.c.l.b16 %v30
  %v74 = vpack.c.b16 %v59, %v58
  %v75 = vpack.c.b16 %v61, %v60
  %v76 = vpack.c.b16 %v63, %v62
  %v77 = vpack.c.b16 %v65, %v64
  %v78 = vpack.c.b16 %v67, %v66
  %v79 = vpack.c.b16 %v69, %v68
  %v80 = vpack.c.b16 %v71, %v70
  %v81 = vpack.c.b16 %v73, %v72
  %v86 = vunpack.c.l.b16 %v31
  %v87 = vunpack.c.l.b16 %v32
  %v88 = vunpack.c.l.b16 %v33
  %v89 = vunpack.c.l.b16 %v34
  %v90 = vpack.c.b16 %v87, %v86
  %v91 = vpack.c.b16 %v89, %v88
  %vm94 = vcmask 261120
  %v96 = vsel %vm94, %v74, 0
  %v99 = vsel %vm94, %v75, 0
  %v102 = vsel %vm94, %v76, 0
  %v105 = vsel %vm94, %v77, 0
  %v108 = vsel %vm94, %v78, 0
  %v111 = vsel %vm94, %v79, 0
  %v114 = vsel %vm94, %v80, 0
  %v117 = vsel %vm94, %v81, 0
  %119 = vmatprep.subr.bf16.mxu0 0
  %120 = vmatpush1.bf16.msra.mxu0 0
  %121 = vmatprep.subr.bf16.mxu0 0
  %122 = vmatpush1.bf16.msra.mxu0 0
  %123 = vmatprep.subr.bf16.mxu0 0
  %124 = vmatpush1.bf16.msra.mxu0 0
  %125 = vmatprep.subr.bf16.mxu0 0
  %126 = vmatpush1.bf16.msra.mxu0 0
  %127 = vmatprep.subr.bf16.mxu0 0
  %128 = vmatpush1.bf16.msra.mxu0 0
  %129 = vmatprep.subr.bf16.mxu0 0
  %130 = vmatpush1.bf16.msra.mxu0 0
  %131 = vmatprep.subr.bf16.mxu0 0
  %132 = vmatpush1.bf16.msra.mxu0 %v91
  %133 = vmatprep.subr.bf16.mxu0 0
  %134 = vmatpush1.bf16.msra.mxu0 %v90
  %135 = vmatprep.subr.bf16.mxu0 0
  %136 = vmatpush2.bf16.msra.mxu0 0
  %137 = vmatprep.subr.bf16.mxu0 0
  %138 = vmatpush2.bf16.msra.mxu0 0
  %139 = vmatprep.subr.bf16.mxu0 0
  %140 = vmatpush2.bf16.msra.mxu0 0
  %141 = vmatprep.subr.bf16.mxu0 0
  %142 = vmatpush2.bf16.msra.mxu0 0
  %143 = vmatprep.subr.bf16.mxu0 0
  %144 = vmatpush2.bf16.msra.mxu0 0
  %145 = vmatprep.subr.bf16.mxu0 0
  %146 = vmatpush2.bf16.msra.mxu0 0
  %147 = vmatprep.subr.bf16.mxu0 0
  %148 = vmatpush2.bf16.msra.mxu0 0
  %149 = vmatprep.subr.bf16.mxu0 0
  %150 = vmatpush2.bf16.msra.mxu0 0
  %151 = vmatprep.mubr.bf16.mxu0 0
  %152 = vmatmul.mubr.bf16.gmra.mxu0 %v96
  %v153 = vpop.f32.mrf.mxu0
  %v154 = vadd.f32 %v40, %v153
  %v155 = vpop.f32.mrf.mxu0
  %v156 = vpop.f32.mrf.mxu0
  %v157 = vadd.f32 %v40, %v156
  %v158 = vpop.f32.mrf.mxu0
  %159 = vmatprep.mubr.bf16.mxu0 0
  %160 = vmatmul.mubr.bf16.gmra.mxu0 %v99
  %v161 = vpop.f32.mrf.mxu0
  %v162 = vadd.f32 %v40, %v161
  %v163 = vpop.f32.mrf.mxu0
  %v164 = vpop.f32.mrf.mxu0
  %v165 = vadd.f32 %v40, %v164
  %v166 = vpop.f32.mrf.mxu0
  %167 = vmatprep.mubr.bf16.mxu0 0
  %168 = vmatmul.mubr.bf16.gmra.mxu0 %v102
  %v169 = vpop.f32.mrf.mxu0
  %v170 = vadd.f32 %v40, %v169
  %v171 = vpop.f32.mrf.mxu0
  %v172 = vpop.f32.mrf.mxu0
  %v173 = vadd.f32 %v40, %v172
  %v174 = vpop.f32.mrf.mxu0
  %175 = vmatprep.mubr.bf16.mxu0 0
  %176 = vmatmul.mubr.bf16.gmra.mxu0 %v105
  %v177 = vpop.f32.mrf.mxu0
  %v178 = vadd.f32 %v40, %v177
  %v179 = vpop.f32.mrf.mxu0
  %v180 = vpop.f32.mrf.mxu0
  %v181 = vadd.f32 %v40, %v180
  %v182 = vpop.f32.mrf.mxu0
  %183 = vmatprep.mubr.bf16.mxu0 0
  %184 = vmatmul.mubr.bf16.gmra.mxu0 %v108
  %v185 = vpop.f32.mrf.mxu0
  %v186 = vadd.f32 %v40, %v185
  %v187 = vpop.f32.mrf.mxu0
  %v188 = vpop.f32.mrf.mxu0
  %v189 = vadd.f32 %v40, %v188
  %v190 = vpop.f32.mrf.mxu0
  %191 = vmatprep.mubr.bf16.mxu0 0
  %192 = vmatmul.mubr.bf16.gmra.mxu0 %v111
  %v193 = vpop.f32.mrf.mxu0
  %v194 = vadd.f32 %v40, %v193
  %v195 = vpop.f32.mrf.mxu0
  %v196 = vpop.f32.mrf.mxu0
  %v197 = vadd.f32 %v40, %v196
  %v198 = vpop.f32.mrf.mxu0
  %199 = vmatprep.mubr.bf16.mxu0 0
  %200 = vmatmul.mubr.bf16.gmra.mxu0 %v114
  %v201 = vpop.f32.mrf.mxu0
  %v202 = vadd.f32 %v40, %v201
  %v203 = vpop.f32.mrf.mxu0
  %v204 = vpop.f32.mrf.mxu0
  %v205 = vadd.f32 %v40, %v204
  %v206 = vpop.f32.mrf.mxu0
  %207 = vmatprep.mubr.bf16.mxu0 0
  %208 = vmatmul.mubr.bf16.gmra.mxu0 %v117
  %v209 = vpop.f32.mrf.mxu0
  %v210 = vadd.f32 %v40, %v209
  %v211 = vpop.f32.mrf.mxu0
  %v212 = vpop.f32.mrf.mxu0
  %v213 = vadd.f32 %v40, %v212
  %v214 = vpop.f32.mrf.mxu0
  %215 = vdwg.mxu0
  %v216 = vmax.f32 %v154, 0.0
  %v217 = vmax.f32 %v157, 0.0
  %v218 = vmax.f32 %v162, 0.0
  %v219 = vmax.f32 %v165, 0.0
  %v220 = vmax.f32 %v170, 0.0
  %v221 = vmax.f32 %v173, 0.0
  %v222 = vmax.f32 %v178, 0.0
  %v223 = vmax.f32 %v181, 0.0
  %v224 = vmax.f32 %v186, 0.0
  %v225 = vmax.f32 %v189, 0.0
  %v226 = vmax.f32 %v194, 0.0
  %v227 = vmax.f32 %v197, 0.0
  %v228 = vmax.f32 %v202, 0.0
  %v229 = vmax.f32 %v205, 0.0
  %v230 = vmax.f32 %v210, 0.0
  %v231 = vmax.f32 %v213, 0.0
  %v232 = vpack.c.bf16 %v217, %v216
  %v233 = vpack.c.bf16 %v219, %v218
  %v234 = vpack.c.bf16 %v221, %v220
  %v235 = vpack.c.bf16 %v223, %v222
  %v236 = vpack.c.bf16 %v225, %v224
  %v237 = vpack.c.bf16 %v227, %v226
  %v238 = vpack.c.bf16 %v229, %v228
  %v239 = vpack.c.bf16 %v231, %v230
  %v248 = vunpack.c.l.b16 %v232
  %v249 = vunpack.c.h.b16 %v232
  %v250 = vunpack.c.l.b16 %v233
  %v251 = vunpack.c.h.b16 %v233
  %v252 = vunpack.c.l.b16 %v234
  %v253 = vunpack.c.h.b16 %v234
  %v254 = vunpack.c.l.b16 %v235
  %v255 = vunpack.c.h.b16 %v235
  %v256 = vunpack.c.l.b16 %v236
  %v257 = vunpack.c.h.b16 %v236
  %v258 = vunpack.c.l.b16 %v237
  %v259 = vunpack.c.h.b16 %v237
  %v260 = vunpack.c.l.b16 %v238
  %v261 = vunpack.c.h.b16 %v238
  %v262 = vunpack.c.l.b16 %v239
  %v263 = vunpack.c.h.b16 %v239
  %v264 = vpack.c.b16 %v248, %v248
  %v265 = vpack.c.b16 %v249, %v249
  %v266 = vpack.c.b16 %v250, %v250
  %v267 = vpack.c.b16 %v251, %v251
  %v268 = vpack.c.b16 %v252, %v252
  %v269 = vpack.c.b16 %v253, %v253
  %v270 = vpack.c.b16 %v254, %v254
  %v271 = vpack.c.b16 %v255, %v255
  %v272 = vpack.c.b16 %v256, %v256
  %v273 = vpack.c.b16 %v257, %v257
  %v274 = vpack.c.b16 %v258, %v258
  %v275 = vpack.c.b16 %v259, %v259
  %v276 = vpack.c.b16 %v260, %v260
  %v277 = vpack.c.b16 %v261, %v261
  %v278 = vpack.c.b16 %v262, %v262
  %v279 = vpack.c.b16 %v263, %v263
  %296 = vst [vmem:[%s3] sm:$0xf] %v264
  %297 = vst [vmem:[%s3 + $0x4] sm:$0xf] %v265
  %298 = vst [vmem:[%s3 + $0x8] sm:$0xf] %v266
  %299 = vst [vmem:[%s3 + $0xc] sm:$0xf] %v267
  %300 = vst [vmem:[%s3 + $0x10] sm:$0xf] %v268
  %301 = vst [vmem:[%s3 + $0x14] sm:$0xf] %v269
  %302 = vst [vmem:[%s3 + $0x18] sm:$0xf] %v270
  %303 = vst [vmem:[%s3 + $0x1c] sm:$0xf] %v271
  %304 = vst [vmem:[%s3 + $0x20] sm:$0xf] %v272
  %305 = vst [vmem:[%s3 + $0x24] sm:$0xf] %v273
  %306 = vst [vmem:[%s3 + $0x28] sm:$0xf] %v274
  %307 = vst [vmem:[%s3 + $0x2c] sm:$0xf] %v275
  %308 = vst [vmem:[%s3 + $0x30] sm:$0xf] %v276
  %309 = vst [vmem:[%s3 + $0x34] sm:$0xf] %v277
  %310 = vst [vmem:[%s3 + $0x38] sm:$0xf] %v278
  %311 = vst [vmem:[%s3 + $0x3c] sm:$0xf] %v279
  // Predicated region
  $region14: #{sparse_model_forward.8} parent=0 // pred_check
    _
  $region15: #{sparse_model_forward.8} parent=0 // pred_check_branch
    %313 = sbr.rel (0) target = $region17
  $region16: #{sparse_model_forward.8} parent=0 // pred_region
    _
  $region17: #{sparse_model_forward.8} parent=0 // pred_fallthru
    _
  // Predicated region
  $region18: #{sparse_model_forward.8} parent=0 // pred_check
    _
  $region19: #{sparse_model_forward.8} parent=0 // pred_check_branch
    %315 = sbr.rel (0) target = $region21
  $region20: #{sparse_model_forward.8} parent=0 // pred_region
    _
  $region21: #{sparse_model_forward.8} parent=0 // pred_fallthru
    _

// kernel: sparse_model_forward.9
$region0: #{sparse_model_forward.9}
  #allocation0 [shape = 'u32[]', space=smem, size = 0x4, offset = 0x4, fixed_abs, tag = 'smem constant byte address 0x4 - core index']
  #allocation1 [shape = 'u32[144,128]{1,0:T(1,128)}', space=vmem, size = 0x12000, scoped, tag = 'internal scratch']
  %s0 = inlined_call_operand.vmem [shape: bf16[32,144], index: 0, kind: input, shape index: {}]
  %s1 = inlined_call_operand.vmem [shape: bf16[144,128], index: 1, kind: input, shape index: {}]
  %s2 = inlined_call_operand.vmem [shape: f32[1,128], index: 2, kind: input, shape index: {}]
  %s3 = inlined_call_operand.vmem [shape: bf16[32,128], index: 3, kind: output, shape index: {}]
  %s4 = sld [smem:[#allocation0]]
  $region22: #{sparse_model_forward.9} parent=0
    _
  %s6 = ssub.s32 1, %s4
  %s7 = scalar_select 0, %s6, %s4
  // Predicated region
  $region2: #{sparse_model_forward.9} parent=0 // pred_check
    _
  $region3: #{sparse_model_forward.9} parent=0 // pred_check_branch
    %9 = sbr.rel (0) target = $region5
  $region4: #{sparse_model_forward.9} parent=0 // pred_region
    _
  $region5: #{sparse_model_forward.9} parent=0 // pred_fallthru
    _
  // Predicated region
  $region6: #{sparse_model_forward.9} parent=0 // pred_check
    _
  $region7: #{sparse_model_forward.9} parent=0 // pred_check_branch
    %11 = sbr.rel (0) target = $region9
  $region8: #{sparse_model_forward.9} parent=0 // pred_region
    _
  $region9: #{sparse_model_forward.9} parent=0 // pred_fallthru
    _
  // Predicated region
  $region10: #{sparse_model_forward.9} parent=0 // pred_check
    _
  $region11: #{sparse_model_forward.9} parent=0 // pred_check_branch
    %13 = sbr.rel (0) target = $region13
  $region12: #{sparse_model_forward.9} parent=0 // pred_region
    _
  $region13: #{sparse_model_forward.9} parent=0 // pred_fallthru
    _
  %v15 = vld [vmem:[%s0] sm:$0xff]
  %v16 = vld [vmem:[%s0 + $0x8] sm:$0xff]
  %v17 = vld [vmem:[%s0 + $0x10] sm:$0xff]
  %v18 = vld [vmem:[%s0 + $0x18] sm:$0xff]
  %v19 = vld [vmem:[%s1] sm:$0xf]
  %v20 = vld [vmem:[%s1 + $0x4] sm:$0xf]
  %v21 = vld [vmem:[%s1 + $0x8] sm:$0xf]
  %v22 = vld [vmem:[%s1 + $0xc] sm:$0xf]
  %v23 = vld [vmem:[%s1 + $0x10] sm:$0xf]
  %v24 = vld [vmem:[%s1 + $0x14] sm:$0xf]
  %v25 = vld [vmem:[%s1 + $0x18] sm:$0xf]
  %v26 = vld [vmem:[%s1 + $0x1c] sm:$0xf]
  %v27 = vld [vmem:[%s1 + $0x20] sm:$0xf]
  %v28 = vld [vmem:[%s1 + $0x24] sm:$0xf]
  %v29 = vld [vmem:[%s1 + $0x28] sm:$0xf]
  %v30 = vld [vmem:[%s1 + $0x2c] sm:$0xf]
  %v31 = vld [vmem:[%s1 + $0x30] sm:$0xf]
  %v32 = vld [vmem:[%s1 + $0x34] sm:$0xf]
  %v33 = vld [vmem:[%s1 + $0x38] sm:$0xf]
  %v34 = vld [vmem:[%s1 + $0x3c] sm:$0xf]
  %v35 = vld [vmem:[%s1 + $0x40] sm:$0xf]
  %v36 = vld [vmem:[%s1 + $0x44] sm:$0xf]
  %v37 = vld [vmem:[%s2] sm:$0x1]
  %v39 = vlaneseq
  %v40 = vshrl.u32 %v39, 7
  %v41 = vsub.s32 0, %v40
  %v42 = vrot.slane %v37, %v41
  %v48 = vunpack.c.l.b16 %v15
  %v49 = vunpack.c.h.b16 %v15
  %v50 = vunpack.c.l.b16 %v16
  %v51 = vunpack.c.h.b16 %v16
  %v52 = vunpack.c.l.b16 %v17
  %v53 = vunpack.c.h.b16 %v17
  %v54 = vunpack.c.l.b16 %v18
  %v55 = vunpack.c.h.b16 %v18
  %v56 = vpack.c.b16 %v50, %v48
  %v57 = vpack.c.b16 %v51, %v49
  %v58 = vpack.c.b16 %v54, %v52
  %v59 = vpack.c.b16 %v55, %v53
  %v80 = vunpack.c.l.b16 %v19
  %v81 = vunpack.c.l.b16 %v20
  %v82 = vunpack.c.l.b16 %v21
  %v83 = vunpack.c.l.b16 %v22
  %v84 = vunpack.c.l.b16 %v23
  %v85 = vunpack.c.l.b16 %v24
  %v86 = vunpack.c.l.b16 %v25
  %v87 = vunpack.c.l.b16 %v26
  %v88 = vunpack.c.l.b16 %v27
  %v89 = vunpack.c.l.b16 %v28
  %v90 = vunpack.c.l.b16 %v29
  %v91 = vunpack.c.l.b16 %v30
  %v92 = vunpack.c.l.b16 %v31
  %v93 = vunpack.c.l.b16 %v32
  %v94 = vunpack.c.l.b16 %v33
  %v95 = vunpack.c.l.b16 %v34
  %v96 = vunpack.c.l.b16 %v35
  %v97 = vunpack.c.l.b16 %v36
  %v98 = vpack.c.b16 %v81, %v80
  %v99 = vpack.c.b16 %v83, %v82
  %v100 = vpack.c.b16 %v85, %v84
  %v101 = vpack.c.b16 %v87, %v86
  %v102 = vpack.c.b16 %v89, %v88
  %v103 = vpack.c.b16 %v91, %v90
  %v104 = vpack.c.b16 %v93, %v92
  %v105 = vpack.c.b16 %v95, %v94
  %v106 = vpack.c.b16 %v97, %v96
  %vm116 = vcmask 130048
  %v118 = vsel %vm116, %v57, 0
  %v121 = vsel %vm116, %v59, 0
  %123 = vmatprep.subr.bf16.mxu0 0
  %124 = vmatpush1.bf16.msra.mxu0 %v105
  %125 = vmatprep.subr.bf16.mxu0 0
  %126 = vmatpush1.bf16.msra.mxu0 %v104
  %127 = vmatprep.subr.bf16.mxu0 0
  %128 = vmatpush1.bf16.msra.mxu0 %v103
  %129 = vmatprep.subr.bf16.mxu0 0
  %130 = vmatpush1.bf16.msra.mxu0 %v102
  %131 = vmatprep.subr.bf16.mxu0 0
  %132 = vmatpush1.bf16.msra.mxu0 %v101
  %133 = vmatprep.subr.bf16.mxu0 0
  %134 = vmatpush1.bf16.msra.mxu0 %v100
  %135 = vmatprep.subr.bf16.mxu0 0
  %136 = vmatpush1.bf16.msra.mxu0 %v99
  %137 = vmatprep.subr.bf16.mxu0 0
  %138 = vmatpush1.bf16.msra.mxu0 %v98
  %139 = vmatprep.subr.bf16.mxu0 0
  %140 = vmatpush2.bf16.msra.mxu0 0
  %141 = vmatprep.subr.bf16.mxu0 0
  %142 = vmatpush2.bf16.msra.mxu0 0
  %143 = vmatprep.subr.bf16.mxu0 0
  %144 = vmatpush2.bf16.msra.mxu0 0
  %145 = vmatprep.subr.bf16.mxu0 0
  %146 = vmatpush2.bf16.msra.mxu0 0
  %147 = vmatprep.subr.bf16.mxu0 0
  %148 = vmatpush2.bf16.msra.mxu0 0
  %149 = vmatprep.subr.bf16.mxu0 0
  %150 = vmatpush2.bf16.msra.mxu0 0
  %151 = vmatprep.subr.bf16.mxu0 0
  %152 = vmatpush2.bf16.msra.mxu0 0
  %153 = vmatprep.subr.bf16.mxu0 0
  %154 = vmatpush2.bf16.msra.mxu0 %v106
  %155 = vmatprep.mubr.bf16.mxu0 %v118
  %156 = vmatmul.mubr.bf16.gmra.mxu0 %v56
  %v157 = vpop.f32.mrf.mxu0
  %v158 = vadd.f32 %v42, %v157
  %v159 = vpop.f32.mrf.mxu0
  %v160 = vpop.f32.mrf.mxu0
  %v161 = vadd.f32 %v42, %v160
  %v162 = vpop.f32.mrf.mxu0
  %163 = vmatprep.mubr.bf16.mxu0 %v121
  %164 = vmatmul.mubr.bf16.gmra.mxu0 %v58
  %v165 = vpop.f32.mrf.mxu0
  %v166 = vadd.f32 %v42, %v165
  %v167 = vpop.f32.mrf.mxu0
  %v168 = vpop.f32.mrf.mxu0
  %v169 = vadd.f32 %v42, %v168
  %v170 = vpop.f32.mrf.mxu0
  %171 = vdwg.mxu0
  %v172 = vmax.f32 %v158, 0.0
  %v173 = vmax.f32 %v161, 0.0
  %v174 = vmax.f32 %v166, 0.0
  %v175 = vmax.f32 %v169, 0.0
  %v176 = vpack.c.bf16 %v173, %v172
  %v177 = vpack.c.bf16 %v175, %v174
  %v180 = vunpack.c.l.b16 %v176
  %v181 = vunpack.c.h.b16 %v176
  %v182 = vunpack.c.l.b16 %v177
  %v183 = vunpack.c.h.b16 %v177
  %v184 = vpack.c.b16 %v180, %v180
  %v185 = vpack.c.b16 %v181, %v181
  %v186 = vpack.c.b16 %v182, %v182
  %v187 = vpack.c.b16 %v183, %v183
  %192 = vst [vmem:[%s3] sm:$0xf] %v184
  %193 = vst [vmem:[%s3 + $0x4] sm:$0xf] %v185
  %194 = vst [vmem:[%s3 + $0x8] sm:$0xf] %v186
  %195 = vst [vmem:[%s3 + $0xc] sm:$0xf] %v187
  // Predicated region
  $region14: #{sparse_model_forward.9} parent=0 // pred_check
    _
  $region15: #{sparse_model_forward.9} parent=0 // pred_check_branch
    %197 = sbr.rel (0) target = $region17
  $region16: #{sparse_model_forward.9} parent=0 // pred_region
    _
  $region17: #{sparse_model_forward.9} parent=0 // pred_fallthru
    _
  // Predicated region
  $region18: #{sparse_model_forward.9} parent=0 // pred_check
    _
  $region19: #{sparse_model_forward.9} parent=0 // pred_check_branch
    %199 = sbr.rel (0) target = $region21
  $region20: #{sparse_model_forward.9} parent=0 // pred_region
    _
  $region21: #{sparse_model_forward.9} parent=0 // pred_fallthru
    _

// kernel: sparse_model_forward.10
$region0: #{sparse_model_forward.10}
  #allocation0 [shape = 'u32[]', space=smem, size = 0x4, offset = 0x4, fixed_abs, tag = 'smem constant byte address 0x4 - core index']
  #allocation1 [shape = 'u32[144,128]{1,0:T(1,128)}', space=vmem, size = 0x12000, scoped, tag = 'internal scratch']
  %s0 = inlined_call_operand.vmem [shape: bf16[16,288], index: 0, kind: input, shape index: {}]
  %s1 = inlined_call_operand.vmem [shape: bf16[288,128], index: 1, kind: input, shape index: {}]
  %s2 = inlined_call_operand.vmem [shape: f32[1,128], index: 2, kind: input, shape index: {}]
  %s3 = inlined_call_operand.vmem [shape: bf16[16,128], index: 3, kind: output, shape index: {}]
  %s4 = sld [smem:[#allocation0]]
  $region22: #{sparse_model_forward.10} parent=0
    _
  %s6 = ssub.s32 1, %s4
  %s7 = scalar_select 0, %s6, %s4
  // Predicated region
  $region2: #{sparse_model_forward.10} parent=0 // pred_check
    _
  $region3: #{sparse_model_forward.10} parent=0 // pred_check_branch
    %9 = sbr.rel (0) target = $region5
  $region4: #{sparse_model_forward.10} parent=0 // pred_region
    _
  $region5: #{sparse_model_forward.10} parent=0 // pred_fallthru
    _
  // Predicated region
  $region6: #{sparse_model_forward.10} parent=0 // pred_check
    _
  $region7: #{sparse_model_forward.10} parent=0 // pred_check_branch
    %11 = sbr.rel (0) target = $region9
  $region8: #{sparse_model_forward.10} parent=0 // pred_region
    _
  $region9: #{sparse_model_forward.10} parent=0 // pred_fallthru
    _
  // Predicated region
  $region10: #{sparse_model_forward.10} parent=0 // pred_check
    _
  $region11: #{sparse_model_forward.10} parent=0 // pred_check_branch
    %13 = sbr.rel (0) target = $region13
  $region12: #{sparse_model_forward.10} parent=0 // pred_region
    _
  $region13: #{sparse_model_forward.10} parent=0 // pred_fallthru
    _
  %v15 = vld [vmem:[%s0] sm:$0xff]
  %v16 = vld [vmem:[%s0 + $0x8] sm:$0xf]
  %v17 = vld [vmem:[%s0 + $0xc] sm:$0xff]
  %v18 = vld [vmem:[%s0 + $0x14] sm:$0xf]
  %v19 = vld [vmem:[%s1] sm:$0xf]
  %v20 = vld [vmem:[%s1 + $0x4] sm:$0xf]
  %v21 = vld [vmem:[%s1 + $0x8] sm:$0xf]
  %v22 = vld [vmem:[%s1 + $0xc] sm:$0xf]
  %v23 = vld [vmem:[%s1 + $0x10] sm:$0xf]
  %v24 = vld [vmem:[%s1 + $0x14] sm:$0xf]
  %v25 = vld [vmem:[%s1 + $0x18] sm:$0xf]
  %v26 = vld [vmem:[%s1 + $0x1c] sm:$0xf]
  %v27 = vld [vmem:[%s1 + $0x20] sm:$0xf]
  %v28 = vld [vmem:[%s1 + $0x24] sm:$0xf]
  %v29 = vld [vmem:[%s1 + $0x28] sm:$0xf]
  %v30 = vld [vmem:[%s1 + $0x2c] sm:$0xf]
  %v31 = vld [vmem:[%s1 + $0x30] sm:$0xf]
  %v32 = vld [vmem:[%s1 + $0x34] sm:$0xf]
  %v33 = vld [vmem:[%s1 + $0x38] sm:$0xf]
  %v34 = vld [vmem:[%s1 + $0x3c] sm:$0xf]
  %v35 = vld [vmem:[%s1 + $0x40] sm:$0xf]
  %v36 = vld [vmem:[%s1 + $0x44] sm:$0xf]
  %v37 = vld [vmem:[%s1 + $0x48] sm:$0xf]
  %v38 = vld [vmem:[%s1 + $0x4c] sm:$0xf]
  %v39 = vld [vmem:[%s1 + $0x50] sm:$0xf]
  %v40 = vld [vmem:[%s1 + $0x54] sm:$0xf]
  %v41 = vld [vmem:[%s1 + $0x58] sm:$0xf]
  %v42 = vld [vmem:[%s1 + $0x5c] sm:$0xf]
  %v43 = vld [vmem:[%s1 + $0x60] sm:$0xf]
  %v44 = vld [vmem:[%s1 + $0x64] sm:$0xf]
  %v45 = vld [vmem:[%s1 + $0x68] sm:$0xf]
  %v46 = vld [vmem:[%s1 + $0x6c] sm:$0xf]
  %v47 = vld [vmem:[%s1 + $0x70] sm:$0xf]
  %v48 = vld [vmem:[%s1 + $0x74] sm:$0xf]
  %v49 = vld [vmem:[%s1 + $0x78] sm:$0xf]
  %v50 = vld [vmem:[%s1 + $0x7c] sm:$0xf]
  %v51 = vld [vmem:[%s1 + $0x80] sm:$0xf]
  %v52 = vld [vmem:[%s1 + $0x84] sm:$0xf]
  %v53 = vld [vmem:[%s1 + $0x88] sm:$0xf]
  %v54 = vld [vmem:[%s1 + $0x8c] sm:$0xf]
  %v55 = vld [vmem:[%s2] sm:$0x1]
  %v57 = vlaneseq
  %v58 = vshrl.u32 %v57, 7
  %v59 = vsub.s32 0, %v58
  %v60 = vrot.slane %v55, %v59
  %v66 = vunpack.c.l.b16 %v15
  %v67 = vunpack.c.h.b16 %v15
  %v68 = vunpack.c.l.b16 %v16
  %v69 = vunpack.c.l.b16 %v17
  %v70 = vunpack.c.h.b16 %v17
  %v71 = vunpack.c.l.b16 %v18
  %v72 = vpack.c.b16 %v69, %v66
  %v73 = vpack.c.b16 %v70, %v67
  %v74 = vpack.c.b16 %v71, %v68
  %v113 = vunpack.c.l.b16 %v19
  %v114 = vunpack.c.l.b16 %v20
  %v115 = vunpack.c.l.b16 %v21
  %v116 = vunpack.c.l.b16 %v22
  %v117 = vunpack.c.l.b16 %v23
  %v118 = vunpack.c.l.b16 %v24
  %v119 = vunpack.c.l.b16 %v25
  %v120 = vunpack.c.l.b16 %v26
  %v121 = vunpack.c.l.b16 %v27
  %v122 = vunpack.c.l.b16 %v28
  %v123 = vunpack.c.l.b16 %v29
  %v124 = vunpack.c.l.b16 %v30
  %v125 = vunpack.c.l.b16 %v31
  %v126 = vunpack.c.l.b16 %v32
  %v127 = vunpack.c.l.b16 %v33
  %v128 = vunpack.c.l.b16 %v34
  %v129 = vunpack.c.l.b16 %v35
  %v130 = vunpack.c.l.b16 %v36
  %v131 = vunpack.c.l.b16 %v37
  %v132 = vunpack.c.l.b16 %v38
  %v133 = vunpack.c.l.b16 %v39
  %v134 = vunpack.c.l.b16 %v40
  %v135 = vunpack.c.l.b16 %v41
  %v136 = vunpack.c.l.b16 %v42
  %v137 = vunpack.c.l.b16 %v43
  %v138 = vunpack.c.l.b16 %v44
  %v139 = vunpack.c.l.b16 %v45
  %v140 = vunpack.c.l.b16 %v46
  %v141 = vunpack.c.l.b16 %v47
  %v142 = vunpack.c.l.b16 %v48
  %v143 = vunpack.c.l.b16 %v49
  %v144 = vunpack.c.l.b16 %v50
  %v145 = vunpack.c.l.b16 %v51
  %v146 = vunpack.c.l.b16 %v52
  %v147 = vunpack.c.l.b16 %v53
  %v148 = vunpack.c.l.b16 %v54
  %v149 = vpack.c.b16 %v114, %v113
  %v150 = vpack.c.b16 %v116, %v115
  %v151 = vpack.c.b16 %v118, %v117
  %v152 = vpack.c.b16 %v120, %v119
  %v153 = vpack.c.b16 %v122, %v121
  %v154 = vpack.c.b16 %v124, %v123
  %v155 = vpack.c.b16 %v126, %v125
  %v156 = vpack.c.b16 %v128, %v127
  %v157 = vpack.c.b16 %v130, %v129
  %v158 = vpack.c.b16 %v132, %v131
  %v159 = vpack.c.b16 %v134, %v133
  %v160 = vpack.c.b16 %v136, %v135
  %v161 = vpack.c.b16 %v138, %v137
  %v162 = vpack.c.b16 %v140, %v139
  %v163 = vpack.c.b16 %v142, %v141
  %v164 = vpack.c.b16 %v144, %v143
  %v165 = vpack.c.b16 %v146, %v145
  %v166 = vpack.c.b16 %v148, %v147
  %vm185 = vcmask 261120
  %v187 = vsel %vm185, %v74, 0
  %189 = vmatprep.subr.bf16.mxu0 0
  %190 = vmatpush1.bf16.msra.mxu0 %v156
  %191 = vmatprep.subr.bf16.mxu0 0
  %192 = vmatpush1.bf16.msra.mxu0 %v155
  %193 = vmatprep.subr.bf16.mxu0 0
  %194 = vmatpush1.bf16.msra.mxu0 %v154
  %195 = vmatprep.subr.bf16.mxu0 0
  %196 = vmatpush1.bf16.msra.mxu0 %v153
  %197 = vmatprep.subr.bf16.mxu0 0
  %198 = vmatpush1.bf16.msra.mxu0 %v152
  %199 = vmatprep.subr.bf16.mxu0 0
  %200 = vmatpush1.bf16.msra.mxu0 %v151
  %201 = vmatprep.subr.bf16.mxu0 0
  %202 = vmatpush1.bf16.msra.mxu0 %v150
  %203 = vmatprep.subr.bf16.mxu0 0
  %204 = vmatpush1.bf16.msra.mxu0 %v149
  %205 = vmatprep.subr.bf16.mxu0 0
  %206 = vmatpush2.bf16.msra.mxu0 %v164
  %207 = vmatprep.subr.bf16.mxu0 0
  %208 = vmatpush2.bf16.msra.mxu0 %v163
  %209 = vmatprep.subr.bf16.mxu0 0
  %210 = vmatpush2.bf16.msra.mxu0 %v162
  %211 = vmatprep.subr.bf16.mxu0 0
  %212 = vmatpush2.bf16.msra.mxu0 %v161
  %213 = vmatprep.subr.bf16.mxu0 0
  %214 = vmatpush2.bf16.msra.mxu0 %v160
  %215 = vmatprep.subr.bf16.mxu0 0
  %216 = vmatpush2.bf16.msra.mxu0 %v159
  %217 = vmatprep.subr.bf16.mxu0 0
  %218 = vmatpush2.bf16.msra.mxu0 %v158
  %219 = vmatprep.subr.bf16.mxu0 0
  %220 = vmatpush2.bf16.msra.mxu0 %v157
  %221 = vmatprep.mubr.bf16.mxu0 %v73
  %222 = vmatmul.mubr.bf16.gmra.mxu0 %v72
  %v223 = vpop.f32.mrf.mxu0
  %v224 = vadd.f32 %v60, %v223
  %v225 = vpop.f32.mrf.mxu0
  %v226 = vpop.f32.mrf.mxu0
  %v227 = vadd.f32 %v60, %v226
  %v228 = vpop.f32.mrf.mxu0
  %229 = vdwg.mxu0
  %230 = vmatprep.subr.bf16.mxu0 0
  %231 = vmatpush1.bf16.msra.mxu0 0
  %232 = vmatprep.subr.bf16.mxu0 0
  %233 = vmatpush1.bf16.msra.mxu0 0
  %234 = vmatprep.subr.bf16.mxu0 0
  %235 = vmatpush1.bf16.msra.mxu0 0
  %236 = vmatprep.subr.bf16.mxu0 0
  %237 = vmatpush1.bf16.msra.mxu0 0
  %238 = vmatprep.subr.bf16.mxu0 0
  %239 = vmatpush1.bf16.msra.mxu0 0
  %240 = vmatprep.subr.bf16.mxu0 0
  %241 = vmatpush1.bf16.msra.mxu0 0
  %242 = vmatprep.subr.bf16.mxu0 0
  %243 = vmatpush1.bf16.msra.mxu0 %v166
  %244 = vmatprep.subr.bf16.mxu0 0
  %245 = vmatpush1.bf16.msra.mxu0 %v165
  %246 = vmatprep.subr.bf16.mxu0 0
  %247 = vmatpush2.bf16.msra.mxu0 0
  %248 = vmatprep.subr.bf16.mxu0 0
  %249 = vmatpush2.bf16.msra.mxu0 0
  %250 = vmatprep.subr.bf16.mxu0 0
  %251 = vmatpush2.bf16.msra.mxu0 0
  %252 = vmatprep.subr.bf16.mxu0 0
  %253 = vmatpush2.bf16.msra.mxu0 0
  %254 = vmatprep.subr.bf16.mxu0 0
  %255 = vmatpush2.bf16.msra.mxu0 0
  %256 = vmatprep.subr.bf16.mxu0 0
  %257 = vmatpush2.bf16.msra.mxu0 0
  %258 = vmatprep.subr.bf16.mxu0 0
  %259 = vmatpush2.bf16.msra.mxu0 0
  %260 = vmatprep.subr.bf16.mxu0 0
  %261 = vmatpush2.bf16.msra.mxu0 0
  %262 = vmatprep.mubr.bf16.mxu0 0
  %263 = vmatmul.mubr.bf16.gmra.mxu0 %v187
  %v264 = vpop.f32.mrf.mxu0
  %v265 = vadd.f32 %v224, %v264
  %v266 = vpop.f32.mrf.mxu0
  %v267 = vpop.f32.mrf.mxu0
  %v268 = vadd.f32 %v227, %v267
  %v269 = vpop.f32.mrf.mxu0
  %270 = vdwg.mxu0
  %v271 = vmax.f32 %v265, 0.0
  %v272 = vmax.f32 %v268, 0.0
  %v273 = vpack.c.bf16 %v272, %v271
  %v275 = vunpack.c.l.b16 %v273
  %v276 = vunpack.c.h.b16 %v273
  %v277 = vpack.c.b16 %v275, %v275
  %v278 = vpack.c.b16 %v276, %v276
  %281 = vst [vmem:[%s3] sm:$0xf] %v277
  %282 = vst [vmem:[%s3 + $0x4] sm:$0xf] %v278
  // Predicated region
  $region14: #{sparse_model_forward.10} parent=0 // pred_check
    _
  $region15: #{sparse_model_forward.10} parent=0 // pred_check_branch
    %284 = sbr.rel (0) target = $region17
  $region16: #{sparse_model_forward.10} parent=0 // pred_region
    _
  $region17: #{sparse_model_forward.10} parent=0 // pred_fallthru
    _
  // Predicated region
  $region18: #{sparse_model_forward.10} parent=0 // pred_check
    _
  $region19: #{sparse_model_forward.10} parent=0 // pred_check_branch
    %286 = sbr.rel (0) target = $region21
  $region20: #{sparse_model_forward.10} parent=0 // pred_region
    _
  $region21: #{sparse_model_forward.10} parent=0 // pred_fallthru
    _

// kernel: sparse_model_forward.11
$region0: #{sparse_model_forward.11}
  #allocation0 [shape = 'u32[]', space=smem, size = 0x4, offset = 0x4, fixed_abs, tag = 'smem constant byte address 0x4 - core index']
  #allocation1 [shape = 'u32[144,128]{1,0:T(1,128)}', space=vmem, size = 0x12000, scoped, tag = 'internal scratch']
  %s0 = inlined_call_operand.vmem [shape: bf16[16,576], index: 0, kind: input, shape index: {}]
  %s1 = inlined_call_operand.vmem [shape: bf16[576,128], index: 1, kind: input, shape index: {}]
  %s2 = inlined_call_operand.vmem [shape: f32[1,128], index: 2, kind: input, shape index: {}]
  %s3 = inlined_call_operand.vmem [shape: bf16[16,128], index: 3, kind: output, shape index: {}]
  %s4 = sld [smem:[#allocation0]]
  $region22: #{sparse_model_forward.11} parent=0
    _
  %s6 = ssub.s32 1, %s4
  %s7 = scalar_select 0, %s6, %s4
  // Predicated region
  $region2: #{sparse_model_forward.11} parent=0 // pred_check
    _
  $region3: #{sparse_model_forward.11} parent=0 // pred_check_branch
    %9 = sbr.rel (0) target = $region5
  $region4: #{sparse_model_forward.11} parent=0 // pred_region
    _
  $region5: #{sparse_model_forward.11} parent=0 // pred_fallthru
    _
  // Predicated region
  $region6: #{sparse_model_forward.11} parent=0 // pred_check
    _
  $region7: #{sparse_model_forward.11} parent=0 // pred_check_branch
    %11 = sbr.rel (0) target = $region9
  $region8: #{sparse_model_forward.11} parent=0 // pred_region
    _
  $region9: #{sparse_model_forward.11} parent=0 // pred_fallthru
    _
  // Predicated region
  $region10: #{sparse_model_forward.11} parent=0 // pred_check
    _
  $region11: #{sparse_model_forward.11} parent=0 // pred_check_branch
    %13 = sbr.rel (0) target = $region13
  $region12: #{sparse_model_forward.11} parent=0 // pred_region
    _
  $region13: #{sparse_model_forward.11} parent=0 // pred_fallthru
    _
  %v15 = vld [vmem:[%s0] sm:$0xff]
  %v16 = vld [vmem:[%s0 + $0x8] sm:$0xff]
  %v17 = vld [vmem:[%s0 + $0x10] sm:$0xf]
  %v18 = vld [vmem:[%s0 + $0x14] sm:$0xff]
  %v19 = vld [vmem:[%s0 + $0x1c] sm:$0xff]
  %v20 = vld [vmem:[%s0 + $0x24] sm:$0xf]
  %v21 = vld [vmem:[%s1] sm:$0xf]
  %v22 = vld [vmem:[%s1 + $0x4] sm:$0xf]
  %v23 = vld [vmem:[%s1 + $0x8] sm:$0xf]
  %v24 = vld [vmem:[%s1 + $0xc] sm:$0xf]
  %v25 = vld [vmem:[%s1 + $0x10] sm:$0xf]
  %v26 = vld [vmem:[%s1 + $0x14] sm:$0xf]
  %v27 = vld [vmem:[%s1 + $0x18] sm:$0xf]
  %v28 = vld [vmem:[%s1 + $0x1c] sm:$0xf]
  %v29 = vld [vmem:[%s1 + $0x20] sm:$0xf]
  %v30 = vld [vmem:[%s1 + $0x24] sm:$0xf]
  %v31 = vld [vmem:[%s1 + $0x28] sm:$0xf]
  %v32 = vld [vmem:[%s1 + $0x2c] sm:$0xf]
  %v33 = vld [vmem:[%s1 + $0x30] sm:$0xf]
  %v34 = vld [vmem:[%s1 + $0x34] sm:$0xf]
  %v35 = vld [vmem:[%s1 + $0x38] sm:$0xf]
  %v36 = vld [vmem:[%s1 + $0x3c] sm:$0xf]
  %v37 = vld [vmem:[%s1 + $0x40] sm:$0xf]
  %v38 = vld [vmem:[%s1 + $0x44] sm:$0xf]
  %v39 = vld [vmem:[%s1 + $0x48] sm:$0xf]
  %v40 = vld [vmem:[%s1 + $0x4c] sm:$0xf]
  %v41 = vld [vmem:[%s1 + $0x50] sm:$0xf]
  %v42 = vld [vmem:[%s1 + $0x54] sm:$0xf]
  %v43 = vld [vmem:[%s1 + $0x58] sm:$0xf]
  %v44 = vld [vmem:[%s1 + $0x5c] sm:$0xf]
  %v45 = vld [vmem:[%s1 + $0x60] sm:$0xf]
  %v46 = vld [vmem:[%s1 + $0x64] sm:$0xf]
  %v47 = vld [vmem:[%s1 + $0x68] sm:$0xf]
  %v48 = vld [vmem:[%s1 + $0x6c] sm:$0xf]
  %v49 = vld [vmem:[%s1 + $0x70] sm:$0xf]
  %v50 = vld [vmem:[%s1 + $0x74] sm:$0xf]
  %v51 = vld [vmem:[%s1 + $0x78] sm:$0xf]
  %v52 = vld [vmem:[%s1 + $0x7c] sm:$0xf]
  %v53 = vld [vmem:[%s1 + $0x80] sm:$0xf]
  %v54 = vld [vmem:[%s1 + $0x84] sm:$0xf]
  %v55 = vld [vmem:[%s1 + $0x88] sm:$0xf]
  %v56 = vld [vmem:[%s1 + $0x8c] sm:$0xf]
  %v57 = vld [vmem:[%s1 + $0x90] sm:$0xf]
  %v58 = vld [vmem:[%s1 + $0x94] sm:$0xf]
  %v59 = vld [vmem:[%s1 + $0x98] sm:$0xf]
  %v60 = vld [vmem:[%s1 + $0x9c] sm:$0xf]
  %v61 = vld [vmem:[%s1 + $0xa0] sm:$0xf]
  %v62 = vld [vmem:[%s1 + $0xa4] sm:$0xf]
  %v63 = vld [vmem:[%s1 + $0xa8] sm:$0xf]
  %v64 = vld [vmem:[%s1 + $0xac] sm:$0xf]
  %v65 = vld [vmem:[%s1 + $0xb0] sm:$0xf]
  %v66 = vld [vmem:[%s1 + $0xb4] sm:$0xf]
  %v67 = vld [vmem:[%s1 + $0xb8] sm:$0xf]
  %v68 = vld [vmem:[%s1 + $0xbc] sm:$0xf]
  %v69 = vld [vmem:[%s1 + $0xc0] sm:$0xf]
  %v70 = vld [vmem:[%s1 + $0xc4] sm:$0xf]
  %v71 = vld [vmem:[%s1 + $0xc8] sm:$0xf]
  %v72 = vld [vmem:[%s1 + $0xcc] sm:$0xf]
  %v73 = vld [vmem:[%s1 + $0xd0] sm:$0xf]
  %v74 = vld [vmem:[%s1 + $0xd4] sm:$0xf]
  %v75 = vld [vmem:[%s1 + $0xd8] sm:$0xf]
  %v76 = vld [vmem:[%s1 + $0xdc] sm:$0xf]
  %v77 = vld [vmem:[%s1 + $0xe0] sm:$0xf]
  %v78 = vld [vmem:[%s1 + $0xe4] sm:$0xf]
  %v79 = vld [vmem:[%s1 + $0xe8] sm:$0xf]
  %v80 = vld [vmem:[%s1 + $0xec] sm:$0xf]
  %v81 = vld [vmem:[%s1 + $0xf0] sm:$0xf]
  %v82 = vld [vmem:[%s1 + $0xf4] sm:$0xf]
  %v83 = vld [vmem:[%s1 + $0xf8] sm:$0xf]
  %v84 = vld [vmem:[%s1 + $0xfc] sm:$0xf]
  %v85 = vld [vmem:[%s1 + $0x100] sm:$0xf]
  %v86 = vld [vmem:[%s1 + $0x104] sm:$0xf]
  %v87 = vld [vmem:[%s1 + $0x108] sm:$0xf]
  %v88 = vld [vmem:[%s1 + $0x10c] sm:$0xf]
  %v89 = vld [vmem:[%s1 + $0x110] sm:$0xf]
  %v90 = vld [vmem:[%s1 + $0x114] sm:$0xf]
  %v91 = vld [vmem:[%s1 + $0x118] sm:$0xf]
  %v92 = vld [vmem:[%s1 + $0x11c] sm:$0xf]
  %v93 = vld [vmem:[%s2] sm:$0x1]
  %v95 = vlaneseq
  %v96 = vshrl.u32 %v95, 7
  %v97 = vsub.s32 0, %v96
  %v98 = vrot.slane %v93, %v97
  %v106 = vunpack.c.l.b16 %v15
  %v107 = vunpack.c.h.b16 %v15
  %v108 = vunpack.c.l.b16 %v16
  %v109 = vunpack.c.h.b16 %v16
  %v110 = vunpack.c.l.b16 %v17
  %v111 = vunpack.c.l.b16 %v18
  %v112 = vunpack.c.h.b16 %v18
  %v113 = vunpack.c.l.b16 %v19
  %v114 = vunpack.c.h.b16 %v19
  %v115 = vunpack.c.l.b16 %v20
  %v116 = vpack.c.b16 %v111, %v106
  %v117 = vpack.c.b16 %v112, %v107
  %v118 = vpack.c.b16 %v113, %v108
  %v119 = vpack.c.b16 %v114, %v109
  %v120 = vpack.c.b16 %v115, %v110
  %v197 = vunpack.c.l.b16 %v21
  %v198 = vunpack.c.l.b16 %v22
  %v199 = vunpack.c.l.b16 %v23
  %v200 = vunpack.c.l.b16 %v24
  %v201 = vunpack.c.l.b16 %v25
  %v202 = vunpack.c.l.b16 %v26
  %v203 = vunpack.c.l.b16 %v27
  %v204 = vunpack.c.l.b16 %v28
  %v205 = vunpack.c.l.b16 %v29
  %v206 = vunpack.c.l.b16 %v30
  %v207 = vunpack.c.l.b16 %v31
  %v208 = vunpack.c.l.b16 %v32
  %v209 = vunpack.c.l.b16 %v33
  %v210 = vunpack.c.l.b16 %v34
  %v211 = vunpack.c.l.b16 %v35
  %v212 = vunpack.c.l.b16 %v36
  %v213 = vunpack.c.l.b16 %v37
  %v214 = vunpack.c.l.b16 %v38
  %v215 = vunpack.c.l.b16 %v39
  %v216 = vunpack.c.l.b16 %v40
  %v217 = vunpack.c.l.b16 %v41
  %v218 = vunpack.c.l.b16 %v42
  %v219 = vunpack.c.l.b16 %v43
  %v220 = vunpack.c.l.b16 %v44
  %v221 = vunpack.c.l.b16 %v45
  %v222 = vunpack.c.l.b16 %v46
  %v223 = vunpack.c.l.b16 %v47
  %v224 = vunpack.c.l.b16 %v48
  %v225 = vunpack.c.l.b16 %v49
  %v226 = vunpack.c.l.b16 %v50
  %v227 = vunpack.c.l.b16 %v51
  %v228 = vunpack.c.l.b16 %v52
  %v229 = vunpack.c.l.b16 %v53
  %v230 = vunpack.c.l.b16 %v54
  %v231 = vunpack.c.l.b16 %v55
  %v232 = vunpack.c.l.b16 %v56
  %v233 = vunpack.c.l.b16 %v57
  %v234 = vunpack.c.l.b16 %v58
  %v235 = vunpack.c.l.b16 %v59
  %v236 = vunpack.c.l.b16 %v60
  %v237 = vunpack.c.l.b16 %v61
  %v238 = vunpack.c.l.b16 %v62
  %v239 = vunpack.c.l.b16 %v63
  %v240 = vunpack.c.l.b16 %v64
  %v241 = vunpack.c.l.b16 %v65
  %v242 = vunpack.c.l.b16 %v66
  %v243 = vunpack.c.l.b16 %v67
  %v244 = vunpack.c.l.b16 %v68
  %v245 = vunpack.c.l.b16 %v69
  %v246 = vunpack.c.l.b16 %v70
  %v247 = vunpack.c.l.b16 %v71
  %v248 = vunpack.c.l.b16 %v72
  %v249 = vunpack.c.l.b16 %v73
  %v250 = vunpack.c.l.b16 %v74
  %v251 = vunpack.c.l.b16 %v75
  %v252 = vunpack.c.l.b16 %v76
  %v253 = vunpack.c.l.b16 %v77
  %v254 = vunpack.c.l.b16 %v78
  %v255 = vunpack.c.l.b16 %v79
  %v256 = vunpack.c.l.b16 %v80
  %v257 = vunpack.c.l.b16 %v81
  %v258 = vunpack.c.l.b16 %v82
  %v259 = vunpack.c.l.b16 %v83
  %v260 = vunpack.c.l.b16 %v84
  %v261 = vunpack.c.l.b16 %v85
  %v262 = vunpack.c.l.b16 %v86
  %v263 = vunpack.c.l.b16 %v87
  %v264 = vunpack.c.l.b16 %v88
  %v265 = vunpack.c.l.b16 %v89
  %v266 = vunpack.c.l.b16 %v90
  %v267 = vunpack.c.l.b16 %v91
  %v268 = vunpack.c.l.b16 %v92
  %v269 = vpack.c.b16 %v198, %v197
  %v270 = vpack.c.b16 %v200, %v199
  %v271 = vpack.c.b16 %v202, %v201
  %v272 = vpack.c.b16 %v204, %v203
  %v273 = vpack.c.b16 %v206, %v205
  %v274 = vpack.c.b16 %v208, %v207
  %v275 = vpack.c.b16 %v210, %v209
  %v276 = vpack.c.b16 %v212, %v211
  %v277 = vpack.c.b16 %v214, %v213
  %v278 = vpack.c.b16 %v216, %v215
  %v279 = vpack.c.b16 %v218, %v217
  %v280 = vpack.c.b16 %v220, %v219
  %v281 = vpack.c.b16 %v222, %v221
  %v282 = vpack.c.b16 %v224, %v223
  %v283 = vpack.c.b16 %v226, %v225
  %v284 = vpack.c.b16 %v228, %v227
  %v285 = vpack.c.b16 %v230, %v229
  %v286 = vpack.c.b16 %v232, %v231
  %v287 = vpack.c.b16 %v234, %v233
  %v288 = vpack.c.b16 %v236, %v235
  %v289 = vpack.c.b16 %v238, %v237
  %v290 = vpack.c.b16 %v240, %v239
  %v291 = vpack.c.b16 %v242, %v241
  %v292 = vpack.c.b16 %v244, %v243
  %v293 = vpack.c.b16 %v246, %v245
  %v294 = vpack.c.b16 %v248, %v247
  %v295 = vpack.c.b16 %v250, %v249
  %v296 = vpack.c.b16 %v252, %v251
  %v297 = vpack.c.b16 %v254, %v253
  %v298 = vpack.c.b16 %v256, %v255
  %v299 = vpack.c.b16 %v258, %v257
  %v300 = vpack.c.b16 %v260, %v259
  %v301 = vpack.c.b16 %v262, %v261
  %v302 = vpack.c.b16 %v264, %v263
  %v303 = vpack.c.b16 %v266, %v265
  %v304 = vpack.c.b16 %v268, %v267
  %vm341 = vcmask 523264
  %v343 = vsel %vm341, %v120, 0
  %345 = vmatprep.subr.bf16.mxu0 0
  %346 = vmatpush1.bf16.msra.mxu0 %v276
  %347 = vmatprep.subr.bf16.mxu0 0
  %348 = vmatpush1.bf16.msra.mxu0 %v275
  %349 = vmatprep.subr.bf16.mxu0 0
  %350 = vmatpush1.bf16.msra.mxu0 %v274
  %351 = vmatprep.subr.bf16.mxu0 0
  %352 = vmatpush1.bf16.msra.mxu0 %v273
  %353 = vmatprep.subr.bf16.mxu0 0
  %354 = vmatpush1.bf16.msra.mxu0 %v272
  %355 = vmatprep.subr.bf16.mxu0 0
  %356 = vmatpush1.bf16.msra.mxu0 %v271
  %357 = vmatprep.subr.bf16.mxu0 0
  %358 = vmatpush1.bf16.msra.mxu0 %v270
  %359 = vmatprep.subr.bf16.mxu0 0
  %360 = vmatpush1.bf16.msra.mxu0 %v269
  %361 = vmatprep.subr.bf16.mxu0 0
  %362 = vmatpush2.bf16.msra.mxu0 %v284
  %363 = vmatprep.subr.bf16.mxu0 0
  %364 = vmatpush2.bf16.msra.mxu0 %v283
  %365 = vmatprep.subr.bf16.mxu0 0
  %366 = vmatpush2.bf16.msra.mxu0 %v282
  %367 = vmatprep.subr.bf16.mxu0 0
  %368 = vmatpush2.bf16.msra.mxu0 %v281
  %369 = vmatprep.subr.bf16.mxu0 0
  %370 = vmatpush2.bf16.msra.mxu0 %v280
  %371 = vmatprep.subr.bf16.mxu0 0
  %372 = vmatpush2.bf16.msra.mxu0 %v279
  %373 = vmatprep.subr.bf16.mxu0 0
  %374 = vmatpush2.bf16.msra.mxu0 %v278
  %375 = vmatprep.subr.bf16.mxu0 0
  %376 = vmatpush2.bf16.msra.mxu0 %v277
  %377 = vmatprep.mubr.bf16.mxu0 %v117
  %378 = vmatmul.mubr.bf16.gmra.mxu0 %v116
  %v379 = vpop.f32.mrf.mxu0
  %v380 = vadd.f32 %v98, %v379
  %v381 = vpop.f32.mrf.mxu0
  %v382 = vpop.f32.mrf.mxu0
  %v383 = vadd.f32 %v98, %v382
  %v384 = vpop.f32.mrf.mxu0
  %385 = vdwg.mxu0
  %386 = vmatprep.subr.bf16.mxu0 0
  %387 = vmatpush1.bf16.msra.mxu0 %v292
  %388 = vmatprep.subr.bf16.mxu0 0
  %389 = vmatpush1.bf16.msra.mxu0 %v291
  %390 = vmatprep.subr.bf16.mxu0 0
  %391 = vmatpush1.bf16.msra.mxu0 %v290
  %392 = vmatprep.subr.bf16.mxu0 0
  %393 = vmatpush1.bf16.msra.mxu0 %v289
  %394 = vmatprep.subr.bf16.mxu0 0
  %395 = vmatpush1.bf16.msra.mxu0 %v288
  %396 = vmatprep.subr.bf16.mxu0 0
  %397 = vmatpush1.bf16.msra.mxu0 %v287
  %398 = vmatprep.subr.bf16.mxu0 0
  %399 = vmatpush1.bf16.msra.mxu0 %v286
  %400 = vmatprep.subr.bf16.mxu0 0
  %401 = vmatpush1.bf16.msra.mxu0 %v285
  %402 = vmatprep.subr.bf16.mxu0 0
  %403 = vmatpush2.bf16.msra.mxu0 %v300
  %404 = vmatprep.subr.bf16.mxu0 0
  %405 = vmatpush2.bf16.msra.mxu0 %v299
  %406 = vmatprep.subr.bf16.mxu0 0
  %407 = vmatpush2.bf16.msra.mxu0 %v298
  %408 = vmatprep.subr.bf16.mxu0 0
  %409 = vmatpush2.bf16.msra.mxu0 %v297
  %410 = vmatprep.subr.bf16.mxu0 0
  %411 = vmatpush2.bf16.msra.mxu0 %v296
  %412 = vmatprep.subr.bf16.mxu0 0
  %413 = vmatpush2.bf16.msra.mxu0 %v295
  %414 = vmatprep.subr.bf16.mxu0 0
  %415 = vmatpush2.bf16.msra.mxu0 %v294
  %416 = vmatprep.subr.bf16.mxu0 0
  %417 = vmatpush2.bf16.msra.mxu0 %v293
  %418 = vmatprep.mubr.bf16.mxu0 %v119
  %419 = vmatmul.mubr.bf16.gmra.mxu0 %v118
  %v420 = vpop.f32.mrf.mxu0
  %v421 = vadd.f32 %v380, %v420
  %v422 = vpop.f32.mrf.mxu0
  %v423 = vpop.f32.mrf.mxu0
  %v424 = vadd.f32 %v383, %v423
  %v425 = vpop.f32.mrf.mxu0
  %426 = vdwg.mxu0
  %427 = vmatprep.subr.bf16.mxu0 0
  %428 = vmatpush1.bf16.msra.mxu0 0
  %429 = vmatprep.subr.bf16.mxu0 0
  %430 = vmatpush1.bf16.msra.mxu0 0
  %431 = vmatprep.subr.bf16.mxu0 0
  %432 = vmatpush1.bf16.msra.mxu0 0
  %433 = vmatprep.subr.bf16.mxu0 0
  %434 = vmatpush1.bf16.msra.mxu0 0
  %435 = vmatprep.subr.bf16.mxu0 0
  %436 = vmatpush1.bf16.msra.mxu0 %v304
  %437 = vmatprep.subr.bf16.mxu0 0
  %438 = vmatpush1.bf16.msra.mxu0 %v303
  %439 = vmatprep.subr.bf16.mxu0 0
  %440 = vmatpush1.bf16.msra.mxu0 %v302
  %441 = vmatprep.subr.bf16.mxu0 0
  %442 = vmatpush1.bf16.msra.mxu0 %v301
  %443 = vmatprep.subr.bf16.mxu0 0
  %444 = vmatpush2.bf16.msra.mxu0 0
  %445 = vmatprep.subr.bf16.mxu0 0
  %446 = vmatpush2.bf16.msra.mxu0 0
  %447 = vmatprep.subr.bf16.mxu0 0
  %448 = vmatpush2.bf16.msra.mxu0 0
  %449 = vmatprep.subr.bf16.mxu0 0
  %450 = vmatpush2.bf16.msra.mxu0 0
  %451 = vmatprep.subr.bf16.mxu0 0
  %452 = vmatpush2.bf16.msra.mxu0 0
  %453 = vmatprep.subr.bf16.mxu0 0
  %454 = vmatpush2.bf16.msra.mxu0 0
  %455 = vmatprep.subr.bf16.mxu0 0
  %456 = vmatpush2.bf16.msra.mxu0 0
  %457 = vmatprep.subr.bf16.mxu0 0
  %458 = vmatpush2.bf16.msra.mxu0 0
  %459 = vmatprep.mubr.bf16.mxu0 0
  %460 = vmatmul.mubr.bf16.gmra.mxu0 %v343
  %v461 = vpop.f32.mrf.mxu0
  %v462 = vadd.f32 %v421, %v461
  %v463 = vpop.f32.mrf.mxu0
  %v464 = vpop.f32.mrf.mxu0
  %v465 = vadd.f32 %v424, %v464
  %v466 = vpop.f32.mrf.mxu0
  %467 = vdwg.mxu0
  %v468 = vmax.f32 %v462, 0.0
  %v469 = vmax.f32 %v465, 0.0
  %v470 = vpack.c.bf16 %v469, %v468
  %v472 = vunpack.c.l.b16 %v470
  %v473 = vunpack.c.h.b16 %v470
  %v474 = vpack.c.b16 %v472, %v472
  %v475 = vpack.c.b16 %v473, %v473
  %478 = vst [vmem:[%s3] sm:$0xf] %v474
  %479 = vst [vmem:[%s3 + $0x4] sm:$0xf] %v475
  // Predicated region
  $region14: #{sparse_model_forward.11} parent=0 // pred_check
    _
  $region15: #{sparse_model_forward.11} parent=0 // pred_check_branch
    %481 = sbr.rel (0) target = $region17
  $region16: #{sparse_model_forward.11} parent=0 // pred_region
    _
  $region17: #{sparse_model_forward.11} parent=0 // pred_fallthru
    _
  // Predicated region
  $region18: #{sparse_model_forward.11} parent=0 // pred_check
    _
  $region19: #{sparse_model_forward.11} parent=0 // pred_check_branch
    %483 = sbr.rel (0) target = $region21
  $region20: #{sparse_model_forward.11} parent=0 // pred_region
    _
  $region21: #{sparse_model_forward.11} parent=0 // pred_fallthru
    _

// kernel: sparse_model_forward.12
$region0: #{sparse_model_forward.12}
  #allocation0 [shape = 'u32[]', space=smem, size = 0x4, offset = 0x4, fixed_abs, tag = 'smem constant byte address 0x4 - core index']
  #allocation1 [shape = 'u32[144,128]{1,0:T(1,128)}', space=vmem, size = 0x12000, scoped, tag = 'internal scratch']
  %s0 = inlined_call_operand.vmem [shape: bf16[32,288], index: 0, kind: input, shape index: {}]
  %s1 = inlined_call_operand.vmem [shape: bf16[32,288], index: 1, kind: input, shape index: {}]
  %s2 = inlined_call_operand.vmem [shape: bf16[288,128], index: 2, kind: input, shape index: {}]
  %s3 = inlined_call_operand.vmem [shape: bf16[288,128], index: 3, kind: input, shape index: {}]
  %s4 = inlined_call_operand.vmem [shape: f32[1,128], index: 4, kind: input, shape index: {}]
  %s5 = inlined_call_operand.vmem [shape: bf16[32,128], index: 5, kind: output, shape index: {}]
  %s6 = sld [smem:[#allocation0]]
  $region30: #{sparse_model_forward.12} parent=0
    _
  %s8 = ssub.s32 1, %s6
  %s9 = scalar_select 0, %s8, %s6
  // Predicated region
  $region2: #{sparse_model_forward.12} parent=0 // pred_check
    _
  $region3: #{sparse_model_forward.12} parent=0 // pred_check_branch
    %11 = sbr.rel (0) target = $region5
  $region4: #{sparse_model_forward.12} parent=0 // pred_region
    _
  $region5: #{sparse_model_forward.12} parent=0 // pred_fallthru
    _
  // Predicated region
  $region6: #{sparse_model_forward.12} parent=0 // pred_check
    _
  $region7: #{sparse_model_forward.12} parent=0 // pred_check_branch
    %13 = sbr.rel (0) target = $region9
  $region8: #{sparse_model_forward.12} parent=0 // pred_region
    _
  $region9: #{sparse_model_forward.12} parent=0 // pred_fallthru
    _
  // Predicated region
  $region10: #{sparse_model_forward.12} parent=0 // pred_check
    _
  $region11: #{sparse_model_forward.12} parent=0 // pred_check_branch
    %15 = sbr.rel (0) target = $region13
  $region12: #{sparse_model_forward.12} parent=0 // pred_region
    _
  $region13: #{sparse_model_forward.12} parent=0 // pred_fallthru
    _
  // Predicated region
  $region14: #{sparse_model_forward.12} parent=0 // pred_check
    _
  $region15: #{sparse_model_forward.12} parent=0 // pred_check_branch
    %17 = sbr.rel (0) target = $region17
  $region16: #{sparse_model_forward.12} parent=0 // pred_region
    _
  $region17: #{sparse_model_forward.12} parent=0 // pred_fallthru
    _
  // Predicated region
  $region18: #{sparse_model_forward.12} parent=0 // pred_check
    _
  $region19: #{sparse_model_forward.12} parent=0 // pred_check_branch
    %19 = sbr.rel (0) target = $region21
  $region20: #{sparse_model_forward.12} parent=0 // pred_region
    _
  $region21: #{sparse_model_forward.12} parent=0 // pred_fallthru
    _
  %v21 = vld [vmem:[%s0] sm:$0xff]
  %v22 = vld [vmem:[%s0 + $0x8] sm:$0xf]
  %v23 = vld [vmem:[%s0 + $0xc] sm:$0xff]
  %v24 = vld [vmem:[%s0 + $0x14] sm:$0xf]
  %v25 = vld [vmem:[%s0 + $0x18] sm:$0xff]
  %v26 = vld [vmem:[%s0 + $0x20] sm:$0xf]
  %v27 = vld [vmem:[%s0 + $0x24] sm:$0xff]
  %v28 = vld [vmem:[%s0 + $0x2c] sm:$0xf]
  %v29 = vld [vmem:[%s2] sm:$0xf]
  %v30 = vld [vmem:[%s2 + $0x4] sm:$0xf]
  %v31 = vld [vmem:[%s2 + $0x8] sm:$0xf]
  %v32 = vld [vmem:[%s2 + $0xc] sm:$0xf]
  %v33 = vld [vmem:[%s2 + $0x10] sm:$0xf]
  %v34 = vld [vmem:[%s2 + $0x14] sm:$0xf]
  %v35 = vld [vmem:[%s2 + $0x18] sm:$0xf]
  %v36 = vld [vmem:[%s2 + $0x1c] sm:$0xf]
  %v37 = vld [vmem:[%s2 + $0x20] sm:$0xf]
  %v38 = vld [vmem:[%s2 + $0x24] sm:$0xf]
  %v39 = vld [vmem:[%s2 + $0x28] sm:$0xf]
  %v40 = vld [vmem:[%s2 + $0x2c] sm:$0xf]
  %v41 = vld [vmem:[%s2 + $0x30] sm:$0xf]
  %v42 = vld [vmem:[%s2 + $0x34] sm:$0xf]
  %v43 = vld [vmem:[%s2 + $0x38] sm:$0xf]
  %v44 = vld [vmem:[%s2 + $0x3c] sm:$0xf]
  %v45 = vld [vmem:[%s2 + $0x40] sm:$0xf]
  %v46 = vld [vmem:[%s2 + $0x44] sm:$0xf]
  %v47 = vld [vmem:[%s2 + $0x48] sm:$0xf]
  %v48 = vld [vmem:[%s2 + $0x4c] sm:$0xf]
  %v49 = vld [vmem:[%s2 + $0x50] sm:$0xf]
  %v50 = vld [vmem:[%s2 + $0x54] sm:$0xf]
  %v51 = vld [vmem:[%s2 + $0x58] sm:$0xf]
  %v52 = vld [vmem:[%s2 + $0x5c] sm:$0xf]
  %v53 = vld [vmem:[%s2 + $0x60] sm:$0xf]
  %v54 = vld [vmem:[%s2 + $0x64] sm:$0xf]
  %v55 = vld [vmem:[%s2 + $0x68] sm:$0xf]
  %v56 = vld [vmem:[%s2 + $0x6c] sm:$0xf]
  %v57 = vld [vmem:[%s2 + $0x70] sm:$0xf]
  %v58 = vld [vmem:[%s2 + $0x74] sm:$0xf]
  %v59 = vld [vmem:[%s2 + $0x78] sm:$0xf]
  %v60 = vld [vmem:[%s2 + $0x7c] sm:$0xf]
  %v61 = vld [vmem:[%s2 + $0x80] sm:$0xf]
  %v62 = vld [vmem:[%s2 + $0x84] sm:$0xf]
  %v63 = vld [vmem:[%s2 + $0x88] sm:$0xf]
  %v64 = vld [vmem:[%s2 + $0x8c] sm:$0xf]
  %v65 = vld [vmem:[%s1] sm:$0xff]
  %v66 = vld [vmem:[%s1 + $0x8] sm:$0xf]
  %v67 = vld [vmem:[%s1 + $0xc] sm:$0xff]
  %v68 = vld [vmem:[%s1 + $0x14] sm:$0xf]
  %v69 = vld [vmem:[%s1 + $0x18] sm:$0xff]
  %v70 = vld [vmem:[%s1 + $0x20] sm:$0xf]
  %v71 = vld [vmem:[%s1 + $0x24] sm:$0xff]
  %v72 = vld [vmem:[%s1 + $0x2c] sm:$0xf]
  %v73 = vld [vmem:[%s3] sm:$0xf]
  %v74 = vld [vmem:[%s3 + $0x4] sm:$0xf]
  %v75 = vld [vmem:[%s3 + $0x8] sm:$0xf]
  %v76 = vld [vmem:[%s3 + $0xc] sm:$0xf]
  %v77 = vld [vmem:[%s3 + $0x10] sm:$0xf]
  %v78 = vld [vmem:[%s3 + $0x14] sm:$0xf]
  %v79 = vld [vmem:[%s3 + $0x18] sm:$0xf]
  %v80 = vld [vmem:[%s3 + $0x1c] sm:$0xf]
  %v81 = vld [vmem:[%s3 + $0x20] sm:$0xf]
  %v82 = vld [vmem:[%s3 + $0x24] sm:$0xf]
  %v83 = vld [vmem:[%s3 + $0x28] sm:$0xf]
  %v84 = vld [vmem:[%s3 + $0x2c] sm:$0xf]
  %v85 = vld [vmem:[%s3 + $0x30] sm:$0xf]
  %v86 = vld [vmem:[%s3 + $0x34] sm:$0xf]
  %v87 = vld [vmem:[%s3 + $0x38] sm:$0xf]
  %v88 = vld [vmem:[%s3 + $0x3c] sm:$0xf]
  %v89 = vld [vmem:[%s3 + $0x40] sm:$0xf]
  %v90 = vld [vmem:[%s3 + $0x44] sm:$0xf]
  %v91 = vld [vmem:[%s3 + $0x48] sm:$0xf]
  %v92 = vld [vmem:[%s3 + $0x4c] sm:$0xf]
  %v93 = vld [vmem:[%s3 + $0x50] sm:$0xf]
  %v94 = vld [vmem:[%s3 + $0x54] sm:$0xf]
  %v95 = vld [vmem:[%s3 + $0x58] sm:$0xf]
  %v96 = vld [vmem:[%s3 + $0x5c] sm:$0xf]
  %v97 = vld [vmem:[%s3 + $0x60] sm:$0xf]
  %v98 = vld [vmem:[%s3 + $0x64] sm:$0xf]
  %v99 = vld [vmem:[%s3 + $0x68] sm:$0xf]
  %v100 = vld [vmem:[%s3 + $0x6c] sm:$0xf]
  %v101 = vld [vmem:[%s3 + $0x70] sm:$0xf]
  %v102 = vld [vmem:[%s3 + $0x74] sm:$0xf]
  %v103 = vld [vmem:[%s3 + $0x78] sm:$0xf]
  %v104 = vld [vmem:[%s3 + $0x7c] sm:$0xf]
  %v105 = vld [vmem:[%s3 + $0x80] sm:$0xf]
  %v106 = vld [vmem:[%s3 + $0x84] sm:$0xf]
  %v107 = vld [vmem:[%s3 + $0x88] sm:$0xf]
  %v108 = vld [vmem:[%s3 + $0x8c] sm:$0xf]
  %v117 = vunpack.c.l.b16 %v65
  %v118 = vunpack.c.h.b16 %v65
  %v119 = vunpack.c.l.b16 %v66
  %v120 = vunpack.c.l.b16 %v67
  %v121 = vunpack.c.h.b16 %v67
  %v122 = vunpack.c.l.b16 %v68
  %v123 = vunpack.c.l.b16 %v69
  %v124 = vunpack.c.h.b16 %v69
  %v125 = vunpack.c.l.b16 %v70
  %v126 = vunpack.c.l.b16 %v71
  %v127 = vunpack.c.h.b16 %v71
  %v128 = vunpack.c.l.b16 %v72
  %v129 = vpack.c.b16 %v120, %v117
  %v130 = vpack.c.b16 %v121, %v118
  %v131 = vpack.c.b16 %v122, %v119
  %v132 = vpack.c.b16 %v126, %v123
  %v133 = vpack.c.b16 %v127, %v124
  %v134 = vpack.c.b16 %v128, %v125
  %v175 = vunpack.c.l.b16 %v73
  %v176 = vunpack.c.l.b16 %v74
  %v177 = vunpack.c.l.b16 %v75
  %v178 = vunpack.c.l.b16 %v76
  %v179 = vunpack.c.l.b16 %v77
  %v180 = vunpack.c.l.b16 %v78
  %v181 = vunpack.c.l.b16 %v79
  %v182 = vunpack.c.l.b16 %v80
  %v183 = vunpack.c.l.b16 %v81
  %v184 = vunpack.c.l.b16 %v82
  %v185 = vunpack.c.l.b16 %v83
  %v186 = vunpack.c.l.b16 %v84
  %v187 = vunpack.c.l.b16 %v85
  %v188 = vunpack.c.l.b16 %v86
  %v189 = vunpack.c.l.b16 %v87
  %v190 = vunpack.c.l.b16 %v88
  %v191 = vunpack.c.l.b16 %v89
  %v192 = vunpack.c.l.b16 %v90
  %v193 = vunpack.c.l.b16 %v91
  %v194 = vunpack.c.l.b16 %v92
  %v195 = vunpack.c.l.b16 %v93
  %v196 = vunpack.c.l.b16 %v94
  %v197 = vunpack.c.l.b16 %v95
  %v198 = vunpack.c.l.b16 %v96
  %v199 = vunpack.c.l.b16 %v97
  %v200 = vunpack.c.l.b16 %v98
  %v201 = vunpack.c.l.b16 %v99
  %v202 = vunpack.c.l.b16 %v100
  %v203 = vunpack.c.l.b16 %v101
  %v204 = vunpack.c.l.b16 %v102
  %v205 = vunpack.c.l.b16 %v103
  %v206 = vunpack.c.l.b16 %v104
  %v207 = vunpack.c.l.b16 %v105
  %v208 = vunpack.c.l.b16 %v106
  %v209 = vunpack.c.l.b16 %v107
  %v210 = vunpack.c.l.b16 %v108
  %v211 = vpack.c.b16 %v176, %v175
  %v212 = vpack.c.b16 %v178, %v177
  %v213 = vpack.c.b16 %v180, %v179
  %v214 = vpack.c.b16 %v182, %v181
  %v215 = vpack.c.b16 %v184, %v183
  %v216 = vpack.c.b16 %v186, %v185
  %v217 = vpack.c.b16 %v188, %v187
  %v218 = vpack.c.b16 %v190, %v189
  %v219 = vpack.c.b16 %v192, %v191
  %v220 = vpack.c.b16 %v194, %v193
  %v221 = vpack.c.b16 %v196, %v195
  %v222 = vpack.c.b16 %v198, %v197
  %v223 = vpack.c.b16 %v200, %v199
  %v224 = vpack.c.b16 %v202, %v201
  %v225 = vpack.c.b16 %v204, %v203
  %v226 = vpack.c.b16 %v206, %v205
  %v227 = vpack.c.b16 %v208, %v207
  %v228 = vpack.c.b16 %v210, %v209
  %vm247 = vcmask 261120
  %v249 = vsel %vm247, %v131, 0
  %v252 = vsel %vm247, %v134, 0
  %254 = vmatprep.subr.bf16.mxu0 0
  %255 = vmatpush1.bf16.msra.mxu0 %v218
  %256 = vmatprep.subr.bf16.mxu0 0
  %257 = vmatpush1.bf16.msra.mxu0 %v217
  %258 = vmatprep.subr.bf16.mxu0 0
  %259 = vmatpush1.bf16.msra.mxu0 %v216
  %260 = vmatprep.subr.bf16.mxu0 0
  %261 = vmatpush1.bf16.msra.mxu0 %v215
  %262 = vmatprep.subr.bf16.mxu0 0
  %263 = vmatpush1.bf16.msra.mxu0 %v214
  %264 = vmatprep.subr.bf16.mxu0 0
  %265 = vmatpush1.bf16.msra.mxu0 %v213
  %266 = vmatprep.subr.bf16.mxu0 0
  %267 = vmatpush1.bf16.msra.mxu0 %v212
  %268 = vmatprep.subr.bf16.mxu0 0
  %269 = vmatpush1.bf16.msra.mxu0 %v211
  %270 = vmatprep.subr.bf16.mxu0 0
  %271 = vmatpush2.bf16.msra.mxu0 %v226
  %272 = vmatprep.subr.bf16.mxu0 0
  %273 = vmatpush2.bf16.msra.mxu0 %v225
  %274 = vmatprep.subr.bf16.mxu0 0
  %275 = vmatpush2.bf16.msra.mxu0 %v224
  %276 = vmatprep.subr.bf16.mxu0 0
  %277 = vmatpush2.bf16.msra.mxu0 %v223
  %278 = vmatprep.subr.bf16.mxu0 0
  %279 = vmatpush2.bf16.msra.mxu0 %v222
  %280 = vmatprep.subr.bf16.mxu0 0
  %281 = vmatpush2.bf16.msra.mxu0 %v221
  %282 = vmatprep.subr.bf16.mxu0 0
  %283 = vmatpush2.bf16.msra.mxu0 %v220
  %284 = vmatprep.subr.bf16.mxu0 0
  %285 = vmatpush2.bf16.msra.mxu0 %v219
  %286 = vmatprep.mubr.bf16.mxu0 %v130
  %287 = vmatmul.mubr.bf16.gmra.mxu0 %v129
  %v288 = vpop.f32.mrf.mxu0
  %v289 = vadd.f32 0.0, %v288
  %v290 = vpop.f32.mrf.mxu0
  %v291 = vpop.f32.mrf.mxu0
  %v292 = vadd.f32 0.0, %v291
  %v293 = vpop.f32.mrf.mxu0
  %294 = vmatprep.mubr.bf16.mxu0 %v133
  %295 = vmatmul.mubr.bf16.gmra.mxu0 %v132
  %v296 = vpop.f32.mrf.mxu0
  %v297 = vadd.f32 0.0, %v296
  %v298 = vpop.f32.mrf.mxu0
  %v299 = vpop.f32.mrf.mxu0
  %v300 = vadd.f32 0.0, %v299
  %v301 = vpop.f32.mrf.mxu0
  %302 = vdwg.mxu0
  %303 = vmatprep.subr.bf16.mxu0 0
  %304 = vmatpush1.bf16.msra.mxu0 0
  %305 = vmatprep.subr.bf16.mxu0 0
  %306 = vmatpush1.bf16.msra.mxu0 0
  %307 = vmatprep.subr.bf16.mxu0 0
  %308 = vmatpush1.bf16.msra.mxu0 0
  %309 = vmatprep.subr.bf16.mxu0 0
  %310 = vmatpush1.bf16.msra.mxu0 0
  %311 = vmatprep.subr.bf16.mxu0 0
  %312 = vmatpush1.bf16.msra.mxu0 0
  %313 = vmatprep.subr.bf16.mxu0 0
  %314 = vmatpush1.bf16.msra.mxu0 0
  %315 = vmatprep.subr.bf16.mxu0 0
  %316 = vmatpush1.bf16.msra.mxu0 %v228
  %317 = vmatprep.subr.bf16.mxu0 0
  %318 = vmatpush1.bf16.msra.mxu0 %v227
  %319 = vmatprep.subr.bf16.mxu0 0
  %320 = vmatpush2.bf16.msra.mxu0 0
  %321 = vmatprep.subr.bf16.mxu0 0
  %322 = vmatpush2.bf16.msra.mxu0 0
  %323 = vmatprep.subr.bf16.mxu0 0
  %324 = vmatpush2.bf16.msra.mxu0 0
  %325 = vmatprep.subr.bf16.mxu0 0
  %326 = vmatpush2.bf16.msra.mxu0 0
  %327 = vmatprep.subr.bf16.mxu0 0
  %328 = vmatpush2.bf16.msra.mxu0 0
  %329 = vmatprep.subr.bf16.mxu0 0
  %330 = vmatpush2.bf16.msra.mxu0 0
  %331 = vmatprep.subr.bf16.mxu0 0
  %332 = vmatpush2.bf16.msra.mxu0 0
  %333 = vmatprep.subr.bf16.mxu0 0
  %334 = vmatpush2.bf16.msra.mxu0 0
  %335 = vmatprep.mubr.bf16.mxu0 0
  %336 = vmatmul.mubr.bf16.gmra.mxu0 %v249
  %v337 = vpop.f32.mrf.mxu0
  %v338 = vadd.f32 %v289, %v337
  %v339 = vpop.f32.mrf.mxu0
  %v340 = vpop.f32.mrf.mxu0
  %v341 = vadd.f32 %v292, %v340
  %v342 = vpop.f32.mrf.mxu0
  %343 = vmatprep.mubr.bf16.mxu0 0
  %344 = vmatmul.mubr.bf16.gmra.mxu0 %v252
  %v345 = vpop.f32.mrf.mxu0
  %v346 = vadd.f32 %v297, %v345
  %v347 = vpop.f32.mrf.mxu0
  %v348 = vpop.f32.mrf.mxu0
  %v349 = vadd.f32 %v300, %v348
  %v350 = vpop.f32.mrf.mxu0
  %351 = vdwg.mxu0
  %v360 = vunpack.c.l.b16 %v21
  %v361 = vunpack.c.h.b16 %v21
  %v362 = vunpack.c.l.b16 %v22
  %v363 = vunpack.c.l.b16 %v23
  %v364 = vunpack.c.h.b16 %v23
  %v365 = vunpack.c.l.b16 %v24
  %v366 = vunpack.c.l.b16 %v25
  %v367 = vunpack.c.h.b16 %v25
  %v368 = vunpack.c.l.b16 %v26
  %v369 = vunpack.c.l.b16 %v27
  %v370 = vunpack.c.h.b16 %v27
  %v371 = vunpack.c.l.b16 %v28
  %v372 = vpack.c.b16 %v363, %v360
  %v373 = vpack.c.b16 %v364, %v361
  %v374 = vpack.c.b16 %v365, %v362
  %v375 = vpack.c.b16 %v369, %v366
  %v376 = vpack.c.b16 %v370, %v367
  %v377 = vpack.c.b16 %v371, %v368
  %v418 = vunpack.c.l.b16 %v29
  %v419 = vunpack.c.l.b16 %v30
  %v420 = vunpack.c.l.b16 %v31
  %v421 = vunpack.c.l.b16 %v32
  %v422 = vunpack.c.l.b16 %v33
  %v423 = vunpack.c.l.b16 %v34
  %v424 = vunpack.c.l.b16 %v35
  %v425 = vunpack.c.l.b16 %v36
  %v426 = vunpack.c.l.b16 %v37
  %v427 = vunpack.c.l.b16 %v38
  %v428 = vunpack.c.l.b16 %v39
  %v429 = vunpack.c.l.b16 %v40
  %v430 = vunpack.c.l.b16 %v41
  %v431 = vunpack.c.l.b16 %v42
  %v432 = vunpack.c.l.b16 %v43
  %v433 = vunpack.c.l.b16 %v44
  %v434 = vunpack.c.l.b16 %v45
  %v435 = vunpack.c.l.b16 %v46
  %v436 = vunpack.c.l.b16 %v47
  %v437 = vunpack.c.l.b16 %v48
  %v438 = vunpack.c.l.b16 %v49
  %v439 = vunpack.c.l.b16 %v50
  %v440 = vunpack.c.l.b16 %v51
  %v441 = vunpack.c.l.b16 %v52
  %v442 = vunpack.c.l.b16 %v53
  %v443 = vunpack.c.l.b16 %v54
  %v444 = vunpack.c.l.b16 %v55
  %v445 = vunpack.c.l.b16 %v56
  %v446 = vunpack.c.l.b16 %v57
  %v447 = vunpack.c.l.b16 %v58
  %v448 = vunpack.c.l.b16 %v59
  %v449 = vunpack.c.l.b16 %v60
  %v450 = vunpack.c.l.b16 %v61
  %v451 = vunpack.c.l.b16 %v62
  %v452 = vunpack.c.l.b16 %v63
  %v453 = vunpack.c.l.b16 %v64
  %v454 = vpack.c.b16 %v419, %v418
  %v455 = vpack.c.b16 %v421, %v420
  %v456 = vpack.c.b16 %v423, %v422
  %v457 = vpack.c.b16 %v425, %v424
  %v458 = vpack.c.b16 %v427, %v426
  %v459 = vpack.c.b16 %v429, %v428
  %v460 = vpack.c.b16 %v431, %v430
  %v461 = vpack.c.b16 %v433, %v432
  %v462 = vpack.c.b16 %v435, %v434
  %v463 = vpack.c.b16 %v437, %v436
  %v464 = vpack.c.b16 %v439, %v438
  %v465 = vpack.c.b16 %v441, %v440
  %v466 = vpack.c.b16 %v443, %v442
  %v467 = vpack.c.b16 %v445, %v444
  %v468 = vpack.c.b16 %v447, %v446
  %v469 = vpack.c.b16 %v449, %v448
  %v470 = vpack.c.b16 %v451, %v450
  %v471 = vpack.c.b16 %v453, %v452
  %v491 = vsel %vm247, %v374, 0
  %v494 = vsel %vm247, %v377, 0
  %496 = vmatprep.subr.bf16.mxu0 0
  %497 = vmatpush1.bf16.msra.mxu0 %v461
  %498 = vmatprep.subr.bf16.mxu0 0
  %499 = vmatpush1.bf16.msra.mxu0 %v460
  %500 = vmatprep.subr.bf16.mxu0 0
  %501 = vmatpush1.bf16.msra.mxu0 %v459
  %502 = vmatprep.subr.bf16.mxu0 0
  %503 = vmatpush1.bf16.msra.mxu0 %v458
  %504 = vmatprep.subr.bf16.mxu0 0
  %505 = vmatpush1.bf16.msra.mxu0 %v457
  %506 = vmatprep.subr.bf16.mxu0 0
  %507 = vmatpush1.bf16.msra.mxu0 %v456
  %508 = vmatprep.subr.bf16.mxu0 0
  %509 = vmatpush1.bf16.msra.mxu0 %v455
  %510 = vmatprep.subr.bf16.mxu0 0
  %511 = vmatpush1.bf16.msra.mxu0 %v454
  %512 = vmatprep.subr.bf16.mxu0 0
  %513 = vmatpush2.bf16.msra.mxu0 %v469
  %514 = vmatprep.subr.bf16.mxu0 0
  %515 = vmatpush2.bf16.msra.mxu0 %v468
  %516 = vmatprep.subr.bf16.mxu0 0
  %517 = vmatpush2.bf16.msra.mxu0 %v467
  %518 = vmatprep.subr.bf16.mxu0 0
  %519 = vmatpush2.bf16.msra.mxu0 %v466
  %520 = vmatprep.subr.bf16.mxu0 0
  %521 = vmatpush2.bf16.msra.mxu0 %v465
  %522 = vmatprep.subr.bf16.mxu0 0
  %523 = vmatpush2.bf16.msra.mxu0 %v464
  %524 = vmatprep.subr.bf16.mxu0 0
  %525 = vmatpush2.bf16.msra.mxu0 %v463
  %526 = vmatprep.subr.bf16.mxu0 0
  %527 = vmatpush2.bf16.msra.mxu0 %v462
  %528 = vmatprep.mubr.bf16.mxu0 %v373
  %529 = vmatmul.mubr.bf16.gmra.mxu0 %v372
  %v530 = vpop.f32.mrf.mxu0
  %v531 = vadd.f32 %v338, %v530
  %v532 = vpop.f32.mrf.mxu0
  %v533 = vpop.f32.mrf.mxu0
  %v534 = vadd.f32 %v341, %v533
  %v535 = vpop.f32.mrf.mxu0
  %536 = vmatprep.mubr.bf16.mxu0 %v376
  %537 = vmatmul.mubr.bf16.gmra.mxu0 %v375
  %v538 = vpop.f32.mrf.mxu0
  %v539 = vadd.f32 %v346, %v538
  %v540 = vpop.f32.mrf.mxu0
  %v541 = vpop.f32.mrf.mxu0
  %v542 = vadd.f32 %v349, %v541
  %v543 = vpop.f32.mrf.mxu0
  %544 = vdwg.mxu0
  %545 = vmatprep.subr.bf16.mxu0 0
  %546 = vmatpush1.bf16.msra.mxu0 0
  %547 = vmatprep.subr.bf16.mxu0 0
  %548 = vmatpush1.bf16.msra.mxu0 0
  %549 = vmatprep.subr.bf16.mxu0 0
  %550 = vmatpush1.bf16.msra.mxu0 0
  %551 = vmatprep.subr.bf16.mxu0 0
  %552 = vmatpush1.bf16.msra.mxu0 0
  %553 = vmatprep.subr.bf16.mxu0 0
  %554 = vmatpush1.bf16.msra.mxu0 0
  %555 = vmatprep.subr.bf16.mxu0 0
  %556 = vmatpush1.bf16.msra.mxu0 0
  %557 = vmatprep.subr.bf16.mxu0 0
  %558 = vmatpush1.bf16.msra.mxu0 %v471
  %559 = vmatprep.subr.bf16.mxu0 0
  %560 = vmatpush1.bf16.msra.mxu0 %v470
  %561 = vmatprep.subr.bf16.mxu0 0
  %562 = vmatpush2.bf16.msra.mxu0 0
  %563 = vmatprep.subr.bf16.mxu0 0
  %564 = vmatpush2.bf16.msra.mxu0 0
  %565 = vmatprep.subr.bf16.mxu0 0
  %566 = vmatpush2.bf16.msra.mxu0 0
  %567 = vmatprep.subr.bf16.mxu0 0
  %568 = vmatpush2.bf16.msra.mxu0 0
  %569 = vmatprep.subr.bf16.mxu0 0
  %570 = vmatpush2.bf16.msra.mxu0 0
  %571 = vmatprep.subr.bf16.mxu0 0
  %572 = vmatpush2.bf16.msra.mxu0 0
  %573 = vmatprep.subr.bf16.mxu0 0
  %574 = vmatpush2.bf16.msra.mxu0 0
  %575 = vmatprep.subr.bf16.mxu0 0
  %576 = vmatpush2.bf16.msra.mxu0 0
  %577 = vmatprep.mubr.bf16.mxu0 0
  %578 = vmatmul.mubr.bf16.gmra.mxu0 %v491
  %v579 = vpop.f32.mrf.mxu0
  %v580 = vadd.f32 %v531, %v579
  %v581 = vpop.f32.mrf.mxu0
  %v582 = vpop.f32.mrf.mxu0
  %v583 = vadd.f32 %v534, %v582
  %v584 = vpop.f32.mrf.mxu0
  %585 = vmatprep.mubr.bf16.mxu0 0
  %586 = vmatmul.mubr.bf16.gmra.mxu0 %v494
  %v587 = vpop.f32.mrf.mxu0
  %v588 = vadd.f32 %v539, %v587
  %v589 = vpop.f32.mrf.mxu0
  %v590 = vpop.f32.mrf.mxu0
  %v591 = vadd.f32 %v542, %v590
  %v592 = vpop.f32.mrf.mxu0
  %593 = vdwg.mxu0
  %v594 = vld [vmem:[%s4] sm:$0x1]
  %v596 = vlaneseq
  %v597 = vshrl.u32 %v596, 7
  %v598 = vsub.s32 0, %v597
  %v599 = vrot.slane %v594, %v598
  %v601 = vadd.f32 %v580, %v599
  %v602 = vadd.f32 %v583, %v599
  %v603 = vadd.f32 %v588, %v599
  %v604 = vadd.f32 %v591, %v599
  %v605 = vmax.f32 %v601, 0.0
  %v606 = vmax.f32 %v602, 0.0
  %v607 = vmax.f32 %v603, 0.0
  %v608 = vmax.f32 %v604, 0.0
  %v609 = vpack.c.bf16 %v606, %v605
  %v610 = vpack.c.bf16 %v608, %v607
  %v613 = vunpack.c.l.b16 %v609
  %v614 = vunpack.c.h.b16 %v609
  %v615 = vunpack.c.l.b16 %v610
  %v616 = vunpack.c.h.b16 %v610
  %v617 = vpack.c.b16 %v613, %v613
  %v618 = vpack.c.b16 %v614, %v614
  %v619 = vpack.c.b16 %v615, %v615
  %v620 = vpack.c.b16 %v616, %v616
  %625 = vst [vmem:[%s5] sm:$0xf] %v617
  %626 = vst [vmem:[%s5 + $0x4] sm:$0xf] %v618
  %627 = vst [vmem:[%s5 + $0x8] sm:$0xf] %v619
  %628 = vst [vmem:[%s5 + $0xc] sm:$0xf] %v620
  // Predicated region
  $region22: #{sparse_model_forward.12} parent=0 // pred_check
    _
  $region23: #{sparse_model_forward.12} parent=0 // pred_check_branch
    %630 = sbr.rel (0) target = $region25
  $region24: #{sparse_model_forward.12} parent=0 // pred_region
    _
  $region25: #{sparse_model_forward.12} parent=0 // pred_fallthru
    _
  // Predicated region
  $region26: #{sparse_model_forward.12} parent=0 // pred_check
    _
  $region27: #{sparse_model_forward.12} parent=0 // pred_check_branch
    %632 = sbr.rel (0) target = $region29
  $region28: #{sparse_model_forward.12} parent=0 // pred_region
    _
  $region29: #{sparse_model_forward.12} parent=0 // pred_fallthru
    _

// kernel: sparse_model_forward.14
$region0: #{sparse_model_forward.14}
  #allocation0 [shape = 'u32[]', space=smem, size = 0x4, offset = 0x4, fixed_abs, tag = 'smem constant byte address 0x4 - core index']
  #allocation1 [shape = 'u32[144,128]{1,0:T(1,128)}', space=vmem, size = 0x12000, scoped, tag = 'internal scratch']
  #allocation2 [shape = 'f32[1]{0:T(128)S(6)}', space=smem, size = 0x200, scoped, tag = 'scoped memory for sparse_model_forward.14']
  #allocation3 [shape = 'f32[1,1]{1,0:T(1,128)S(6)}', space=smem, size = 0x200, scoped, tag = 'scoped memory for sparse_model_forward.14']
  %s0 = inlined_call_operand.<no memory space> [shape: f32[1], index: 0, kind: input, shape index: {}]
  %s1 = inlined_call_operand.<no memory space> [shape: f32[1,1], index: 1, kind: input, shape index: {}]
  %s2 = inlined_call_operand.vmem [shape: bf16[32,144], index: 2, kind: input, shape index: {}]
  %s3 = inlined_call_operand.vmem [shape: bf16[144,128], index: 3, kind: input, shape index: {}]
  %s4 = inlined_call_operand.vmem [shape: f32[1,128], index: 4, kind: input, shape index: {}]
  %s5 = inlined_call_operand.vmem [shape: bf16[32,128], index: 5, kind: output, shape index: {}]
  %s6 = sld [smem:[#allocation0]]
  $region30: #{sparse_model_forward.14} parent=0
    _
  %s8 = ssub.s32 1, %s6
  %s9 = scalar_select 0, %s8, %s6
  %10 = sst [smem:[#allocation2]] %s0
  %11 = sst [smem:[#allocation3]] %s1
  // Predicated region
  $region2: #{sparse_model_forward.14} parent=0 // pred_check
    _
  $region3: #{sparse_model_forward.14} parent=0 // pred_check_branch
    %13 = sbr.rel (0) target = $region5
  $region4: #{sparse_model_forward.14} parent=0 // pred_region
    _
  $region5: #{sparse_model_forward.14} parent=0 // pred_fallthru
    _
  // Predicated region
  $region6: #{sparse_model_forward.14} parent=0 // pred_check
    _
  $region7: #{sparse_model_forward.14} parent=0 // pred_check_branch
    %15 = sbr.rel (0) target = $region9
  $region8: #{sparse_model_forward.14} parent=0 // pred_region
    _
  $region9: #{sparse_model_forward.14} parent=0 // pred_fallthru
    _
  // Predicated region
  $region10: #{sparse_model_forward.14} parent=0 // pred_check
    _
  $region11: #{sparse_model_forward.14} parent=0 // pred_check_branch
    %17 = sbr.rel (0) target = $region13
  $region12: #{sparse_model_forward.14} parent=0 // pred_region
    _
  $region13: #{sparse_model_forward.14} parent=0 // pred_fallthru
    _
  // Predicated region
  $region14: #{sparse_model_forward.14} parent=0 // pred_check
    _
  $region15: #{sparse_model_forward.14} parent=0 // pred_check_branch
    %19 = sbr.rel (0) target = $region17
  $region16: #{sparse_model_forward.14} parent=0 // pred_region
    _
  $region17: #{sparse_model_forward.14} parent=0 // pred_fallthru
    _
  // Predicated region
  $region18: #{sparse_model_forward.14} parent=0 // pred_check
    _
  $region19: #{sparse_model_forward.14} parent=0 // pred_check_branch
    %21 = sbr.rel (0) target = $region21
  $region20: #{sparse_model_forward.14} parent=0 // pred_region
    _
  $region21: #{sparse_model_forward.14} parent=0 // pred_fallthru
    _
  %v23 = vld [vmem:[%s2] sm:$0xff]
  %v24 = vld [vmem:[%s2 + $0x8] sm:$0xff]
  %v25 = vld [vmem:[%s2 + $0x10] sm:$0xff]
  %v26 = vld [vmem:[%s2 + $0x18] sm:$0xff]
  %v27 = vld [vmem:[%s3] sm:$0xf]
  %v28 = vld [vmem:[%s3 + $0x4] sm:$0xf]
  %v29 = vld [vmem:[%s3 + $0x8] sm:$0xf]
  %v30 = vld [vmem:[%s3 + $0xc] sm:$0xf]
  %v31 = vld [vmem:[%s3 + $0x10] sm:$0xf]
  %v32 = vld [vmem:[%s3 + $0x14] sm:$0xf]
  %v33 = vld [vmem:[%s3 + $0x18] sm:$0xf]
  %v34 = vld [vmem:[%s3 + $0x1c] sm:$0xf]
  %v35 = vld [vmem:[%s3 + $0x20] sm:$0xf]
  %v36 = vld [vmem:[%s3 + $0x24] sm:$0xf]
  %v37 = vld [vmem:[%s3 + $0x28] sm:$0xf]
  %v38 = vld [vmem:[%s3 + $0x2c] sm:$0xf]
  %v39 = vld [vmem:[%s3 + $0x30] sm:$0xf]
  %v40 = vld [vmem:[%s3 + $0x34] sm:$0xf]
  %v41 = vld [vmem:[%s3 + $0x38] sm:$0xf]
  %v42 = vld [vmem:[%s3 + $0x3c] sm:$0xf]
  %v43 = vld [vmem:[%s3 + $0x40] sm:$0xf]
  %v44 = vld [vmem:[%s3 + $0x44] sm:$0xf]
  %v45 = vld [vmem:[%s4] sm:$0x1]
  %v47 = vlaneseq
  %v48 = vshrl.u32 %v47, 7
  %v49 = vsub.s32 0, %v48
  %v50 = vrot.slane %v45, %v49
  %v56 = vunpack.c.l.b16 %v23
  %v57 = vunpack.c.h.b16 %v23
  %v58 = vunpack.c.l.b16 %v24
  %v59 = vunpack.c.h.b16 %v24
  %v60 = vunpack.c.l.b16 %v25
  %v61 = vunpack.c.h.b16 %v25
  %v62 = vunpack.c.l.b16 %v26
  %v63 = vunpack.c.h.b16 %v26
  %v64 = vpack.c.b16 %v58, %v56
  %v65 = vpack.c.b16 %v59, %v57
  %v66 = vpack.c.b16 %v62, %v60
  %v67 = vpack.c.b16 %v63, %v61
  %v88 = vunpack.c.l.b16 %v27
  %v89 = vunpack.c.l.b16 %v28
  %v90 = vunpack.c.l.b16 %v29
  %v91 = vunpack.c.l.b16 %v30
  %v92 = vunpack.c.l.b16 %v31
  %v93 = vunpack.c.l.b16 %v32
  %v94 = vunpack.c.l.b16 %v33
  %v95 = vunpack.c.l.b16 %v34
  %v96 = vunpack.c.l.b16 %v35
  %v97 = vunpack.c.l.b16 %v36
  %v98 = vunpack.c.l.b16 %v37
  %v99 = vunpack.c.l.b16 %v38
  %v100 = vunpack.c.l.b16 %v39
  %v101 = vunpack.c.l.b16 %v40
  %v102 = vunpack.c.l.b16 %v41
  %v103 = vunpack.c.l.b16 %v42
  %v104 = vunpack.c.l.b16 %v43
  %v105 = vunpack.c.l.b16 %v44
  %v106 = vpack.c.b16 %v89, %v88
  %v107 = vpack.c.b16 %v91, %v90
  %v108 = vpack.c.b16 %v93, %v92
  %v109 = vpack.c.b16 %v95, %v94
  %v110 = vpack.c.b16 %v97, %v96
  %v111 = vpack.c.b16 %v99, %v98
  %v112 = vpack.c.b16 %v101, %v100
  %v113 = vpack.c.b16 %v103, %v102
  %v114 = vpack.c.b16 %v105, %v104
  %vm124 = vcmask 130048
  %v126 = vsel %vm124, %v65, 0
  %v129 = vsel %vm124, %v67, 0
  %131 = vmatprep.subr.bf16.mxu0 0
  %132 = vmatpush1.bf16.msra.mxu0 %v113
  %133 = vmatprep.subr.bf16.mxu0 0
  %134 = vmatpush1.bf16.msra.mxu0 %v112
  %135 = vmatprep.subr.bf16.mxu0 0
  %136 = vmatpush1.bf16.msra.mxu0 %v111
  %137 = vmatprep.subr.bf16.mxu0 0
  %138 = vmatpush1.bf16.msra.mxu0 %v110
  %139 = vmatprep.subr.bf16.mxu0 0
  %140 = vmatpush1.bf16.msra.mxu0 %v109
  %141 = vmatprep.subr.bf16.mxu0 0
  %142 = vmatpush1.bf16.msra.mxu0 %v108
  %143 = vmatprep.subr.bf16.mxu0 0
  %144 = vmatpush1.bf16.msra.mxu0 %v107
  %145 = vmatprep.subr.bf16.mxu0 0
  %146 = vmatpush1.bf16.msra.mxu0 %v106
  %147 = vmatprep.subr.bf16.mxu0 0
  %148 = vmatpush2.bf16.msra.mxu0 0
  %149 = vmatprep.subr.bf16.mxu0 0
  %150 = vmatpush2.bf16.msra.mxu0 0
  %151 = vmatprep.subr.bf16.mxu0 0
  %152 = vmatpush2.bf16.msra.mxu0 0
  %153 = vmatprep.subr.bf16.mxu0 0
  %154 = vmatpush2.bf16.msra.mxu0 0
  %155 = vmatprep.subr.bf16.mxu0 0
  %156 = vmatpush2.bf16.msra.mxu0 0
  %157 = vmatprep.subr.bf16.mxu0 0
  %158 = vmatpush2.bf16.msra.mxu0 0
  %159 = vmatprep.subr.bf16.mxu0 0
  %160 = vmatpush2.bf16.msra.mxu0 0
  %161 = vmatprep.subr.bf16.mxu0 0
  %162 = vmatpush2.bf16.msra.mxu0 %v114
  %163 = vmatprep.mubr.bf16.mxu0 %v126
  %164 = vmatmul.mubr.bf16.gmra.mxu0 %v64
  %v165 = vpop.f32.mrf.mxu0
  %v166 = vadd.f32 %v50, %v165
  %v167 = vpop.f32.mrf.mxu0
  %v168 = vpop.f32.mrf.mxu0
  %v169 = vadd.f32 %v50, %v168
  %v170 = vpop.f32.mrf.mxu0
  %171 = vmatprep.mubr.bf16.mxu0 %v129
  %172 = vmatmul.mubr.bf16.gmra.mxu0 %v66
  %v173 = vpop.f32.mrf.mxu0
  %v174 = vadd.f32 %v50, %v173
  %v175 = vpop.f32.mrf.mxu0
  %v176 = vpop.f32.mrf.mxu0
  %v177 = vadd.f32 %v50, %v176
  %v178 = vpop.f32.mrf.mxu0
  %179 = vdwg.mxu0
  %v180 = vlaneseq
  %v181 = vand.u32 %v180, 127
  %vm182 = vcmp.ge.s32.totalorder %v181, 1
  %vm183 = vcmp.lt.s32.totalorder %v181, 4
  %vm184 = vmand %vm182, %vm183
  %s185 = sld [smem:[#allocation2]]
  %s186 = sld [smem:[#allocation3]]
  %s187 = smul.f32 %s185, %s186
  %vm188 = vmxor %vm184, 1
  %v189 = vand.u32 2147483647, %v166
  %v190 = vand.u32 2147483647, %v169
  %v191 = vand.u32 2147483647, %v174
  %v192 = vand.u32 2147483647, %v177
  %v193 = vstv %s187
  %vm194 = vcmp.gt.f32.partialorder %v189, %v193
  %vm195 = vcmp.gt.f32.partialorder %v190, %v193
  %vm196 = vcmp.gt.f32.partialorder %v191, %v193
  %vm197 = vcmp.gt.f32.partialorder %v192, %v193
  %v198 = vsel %vm188, 1, 0
  %vm199 = vcmp.eq.s32.totalorder %v198, 1
  %vm200 = vmor %vm199, %vm194
  %vm201 = vmor %vm199, %vm195
  %vm202 = vmor %vm199, %vm196
  %vm203 = vmor %vm199, %vm197
  %v204 = vsel %vm200, %v166, 0.0
  %v205 = vsel %vm201, %v169, 0.0
  %v206 = vsel %vm202, %v174, 0.0
  %v207 = vsel %vm203, %v177, 0.0
  %v208 = vpack.c.bf16 %v205, %v204
  %v209 = vpack.c.bf16 %v207, %v206
  %v212 = vunpack.c.l.b16 %v208
  %v213 = vunpack.c.h.b16 %v208
  %v214 = vunpack.c.l.b16 %v209
  %v215 = vunpack.c.h.b16 %v209
  %v216 = vpack.c.b16 %v212, %v212
  %v217 = vpack.c.b16 %v213, %v213
  %v218 = vpack.c.b16 %v214, %v214
  %v219 = vpack.c.b16 %v215, %v215
  %224 = vst [vmem:[%s5] sm:$0xf] %v216
  %225 = vst [vmem:[%s5 + $0x4] sm:$0xf] %v217
  %226 = vst [vmem:[%s5 + $0x8] sm:$0xf] %v218
  %227 = vst [vmem:[%s5 + $0xc] sm:$0xf] %v219
  // Predicated region
  $region22: #{sparse_model_forward.14} parent=0 // pred_check
    _
  $region23: #{sparse_model_forward.14} parent=0 // pred_check_branch
    %229 = sbr.rel (0) target = $region25
  $region24: #{sparse_model_forward.14} parent=0 // pred_region
    _
  $region25: #{sparse_model_forward.14} parent=0 // pred_fallthru
    _
  // Predicated region
  $region26: #{sparse_model_forward.14} parent=0 // pred_check
    _
  $region27: #{sparse_model_forward.14} parent=0 // pred_check_branch
    %231 = sbr.rel (0) target = $region29
  $region28: #{sparse_model_forward.14} parent=0 // pred_region
    _
  $region29: #{sparse_model_forward.14} parent=0 // pred_fallthru
    _

// kernel: sparse_model_forward.13
$region0: #{sparse_model_forward.13}
  #allocation0 [shape = 'u32[]', space=smem, size = 0x4, offset = 0x4, fixed_abs, tag = 'smem constant byte address 0x4 - core index']
  #allocation1 [shape = 'u32[144,128]{1,0:T(1,128)}', space=vmem, size = 0x12000, scoped, tag = 'internal scratch']
  %s0 = inlined_call_operand.vmem [shape: bf16[32,144], index: 0, kind: input, shape index: {}]
  %s1 = inlined_call_operand.vmem [shape: bf16[144,128], index: 1, kind: input, shape index: {}]
  %s2 = inlined_call_operand.vmem [shape: f32[1,128], index: 2, kind: input, shape index: {}]
  %s3 = inlined_call_operand.hbm [shape: f32[1,1], index: 3, kind: output, shape index: {}]
  %s4 = sld [smem:[#allocation0]]
  $region26: #{sparse_model_forward.13} parent=0
    _
  %s6 = ssub.s32 1, %s4
  %s7 = scalar_select 0, %s6, %s4
  $region1: #{sparse_model_forward.13} parent=0
    #allocation2 [shape = 'u8[512]{0}', space=vmem, size = 0x400, scoped, tag = 'output window, operand 0, single buffered']
    #allocation3 [shape = 's32[1]{0}', space=sflag, size = 0x4, scoped, tag = 'scoped memory for sparse_model_forward.13']
    %8 = vsyncpa [#allocation3], 0
    // Predicated region
    $region2: #{sparse_model_forward.13} parent=1 // pred_check
      _
    $region3: #{sparse_model_forward.13} parent=1 // pred_check_branch
      %10 = sbr.rel (0) target = $region5
    $region4: #{sparse_model_forward.13} parent=1 // pred_region
      _
    $region5: #{sparse_model_forward.13} parent=1 // pred_fallthru
      _
    // Predicated region
    $region6: #{sparse_model_forward.13} parent=1 // pred_check
      _
    $region7: #{sparse_model_forward.13} parent=1 // pred_check_branch
      %12 = sbr.rel (0) target = $region9
    $region8: #{sparse_model_forward.13} parent=1 // pred_region
      _
    $region9: #{sparse_model_forward.13} parent=1 // pred_fallthru
      _
    // Predicated region
    $region10: #{sparse_model_forward.13} parent=1 // pred_check
      _
    $region11: #{sparse_model_forward.13} parent=1 // pred_check_branch
      %14 = sbr.rel (0) target = $region13
    $region12: #{sparse_model_forward.13} parent=1 // pred_region
      _
    $region13: #{sparse_model_forward.13} parent=1 // pred_fallthru
      _
    %p16 = scmp.eq.s32.totalorder 0, 0
    // Predicated region
    $region14: #{sparse_model_forward.13} parent=1 // pred_check
      %p17 = pneg %p16
    $region15: #{sparse_model_forward.13} parent=1 // pred_check_branch
      %19 = sbr.rel (%p17) target = $region17
    $region16: #{sparse_model_forward.13} parent=1 // pred_region
      %vm20 = vcmask 0
      %21 = vst.msk [vmem:[#allocation2] sm:$0x1] %vm20, 0.0
    $region17: #{sparse_model_forward.13} parent=1 // pred_fallthru
      _
    %v22 = vld [vmem:[%s0] sm:$0xff]
    %v23 = vld [vmem:[%s0 + $0x8] sm:$0xff]
    %v24 = vld [vmem:[%s0 + $0x10] sm:$0xff]
    %v25 = vld [vmem:[%s0 + $0x18] sm:$0xff]
    %v26 = vld [vmem:[%s1] sm:$0xf]
    %v27 = vld [vmem:[%s1 + $0x4] sm:$0xf]
    %v28 = vld [vmem:[%s1 + $0x8] sm:$0xf]
    %v29 = vld [vmem:[%s1 + $0xc] sm:$0xf]
    %v30 = vld [vmem:[%s1 + $0x10] sm:$0xf]
    %v31 = vld [vmem:[%s1 + $0x14] sm:$0xf]
    %v32 = vld [vmem:[%s1 + $0x18] sm:$0xf]
    %v33 = vld [vmem:[%s1 + $0x1c] sm:$0xf]
    %v34 = vld [vmem:[%s1 + $0x20] sm:$0xf]
    %v35 = vld [vmem:[%s1 + $0x24] sm:$0xf]
    %v36 = vld [vmem:[%s1 + $0x28] sm:$0xf]
    %v37 = vld [vmem:[%s1 + $0x2c] sm:$0xf]
    %v38 = vld [vmem:[%s1 + $0x30] sm:$0xf]
    %v39 = vld [vmem:[%s1 + $0x34] sm:$0xf]
    %v40 = vld [vmem:[%s1 + $0x38] sm:$0xf]
    %v41 = vld [vmem:[%s1 + $0x3c] sm:$0xf]
    %v42 = vld [vmem:[%s1 + $0x40] sm:$0xf]
    %v43 = vld [vmem:[%s1 + $0x44] sm:$0xf]
    %v44 = vld [vmem:[%s2] sm:$0x1]
    %v46 = vlaneseq
    %v47 = vshrl.u32 %v46, 7
    %v48 = vsub.s32 0, %v47
    %v49 = vrot.slane %v44, %v48
    %v55 = vunpack.c.l.b16 %v22
    %v56 = vunpack.c.h.b16 %v22
    %v57 = vunpack.c.l.b16 %v23
    %v58 = vunpack.c.h.b16 %v23
    %v59 = vunpack.c.l.b16 %v24
    %v60 = vunpack.c.h.b16 %v24
    %v61 = vunpack.c.l.b16 %v25
    %v62 = vunpack.c.h.b16 %v25
    %v63 = vpack.c.b16 %v57, %v55
    %v64 = vpack.c.b16 %v58, %v56
    %v65 = vpack.c.b16 %v61, %v59
    %v66 = vpack.c.b16 %v62, %v60
    %v87 = vunpack.c.l.b16 %v26
    %v88 = vunpack.c.l.b16 %v27
    %v89 = vunpack.c.l.b16 %v28
    %v90 = vunpack.c.l.b16 %v29
    %v91 = vunpack.c.l.b16 %v30
    %v92 = vunpack.c.l.b16 %v31
    %v93 = vunpack.c.l.b16 %v32
    %v94 = vunpack.c.l.b16 %v33
    %v95 = vunpack.c.l.b16 %v34
    %v96 = vunpack.c.l.b16 %v35
    %v97 = vunpack.c.l.b16 %v36
    %v98 = vunpack.c.l.b16 %v37
    %v99 = vunpack.c.l.b16 %v38
    %v100 = vunpack.c.l.b16 %v39
    %v101 = vunpack.c.l.b16 %v40
    %v102 = vunpack.c.l.b16 %v41
    %v103 = vunpack.c.l.b16 %v42
    %v104 = vunpack.c.l.b16 %v43
    %v105 = vpack.c.b16 %v88, %v87
    %v106 = vpack.c.b16 %v90, %v89
    %v107 = vpack.c.b16 %v92, %v91
    %v108 = vpack.c.b16 %v94, %v93
    %v109 = vpack.c.b16 %v96, %v95
    %v110 = vpack.c.b16 %v98, %v97
    %v111 = vpack.c.b16 %v100, %v99
    %v112 = vpack.c.b16 %v102, %v101
    %v113 = vpack.c.b16 %v104, %v103
    %vm123 = vcmask 130048
    %v125 = vsel %vm123, %v64, 0
    %v128 = vsel %vm123, %v66, 0
    %130 = vmatprep.subr.bf16.mxu0 0
    %131 = vmatpush1.bf16.msra.mxu0 %v112
    %132 = vmatprep.subr.bf16.mxu0 0
    %133 = vmatpush1.bf16.msra.mxu0 %v111
    %134 = vmatprep.subr.bf16.mxu0 0
    %135 = vmatpush1.bf16.msra.mxu0 %v110
    %136 = vmatprep.subr.bf16.mxu0 0
    %137 = vmatpush1.bf16.msra.mxu0 %v109
    %138 = vmatprep.subr.bf16.mxu0 0
    %139 = vmatpush1.bf16.msra.mxu0 %v108
    %140 = vmatprep.subr.bf16.mxu0 0
    %141 = vmatpush1.bf16.msra.mxu0 %v107
    %142 = vmatprep.subr.bf16.mxu0 0
    %143 = vmatpush1.bf16.msra.mxu0 %v106
    %144 = vmatprep.subr.bf16.mxu0 0
    %145 = vmatpush1.bf16.msra.mxu0 %v105
    %146 = vmatprep.subr.bf16.mxu0 0
    %147 = vmatpush2.bf16.msra.mxu0 0
    %148 = vmatprep.subr.bf16.mxu0 0
    %149 = vmatpush2.bf16.msra.mxu0 0
    %150 = vmatprep.subr.bf16.mxu0 0
    %151 = vmatpush2.bf16.msra.mxu0 0
    %152 = vmatprep.subr.bf16.mxu0 0
    %153 = vmatpush2.bf16.msra.mxu0 0
    %154 = vmatprep.subr.bf16.mxu0 0
    %155 = vmatpush2.bf16.msra.mxu0 0
    %156 = vmatprep.subr.bf16.mxu0 0
    %157 = vmatpush2.bf16.msra.mxu0 0
    %158 = vmatprep.subr.bf16.mxu0 0
    %159 = vmatpush2.bf16.msra.mxu0 0
    %160 = vmatprep.subr.bf16.mxu0 0
    %161 = vmatpush2.bf16.msra.mxu0 %v113
    %162 = vmatprep.mubr.bf16.mxu0 %v125
    %163 = vmatmul.mubr.bf16.gmra.mxu0 %v63
    %v164 = vpop.f32.mrf.mxu0
    %v165 = vadd.f32 %v49, %v164
    %v166 = vpop.f32.mrf.mxu0
    %v167 = vpop.f32.mrf.mxu0
    %v168 = vadd.f32 %v49, %v167
    %v169 = vpop.f32.mrf.mxu0
    %170 = vmatprep.mubr.bf16.mxu0 %v128
    %171 = vmatmul.mubr.bf16.gmra.mxu0 %v65
    %v172 = vpop.f32.mrf.mxu0
    %v173 = vadd.f32 %v49, %v172
    %v174 = vpop.f32.mrf.mxu0
    %v175 = vpop.f32.mrf.mxu0
    %v176 = vadd.f32 %v49, %v175
    %v177 = vpop.f32.mrf.mxu0
    %178 = vdwg.mxu0
    %v179 = vlaneseq
    %v180 = vand.u32 %v179, 127
    %vm181 = vcmp.ge.s32.totalorder %v180, 1
    %vm182 = vcmp.lt.s32.totalorder %v180, 4
    %vm183 = vmand %vm181, %vm182
    %s184 = smul.u32 0, 32
    %v185 = vlaneseq
    %v186 = vshrl.u32 %v185, 7
    %v187 = vadd.s32 %v186, 8
    %v188 = vadd.s32 %v186, 16
    %v189 = vadd.s32 %v186, 24
    %v190 = vstv %s184
    %v191 = vadd.s32 %v190, %v186
    %v192 = vadd.s32 %v190, %v187
    %v193 = vadd.s32 %v190, %v188
    %v194 = vadd.s32 %v190, %v189
    %vm195 = vcmp.lt.s32.totalorder %v191, 32
    %vm196 = vcmp.lt.s32.totalorder %v192, 32
    %vm197 = vcmp.lt.s32.totalorder %v193, 32
    %vm198 = vcmp.lt.s32.totalorder %v194, 32
    %v199 = vsel %vm183, 1, 0
    %vm200 = vcmp.eq.s32.totalorder %v199, 1
    %v201 = vsel %vm195, 1, 0
    %v202 = vsel %vm196, 1, 0
    %v203 = vsel %vm197, 1, 0
    %v204 = vsel %vm198, 1, 0
    %vm205 = vcmp.eq.s32.totalorder %v201, 1
    %vm206 = vcmp.eq.s32.totalorder %v202, 1
    %vm207 = vcmp.eq.s32.totalorder %v203, 1
    %vm208 = vcmp.eq.s32.totalorder %v204, 1
    %vm209 = vmand %vm200, %vm205
    %vm210 = vmand %vm200, %vm206
    %vm211 = vmand %vm200, %vm207
    %vm212 = vmand %vm200, %vm208
    %v213 = vand.u32 2147483647, %v165
    %v214 = vand.u32 2147483647, %v168
    %v215 = vand.u32 2147483647, %v173
    %v216 = vand.u32 2147483647, %v176
    %v217 = vsel %vm209, %v213, 0.0
    %v218 = vsel %vm210, %v214, 0.0
    %v219 = vsel %vm211, %v215, 0.0
    %v220 = vsel %vm212, %v216, 0.0
    %v221 = vmax.f32 %v217, %v218
    %v222 = vmax.f32 %v219, %v220
    %v223 = vmax.f32 %v221, %v222
    %224 = vmax.xlane.f32.xlu0 %v223
    %v225 = vpop.xlane.xlu0 %224
    %v226 = vrot.slane %v225, 4
    %v227 = vmax.f32 %v225, %v226
    %v228 = vrot.slane %v227, 2
    %v229 = vmax.f32 %v227, %v228
    %v230 = vrot.slane %v229, 1
    %v231 = vmax.f32 %v229, %v230
    %s232 = vtos %v231
    %v233 = vld [vmem:[#allocation2] sm:$0x1]
    %v234 = vstv %s232
    %v235 = vmax.f32 %v233, %v234
    %vm236 = vcmask 0
    %237 = vst.msk [vmem:[#allocation2] sm:$0x1] %vm236, %v235
    // Predicated region
    $region18: #{sparse_model_forward.13} parent=1 // pred_check
      _
    $region19: #{sparse_model_forward.13} parent=1 // pred_check_branch
      %239 = sbr.rel (0) target = $region21
    $region20: #{sparse_model_forward.13} parent=1 // pred_region
      %s241 = ssub.s32 16, 16
      %242 = vsyncadd [#allocation3], %s241
      %s244 = sshll.u32 [#allocation2], 4
      %s245 = int_to_ptr.vmem [resolvable:$true] %s244
      %247 = dma.vmem_to_hbm [thread:$0]  %s245, 16, %s3, [#allocation3]
    $region21: #{sparse_model_forward.13} parent=1 // pred_fallthru
      _
    // Predicated region
    $region22: #{sparse_model_forward.13} parent=1 // pred_check
      _
    $region23: #{sparse_model_forward.13} parent=1 // pred_check_branch
      %249 = sbr.rel (0) target = $region25
    $region24: #{sparse_model_forward.13} parent=1 // pred_region
      %250 = dma.done [#allocation3], 16
    $region25: #{sparse_model_forward.13} parent=1 // pred_fallthru
      _
    %251 = vsyncpa [#allocation3], 1

// kernel: sparse_model_forward.15
$region0: #{sparse_model_forward.15}
  #allocation0 [shape = 'u32[]', space=smem, size = 0x4, offset = 0x4, fixed_abs, tag = 'smem constant byte address 0x4 - core index']
  #allocation1 [shape = 'u32[144,128]{1,0:T(1,128)}', space=vmem, size = 0x12000, scoped, tag = 'internal scratch']
  %s0 = inlined_call_operand.vmem [shape: bf16[128,144], index: 0, kind: input, shape index: {}]
  %s1 = inlined_call_operand.vmem [shape: bf16[128,48], index: 1, kind: input, shape index: {}]
  %s2 = inlined_call_operand.vmem [shape: bf16[128,144], index: 2, kind: input, shape index: {}]
  %s3 = inlined_call_operand.vmem [shape: bf16[144,128], index: 3, kind: input, shape index: {}]
  %s4 = inlined_call_operand.vmem [shape: bf16[48,128], index: 4, kind: input, shape index: {}]
  %s5 = inlined_call_operand.vmem [shape: bf16[144,128], index: 5, kind: input, shape index: {}]
  %s6 = inlined_call_operand.vmem [shape: f32[1,128], index: 6, kind: input, shape index: {}]
  %s7 = inlined_call_operand.vmem [shape: f32[128,128], index: 7, kind: output, shape index: {}]
  %s8 = sld [smem:[#allocation0]]
  $region38: #{sparse_model_forward.15} parent=0
    _
  %s10 = ssub.s32 1, %s8
  %s11 = scalar_select 0, %s10, %s8
  // Predicated region
  $region2: #{sparse_model_forward.15} parent=0 // pred_check
    _
  $region3: #{sparse_model_forward.15} parent=0 // pred_check_branch
    %13 = sbr.rel (0) target = $region5
  $region4: #{sparse_model_forward.15} parent=0 // pred_region
    _
  $region5: #{sparse_model_forward.15} parent=0 // pred_fallthru
    _
  // Predicated region
  $region6: #{sparse_model_forward.15} parent=0 // pred_check
    _
  $region7: #{sparse_model_forward.15} parent=0 // pred_check_branch
    %15 = sbr.rel (0) target = $region9
  $region8: #{sparse_model_forward.15} parent=0 // pred_region
    _
  $region9: #{sparse_model_forward.15} parent=0 // pred_fallthru
    _
  // Predicated region
  $region10: #{sparse_model_forward.15} parent=0 // pred_check
    _
  $region11: #{sparse_model_forward.15} parent=0 // pred_check_branch
    %17 = sbr.rel (0) target = $region13
  $region12: #{sparse_model_forward.15} parent=0 // pred_region
    _
  $region13: #{sparse_model_forward.15} parent=0 // pred_fallthru
    _
  // Predicated region
  $region14: #{sparse_model_forward.15} parent=0 // pred_check
    _
  $region15: #{sparse_model_forward.15} parent=0 // pred_check_branch
    %19 = sbr.rel (0) target = $region17
  $region16: #{sparse_model_forward.15} parent=0 // pred_region
    _
  $region17: #{sparse_model_forward.15} parent=0 // pred_fallthru
    _
  // Predicated region
  $region18: #{sparse_model_forward.15} parent=0 // pred_check
    _
  $region19: #{sparse_model_forward.15} parent=0 // pred_check_branch
    %21 = sbr.rel (0) target = $region21
  $region20: #{sparse_model_forward.15} parent=0 // pred_region
    _
  $region21: #{sparse_model_forward.15} parent=0 // pred_fallthru
    _
  // Predicated region
  $region22: #{sparse_model_forward.15} parent=0 // pred_check
    _
  $region23: #{sparse_model_forward.15} parent=0 // pred_check_branch
    %23 = sbr.rel (0) target = $region25
  $region24: #{sparse_model_forward.15} parent=0 // pred_region
    _
  $region25: #{sparse_model_forward.15} parent=0 // pred_fallthru
    _
  // Predicated region
  $region26: #{sparse_model_forward.15} parent=0 // pred_check
    _
  $region27: #{sparse_model_forward.15} parent=0 // pred_check_branch
    %25 = sbr.rel (0) target = $region29
  $region28: #{sparse_model_forward.15} parent=0 // pred_region
    _
  $region29: #{sparse_model_forward.15} parent=0 // pred_fallthru
    _
  %v27 = vld [vmem:[%s0] sm:$0xff]
  %v28 = vld [vmem:[%s0 + $0x8] sm:$0xff]
  %v29 = vld [vmem:[%s0 + $0x10] sm:$0xff]
  %v30 = vld [vmem:[%s0 + $0x18] sm:$0xff]
  %v31 = vld [vmem:[%s0 + $0x20] sm:$0xff]
  %v32 = vld [vmem:[%s0 + $0x28] sm:$0xff]
  %v33 = vld [vmem:[%s0 + $0x30] sm:$0xff]
  %v34 = vld [vmem:[%s0 + $0x38] sm:$0xff]
  %v35 = vld [vmem:[%s0 + $0x40] sm:$0xff]
  %v36 = vld [vmem:[%s0 + $0x48] sm:$0xff]
  %v37 = vld [vmem:[%s0 + $0x50] sm:$0xff]
  %v38 = vld [vmem:[%s0 + $0x58] sm:$0xff]
  %v39 = vld [vmem:[%s0 + $0x60] sm:$0xff]
  %v40 = vld [vmem:[%s0 + $0x68] sm:$0xff]
  %v41 = vld [vmem:[%s0 + $0x70] sm:$0xff]
  %v42 = vld [vmem:[%s0 + $0x78] sm:$0xff]
  %v43 = vld [vmem:[%s3] sm:$0xf]
  %v44 = vld [vmem:[%s3 + $0x4] sm:$0xf]
  %v45 = vld [vmem:[%s3 + $0x8] sm:$0xf]
  %v46 = vld [vmem:[%s3 + $0xc] sm:$0xf]
  %v47 = vld [vmem:[%s3 + $0x10] sm:$0xf]
  %v48 = vld [vmem:[%s3 + $0x14] sm:$0xf]
  %v49 = vld [vmem:[%s3 + $0x18] sm:$0xf]
  %v50 = vld [vmem:[%s3 + $0x1c] sm:$0xf]
  %v51 = vld [vmem:[%s3 + $0x20] sm:$0xf]
  %v52 = vld [vmem:[%s3 + $0x24] sm:$0xf]
  %v53 = vld [vmem:[%s3 + $0x28] sm:$0xf]
  %v54 = vld [vmem:[%s3 + $0x2c] sm:$0xf]
  %v55 = vld [vmem:[%s3 + $0x30] sm:$0xf]
  %v56 = vld [vmem:[%s3 + $0x34] sm:$0xf]
  %v57 = vld [vmem:[%s3 + $0x38] sm:$0xf]
  %v58 = vld [vmem:[%s3 + $0x3c] sm:$0xf]
  %v59 = vld [vmem:[%s3 + $0x40] sm:$0xf]
  %v60 = vld [vmem:[%s3 + $0x44] sm:$0xf]
  %v61 = vld [vmem:[%s1] sm:$0xf]
  %v62 = vld [vmem:[%s1 + $0x4] sm:$0xf]
  %v63 = vld [vmem:[%s1 + $0x8] sm:$0xf]
  %v64 = vld [vmem:[%s1 + $0xc] sm:$0xf]
  %v65 = vld [vmem:[%s1 + $0x10] sm:$0xf]
  %v66 = vld [vmem:[%s1 + $0x14] sm:$0xf]
  %v67 = vld [vmem:[%s1 + $0x18] sm:$0xf]
  %v68 = vld [vmem:[%s1 + $0x1c] sm:$0xf]
  %v69 = vld [vmem:[%s1 + $0x20] sm:$0xf]
  %v70 = vld [vmem:[%s1 + $0x24] sm:$0xf]
  %v71 = vld [vmem:[%s1 + $0x28] sm:$0xf]
  %v72 = vld [vmem:[%s1 + $0x2c] sm:$0xf]
  %v73 = vld [vmem:[%s1 + $0x30] sm:$0xf]
  %v74 = vld [vmem:[%s1 + $0x34] sm:$0xf]
  %v75 = vld [vmem:[%s1 + $0x38] sm:$0xf]
  %v76 = vld [vmem:[%s1 + $0x3c] sm:$0xf]
  %v77 = vld [vmem:[%s4] sm:$0xf]
  %v78 = vld [vmem:[%s4 + $0x4] sm:$0xf]
  %v79 = vld [vmem:[%s4 + $0x8] sm:$0xf]
  %v80 = vld [vmem:[%s4 + $0xc] sm:$0xf]
  %v81 = vld [vmem:[%s4 + $0x10] sm:$0xf]
  %v82 = vld [vmem:[%s4 + $0x14] sm:$0xf]
  %v99 = vunpack.c.l.b16 %v61
  %v100 = vunpack.c.l.b16 %v62
  %v101 = vunpack.c.l.b16 %v63
  %v102 = vunpack.c.l.b16 %v64
  %v103 = vunpack.c.l.b16 %v65
  %v104 = vunpack.c.l.b16 %v66
  %v105 = vunpack.c.l.b16 %v67
  %v106 = vunpack.c.l.b16 %v68
  %v107 = vunpack.c.l.b16 %v69
  %v108 = vunpack.c.l.b16 %v70
  %v109 = vunpack.c.l.b16 %v71
  %v110 = vunpack.c.l.b16 %v72
  %v111 = vunpack.c.l.b16 %v73
  %v112 = vunpack.c.l.b16 %v74
  %v113 = vunpack.c.l.b16 %v75
  %v114 = vunpack.c.l.b16 %v76
  %v115 = vpack.c.b16 %v100, %v99
  %v116 = vpack.c.b16 %v102, %v101
  %v117 = vpack.c.b16 %v104, %v103
  %v118 = vpack.c.b16 %v106, %v105
  %v119 = vpack.c.b16 %v108, %v107
  %v120 = vpack.c.b16 %v110, %v109
  %v121 = vpack.c.b16 %v112, %v111
  %v122 = vpack.c.b16 %v114, %v113
  %v129 = vunpack.c.l.b16 %v77
  %v130 = vunpack.c.l.b16 %v78
  %v131 = vunpack.c.l.b16 %v79
  %v132 = vunpack.c.l.b16 %v80
  %v133 = vunpack.c.l.b16 %v81
  %v134 = vunpack.c.l.b16 %v82
  %v135 = vpack.c.b16 %v130, %v129
  %v136 = vpack.c.b16 %v132, %v131
  %v137 = vpack.c.b16 %v134, %v133
  %vm141 = vcmask 392192
  %v143 = vsel %vm141, %v115, 0
  %v146 = vsel %vm141, %v116, 0
  %v149 = vsel %vm141, %v117, 0
  %v152 = vsel %vm141, %v118, 0
  %v155 = vsel %vm141, %v119, 0
  %v158 = vsel %vm141, %v120, 0
  %v161 = vsel %vm141, %v121, 0
  %v164 = vsel %vm141, %v122, 0
  %166 = vmatprep.subr.bf16.mxu0 0
  %167 = vmatpush1.bf16.msra.mxu0 0
  %168 = vmatprep.subr.bf16.mxu0 0
  %169 = vmatpush1.bf16.msra.mxu0 0
  %170 = vmatprep.subr.bf16.mxu0 0
  %171 = vmatpush1.bf16.msra.mxu0 0
  %172 = vmatprep.subr.bf16.mxu0 0
  %173 = vmatpush1.bf16.msra.mxu0 0
  %174 = vmatprep.subr.bf16.mxu0 0
  %175 = vmatpush1.bf16.msra.mxu0 0
  %176 = vmatprep.subr.bf16.mxu0 0
  %177 = vmatpush1.bf16.msra.mxu0 %v137
  %178 = vmatprep.subr.bf16.mxu0 0
  %179 = vmatpush1.bf16.msra.mxu0 %v136
  %180 = vmatprep.subr.bf16.mxu0 0
  %181 = vmatpush1.bf16.msra.mxu0 %v135
  %182 = vmatprep.subr.bf16.mxu0 0
  %183 = vmatpush2.bf16.msra.mxu0 0
  %184 = vmatprep.subr.bf16.mxu0 0
  %185 = vmatpush2.bf16.msra.mxu0 0
  %186 = vmatprep.subr.bf16.mxu0 0
  %187 = vmatpush2.bf16.msra.mxu0 0
  %188 = vmatprep.subr.bf16.mxu0 0
  %189 = vmatpush2.bf16.msra.mxu0 0
  %190 = vmatprep.subr.bf16.mxu0 0
  %191 = vmatpush2.bf16.msra.mxu0 0
  %192 = vmatprep.subr.bf16.mxu0 0
  %193 = vmatpush2.bf16.msra.mxu0 0
  %194 = vmatprep.subr.bf16.mxu0 0
  %195 = vmatpush2.bf16.msra.mxu0 0
  %196 = vmatprep.subr.bf16.mxu0 0
  %197 = vmatpush2.bf16.msra.mxu0 0
  %198 = vmatprep.mubr.bf16.mxu0 0
  %199 = vmatmul.mubr.bf16.gmra.mxu0 %v143
  %v200 = vpop.f32.mrf.mxu0
  %v201 = vadd.f32 0.0, %v200
  %v202 = vpop.f32.mrf.mxu0
  %v203 = vpop.f32.mrf.mxu0
  %v204 = vadd.f32 0.0, %v203
  %v205 = vpop.f32.mrf.mxu0
  %206 = vmatprep.mubr.bf16.mxu0 0
  %207 = vmatmul.mubr.bf16.gmra.mxu0 %v146
  %v208 = vpop.f32.mrf.mxu0
  %v209 = vadd.f32 0.0, %v208
  %v210 = vpop.f32.mrf.mxu0
  %v211 = vpop.f32.mrf.mxu0
  %v212 = vadd.f32 0.0, %v211
  %v213 = vpop.f32.mrf.mxu0
  %214 = vmatprep.mubr.bf16.mxu0 0
  %215 = vmatmul.mubr.bf16.gmra.mxu0 %v149
  %v216 = vpop.f32.mrf.mxu0
  %v217 = vadd.f32 0.0, %v216
  %v218 = vpop.f32.mrf.mxu0
  %v219 = vpop.f32.mrf.mxu0
  %v220 = vadd.f32 0.0, %v219
  %v221 = vpop.f32.mrf.mxu0
  %222 = vmatprep.mubr.bf16.mxu0 0
  %223 = vmatmul.mubr.bf16.gmra.mxu0 %v152
  %v224 = vpop.f32.mrf.mxu0
  %v225 = vadd.f32 0.0, %v224
  %v226 = vpop.f32.mrf.mxu0
  %v227 = vpop.f32.mrf.mxu0
  %v228 = vadd.f32 0.0, %v227
  %v229 = vpop.f32.mrf.mxu0
  %230 = vmatprep.mubr.bf16.mxu0 0
  %231 = vmatmul.mubr.bf16.gmra.mxu0 %v155
  %v232 = vpop.f32.mrf.mxu0
  %v233 = vadd.f32 0.0, %v232
  %v234 = vpop.f32.mrf.mxu0
  %v235 = vpop.f32.mrf.mxu0
  %v236 = vadd.f32 0.0, %v235
  %v237 = vpop.f32.mrf.mxu0
  %238 = vmatprep.mubr.bf16.mxu0 0
  %239 = vmatmul.mubr.bf16.gmra.mxu0 %v158
  %v240 = vpop.f32.mrf.mxu0
  %v241 = vadd.f32 0.0, %v240
  %v242 = vpop.f32.mrf.mxu0
  %v243 = vpop.f32.mrf.mxu0
  %v244 = vadd.f32 0.0, %v243
  %v245 = vpop.f32.mrf.mxu0
  %246 = vmatprep.mubr.bf16.mxu0 0
  %247 = vmatmul.mubr.bf16.gmra.mxu0 %v161
  %v248 = vpop.f32.mrf.mxu0
  %v249 = vadd.f32 0.0, %v248
  %v250 = vpop.f32.mrf.mxu0
  %v251 = vpop.f32.mrf.mxu0
  %v252 = vadd.f32 0.0, %v251
  %v253 = vpop.f32.mrf.mxu0
  %254 = vmatprep.mubr.bf16.mxu0 0
  %255 = vmatmul.mubr.bf16.gmra.mxu0 %v164
  %v256 = vpop.f32.mrf.mxu0
  %v257 = vadd.f32 0.0, %v256
  %v258 = vpop.f32.mrf.mxu0
  %v259 = vpop.f32.mrf.mxu0
  %v260 = vadd.f32 0.0, %v259
  %v261 = vpop.f32.mrf.mxu0
  %262 = vdwg.mxu0
  %v279 = vunpack.c.l.b16 %v27
  %v280 = vunpack.c.h.b16 %v27
  %v281 = vunpack.c.l.b16 %v28
  %v282 = vunpack.c.h.b16 %v28
  %v283 = vunpack.c.l.b16 %v29
  %v284 = vunpack.c.h.b16 %v29
  %v285 = vunpack.c.l.b16 %v30
  %v286 = vunpack.c.h.b16 %v30
  %v287 = vunpack.c.l.b16 %v31
  %v288 = vunpack.c.h.b16 %v31
  %v289 = vunpack.c.l.b16 %v32
  %v290 = vunpack.c.h.b16 %v32
  %v291 = vunpack.c.l.b16 %v33
  %v292 = vunpack.c.h.b16 %v33
  %v293 = vunpack.c.l.b16 %v34
  %v294 = vunpack.c.h.b16 %v34
  %v295 = vunpack.c.l.b16 %v35
  %v296 = vunpack.c.h.b16 %v35
  %v297 = vunpack.c.l.b16 %v36
  %v298 = vunpack.c.h.b16 %v36
  %v299 = vunpack.c.l.b16 %v37
  %v300 = vunpack.c.h.b16 %v37
  %v301 = vunpack.c.l.b16 %v38
  %v302 = vunpack.c.h.b16 %v38
  %v303 = vunpack.c.l.b16 %v39
  %v304 = vunpack.c.h.b16 %v39
  %v305 = vunpack.c.l.b16 %v40
  %v306 = vunpack.c.h.b16 %v40
  %v307 = vunpack.c.l.b16 %v41
  %v308 = vunpack.c.h.b16 %v41
  %v309 = vunpack.c.l.b16 %v42
  %v310 = vunpack.c.h.b16 %v42
  %v311 = vpack.c.b16 %v281, %v279
  %v312 = vpack.c.b16 %v282, %v280
  %v313 = vpack.c.b16 %v285, %v283
  %v314 = vpack.c.b16 %v286, %v284
  %v315 = vpack.c.b16 %v289, %v287
  %v316 = vpack.c.b16 %v290, %v288
  %v317 = vpack.c.b16 %v293, %v291
  %v318 = vpack.c.b16 %v294, %v292
  %v319 = vpack.c.b16 %v297, %v295
  %v320 = vpack.c.b16 %v298, %v296
  %v321 = vpack.c.b16 %v301, %v299
  %v322 = vpack.c.b16 %v302, %v300
  %v323 = vpack.c.b16 %v305, %v303
  %v324 = vpack.c.b16 %v306, %v304
  %v325 = vpack.c.b16 %v309, %v307
  %v326 = vpack.c.b16 %v310, %v308
  %v353 = vunpack.c.l.b16 %v43
  %v354 = vunpack.c.l.b16 %v44
  %v355 = vunpack.c.l.b16 %v45
  %v356 = vunpack.c.l.b16 %v46
  %v357 = vunpack.c.l.b16 %v47
  %v358 = vunpack.c.l.b16 %v48
  %v359 = vunpack.c.l.b16 %v49
  %v360 = vunpack.c.l.b16 %v50
  %v361 = vunpack.c.l.b16 %v51
  %v362 = vunpack.c.l.b16 %v52
  %v363 = vunpack.c.l.b16 %v53
  %v364 = vunpack.c.l.b16 %v54
  %v365 = vunpack.c.l.b16 %v55
  %v366 = vunpack.c.l.b16 %v56
  %v367 = vunpack.c.l.b16 %v57
  %v368 = vunpack.c.l.b16 %v58
  %v369 = vunpack.c.l.b16 %v59
  %v370 = vunpack.c.l.b16 %v60
  %v371 = vpack.c.b16 %v354, %v353
  %v372 = vpack.c.b16 %v356, %v355
  %v373 = vpack.c.b16 %v358, %v357
  %v374 = vpack.c.b16 %v360, %v359
  %v375 = vpack.c.b16 %v362, %v361
  %v376 = vpack.c.b16 %v364, %v363
  %v377 = vpack.c.b16 %v366, %v365
  %v378 = vpack.c.b16 %v368, %v367
  %v379 = vpack.c.b16 %v370, %v369
  %vm389 = vcmask 130048
  %v391 = vsel %vm389, %v312, 0
  %v394 = vsel %vm389, %v314, 0
  %v397 = vsel %vm389, %v316, 0
  %v400 = vsel %vm389, %v318, 0
  %v403 = vsel %vm389, %v320, 0
  %v406 = vsel %vm389, %v322, 0
  %v409 = vsel %vm389, %v324, 0
  %v412 = vsel %vm389, %v326, 0
  %414 = vmatprep.subr.bf16.mxu0 0
  %415 = vmatpush1.bf16.msra.mxu0 %v378
  %416 = vmatprep.subr.bf16.mxu0 0
  %417 = vmatpush1.bf16.msra.mxu0 %v377
  %418 = vmatprep.subr.bf16.mxu0 0
  %419 = vmatpush1.bf16.msra.mxu0 %v376
  %420 = vmatprep.subr.bf16.mxu0 0
  %421 = vmatpush1.bf16.msra.mxu0 %v375
  %422 = vmatprep.subr.bf16.mxu0 0
  %423 = vmatpush1.bf16.msra.mxu0 %v374
  %424 = vmatprep.subr.bf16.mxu0 0
  %425 = vmatpush1.bf16.msra.mxu0 %v373
  %426 = vmatprep.subr.bf16.mxu0 0
  %427 = vmatpush1.bf16.msra.mxu0 %v372
  %428 = vmatprep.subr.bf16.mxu0 0
  %429 = vmatpush1.bf16.msra.mxu0 %v371
  %430 = vmatprep.subr.bf16.mxu0 0
  %431 = vmatpush2.bf16.msra.mxu0 0
  %432 = vmatprep.subr.bf16.mxu0 0
  %433 = vmatpush2.bf16.msra.mxu0 0
  %434 = vmatprep.subr.bf16.mxu0 0
  %435 = vmatpush2.bf16.msra.mxu0 0
  %436 = vmatprep.subr.bf16.mxu0 0
  %437 = vmatpush2.bf16.msra.mxu0 0
  %438 = vmatprep.subr.bf16.mxu0 0
  %439 = vmatpush2.bf16.msra.mxu0 0
  %440 = vmatprep.subr.bf16.mxu0 0
  %441 = vmatpush2.bf16.msra.mxu0 0
  %442 = vmatprep.subr.bf16.mxu0 0
  %443 = vmatpush2.bf16.msra.mxu0 0
  %444 = vmatprep.subr.bf16.mxu0 0
  %445 = vmatpush2.bf16.msra.mxu0 %v379
  %446 = vmatprep.mubr.bf16.mxu0 %v391
  %447 = vmatmul.mubr.bf16.gmra.mxu0 %v311
  %v448 = vpop.f32.mrf.mxu0
  %v449 = vadd.f32 %v201, %v448
  %v450 = vpop.f32.mrf.mxu0
  %v451 = vpop.f32.mrf.mxu0
  %v452 = vadd.f32 %v204, %v451
  %v453 = vpop.f32.mrf.mxu0
  %454 = vmatprep.mubr.bf16.mxu0 %v394
  %455 = vmatmul.mubr.bf16.gmra.mxu0 %v313
  %v456 = vpop.f32.mrf.mxu0
  %v457 = vadd.f32 %v209, %v456
  %v458 = vpop.f32.mrf.mxu0
  %v459 = vpop.f32.mrf.mxu0
  %v460 = vadd.f32 %v212, %v459
  %v461 = vpop.f32.mrf.mxu0
  %462 = vmatprep.mubr.bf16.mxu0 %v397
  %463 = vmatmul.mubr.bf16.gmra.mxu0 %v315
  %v464 = vpop.f32.mrf.mxu0
  %v465 = vadd.f32 %v217, %v464
  %v466 = vpop.f32.mrf.mxu0
  %v467 = vpop.f32.mrf.mxu0
  %v468 = vadd.f32 %v220, %v467
  %v469 = vpop.f32.mrf.mxu0
  %470 = vmatprep.mubr.bf16.mxu0 %v400
  %471 = vmatmul.mubr.bf16.gmra.mxu0 %v317
  %v472 = vpop.f32.mrf.mxu0
  %v473 = vadd.f32 %v225, %v472
  %v474 = vpop.f32.mrf.mxu0
  %v475 = vpop.f32.mrf.mxu0
  %v476 = vadd.f32 %v228, %v475
  %v477 = vpop.f32.mrf.mxu0
  %478 = vmatprep.mubr.bf16.mxu0 %v403
  %479 = vmatmul.mubr.bf16.gmra.mxu0 %v319
  %v480 = vpop.f32.mrf.mxu0
  %v481 = vadd.f32 %v233, %v480
  %v482 = vpop.f32.mrf.mxu0
  %v483 = vpop.f32.mrf.mxu0
  %v484 = vadd.f32 %v236, %v483
  %v485 = vpop.f32.mrf.mxu0
  %486 = vmatprep.mubr.bf16.mxu0 %v406
  %487 = vmatmul.mubr.bf16.gmra.mxu0 %v321
  %v488 = vpop.f32.mrf.mxu0
  %v489 = vadd.f32 %v241, %v488
  %v490 = vpop.f32.mrf.mxu0
  %v491 = vpop.f32.mrf.mxu0
  %v492 = vadd.f32 %v244, %v491
  %v493 = vpop.f32.mrf.mxu0
  %494 = vmatprep.mubr.bf16.mxu0 %v409
  %495 = vmatmul.mubr.bf16.gmra.mxu0 %v323
  %v496 = vpop.f32.mrf.mxu0
  %v497 = vadd.f32 %v249, %v496
  %v498 = vpop.f32.mrf.mxu0
  %v499 = vpop.f32.mrf.mxu0
  %v500 = vadd.f32 %v252, %v499
  %v501 = vpop.f32.mrf.mxu0
  %502 = vmatprep.mubr.bf16.mxu0 %v412
  %503 = vmatmul.mubr.bf16.gmra.mxu0 %v325
  %v504 = vpop.f32.mrf.mxu0
  %v505 = vadd.f32 %v257, %v504
  %v506 = vpop.f32.mrf.mxu0
  %v507 = vpop.f32.mrf.mxu0
  %v508 = vadd.f32 %v260, %v507
  %v509 = vpop.f32.mrf.mxu0
  %510 = vdwg.mxu0
  %v511 = vld [vmem:[%s2] sm:$0xff]
  %v512 = vld [vmem:[%s2 + $0x8] sm:$0xff]
  %v513 = vld [vmem:[%s2 + $0x10] sm:$0xff]
  %v514 = vld [vmem:[%s2 + $0x18] sm:$0xff]
  %v515 = vld [vmem:[%s2 + $0x20] sm:$0xff]
  %v516 = vld [vmem:[%s2 + $0x28] sm:$0xff]
  %v517 = vld [vmem:[%s2 + $0x30] sm:$0xff]
  %v518 = vld [vmem:[%s2 + $0x38] sm:$0xff]
  %v519 = vld [vmem:[%s2 + $0x40] sm:$0xff]
  %v520 = vld [vmem:[%s2 + $0x48] sm:$0xff]
  %v521 = vld [vmem:[%s2 + $0x50] sm:$0xff]
  %v522 = vld [vmem:[%s2 + $0x58] sm:$0xff]
  %v523 = vld [vmem:[%s2 + $0x60] sm:$0xff]
  %v524 = vld [vmem:[%s2 + $0x68] sm:$0xff]
  %v525 = vld [vmem:[%s2 + $0x70] sm:$0xff]
  %v526 = vld [vmem:[%s2 + $0x78] sm:$0xff]
  %v527 = vld [vmem:[%s5] sm:$0xf]
  %v528 = vld [vmem:[%s5 + $0x4] sm:$0xf]
  %v529 = vld [vmem:[%s5 + $0x8] sm:$0xf]
  %v530 = vld [vmem:[%s5 + $0xc] sm:$0xf]
  %v531 = vld [vmem:[%s5 + $0x10] sm:$0xf]
  %v532 = vld [vmem:[%s5 + $0x14] sm:$0xf]
  %v533 = vld [vmem:[%s5 + $0x18] sm:$0xf]
  %v534 = vld [vmem:[%s5 + $0x1c] sm:$0xf]
  %v535 = vld [vmem:[%s5 + $0x20] sm:$0xf]
  %v536 = vld [vmem:[%s5 + $0x24] sm:$0xf]
  %v537 = vld [vmem:[%s5 + $0x28] sm:$0xf]
  %v538 = vld [vmem:[%s5 + $0x2c] sm:$0xf]
  %v539 = vld [vmem:[%s5 + $0x30] sm:$0xf]
  %v540 = vld [vmem:[%s5 + $0x34] sm:$0xf]
  %v541 = vld [vmem:[%s5 + $0x38] sm:$0xf]
  %v542 = vld [vmem:[%s5 + $0x3c] sm:$0xf]
  %v543 = vld [vmem:[%s5 + $0x40] sm:$0xf]
  %v544 = vld [vmem:[%s5 + $0x44] sm:$0xf]
  %v561 = vunpack.c.l.b16 %v511
  %v562 = vunpack.c.h.b16 %v511
  %v563 = vunpack.c.l.b16 %v512
  %v564 = vunpack.c.h.b16 %v512
  %v565 = vunpack.c.l.b16 %v513
  %v566 = vunpack.c.h.b16 %v513
  %v567 = vunpack.c.l.b16 %v514
  %v568 = vunpack.c.h.b16 %v514
  %v569 = vunpack.c.l.b16 %v515
  %v570 = vunpack.c.h.b16 %v515
  %v571 = vunpack.c.l.b16 %v516
  %v572 = vunpack.c.h.b16 %v516
  %v573 = vunpack.c.l.b16 %v517
  %v574 = vunpack.c.h.b16 %v517
  %v575 = vunpack.c.l.b16 %v518
  %v576 = vunpack.c.h.b16 %v518
  %v577 = vunpack.c.l.b16 %v519
  %v578 = vunpack.c.h.b16 %v519
  %v579 = vunpack.c.l.b16 %v520
  %v580 = vunpack.c.h.b16 %v520
  %v581 = vunpack.c.l.b16 %v521
  %v582 = vunpack.c.h.b16 %v521
  %v583 = vunpack.c.l.b16 %v522
  %v584 = vunpack.c.h.b16 %v522
  %v585 = vunpack.c.l.b16 %v523
  %v586 = vunpack.c.h.b16 %v523
  %v587 = vunpack.c.l.b16 %v524
  %v588 = vunpack.c.h.b16 %v524
  %v589 = vunpack.c.l.b16 %v525
  %v590 = vunpack.c.h.b16 %v525
  %v591 = vunpack.c.l.b16 %v526
  %v592 = vunpack.c.h.b16 %v526
  %v593 = vpack.c.b16 %v563, %v561
  %v594 = vpack.c.b16 %v564, %v562
  %v595 = vpack.c.b16 %v567, %v565
  %v596 = vpack.c.b16 %v568, %v566
  %v597 = vpack.c.b16 %v571, %v569
  %v598 = vpack.c.b16 %v572, %v570
  %v599 = vpack.c.b16 %v575, %v573
  %v600 = vpack.c.b16 %v576, %v574
  %v601 = vpack.c.b16 %v579, %v577
  %v602 = vpack.c.b16 %v580, %v578
  %v603 = vpack.c.b16 %v583, %v581
  %v604 = vpack.c.b16 %v584, %v582
  %v605 = vpack.c.b16 %v587, %v585
  %v606 = vpack.c.b16 %v588, %v586
  %v607 = vpack.c.b16 %v591, %v589
  %v608 = vpack.c.b16 %v592, %v590
  %v635 = vunpack.c.l.b16 %v527
  %v636 = vunpack.c.l.b16 %v528
  %v637 = vunpack.c.l.b16 %v529
  %v638 = vunpack.c.l.b16 %v530
  %v639 = vunpack.c.l.b16 %v531
  %v640 = vunpack.c.l.b16 %v532
  %v641 = vunpack.c.l.b16 %v533
  %v642 = vunpack.c.l.b16 %v534
  %v643 = vunpack.c.l.b16 %v535
  %v644 = vunpack.c.l.b16 %v536
  %v645 = vunpack.c.l.b16 %v537
  %v646 = vunpack.c.l.b16 %v538
  %v647 = vunpack.c.l.b16 %v539
  %v648 = vunpack.c.l.b16 %v540
  %v649 = vunpack.c.l.b16 %v541
  %v650 = vunpack.c.l.b16 %v542
  %v651 = vunpack.c.l.b16 %v543
  %v652 = vunpack.c.l.b16 %v544
  %v653 = vpack.c.b16 %v636, %v635
  %v654 = vpack.c.b16 %v638, %v637
  %v655 = vpack.c.b16 %v640, %v639
  %v656 = vpack.c.b16 %v642, %v641
  %v657 = vpack.c.b16 %v644, %v643
  %v658 = vpack.c.b16 %v646, %v645
  %v659 = vpack.c.b16 %v648, %v647
  %v660 = vpack.c.b16 %v650, %v649
  %v661 = vpack.c.b16 %v652, %v651
  %v672 = vsel %vm389, %v594, 0
  %v675 = vsel %vm389, %v596, 0
  %v678 = vsel %vm389, %v598, 0
  %v681 = vsel %vm389, %v600, 0
  %v684 = vsel %vm389, %v602, 0
  %v687 = vsel %vm389, %v604, 0
  %v690 = vsel %vm389, %v606, 0
  %v693 = vsel %vm389, %v608, 0
  %695 = vmatprep.subr.bf16.mxu0 0
  %696 = vmatpush1.bf16.msra.mxu0 %v660
  %697 = vmatprep.subr.bf16.mxu0 0
  %698 = vmatpush1.bf16.msra.mxu0 %v659
  %699 = vmatprep.subr.bf16.mxu0 0
  %700 = vmatpush1.bf16.msra.mxu0 %v658
  %701 = vmatprep.subr.bf16.mxu0 0
  %702 = vmatpush1.bf16.msra.mxu0 %v657
  %703 = vmatprep.subr.bf16.mxu0 0
  %704 = vmatpush1.bf16.msra.mxu0 %v656
  %705 = vmatprep.subr.bf16.mxu0 0
  %706 = vmatpush1.bf16.msra.mxu0 %v655
  %707 = vmatprep.subr.bf16.mxu0 0
  %708 = vmatpush1.bf16.msra.mxu0 %v654
  %709 = vmatprep.subr.bf16.mxu0 0
  %710 = vmatpush1.bf16.msra.mxu0 %v653
  %711 = vmatprep.subr.bf16.mxu0 0
  %712 = vmatpush2.bf16.msra.mxu0 0
  %713 = vmatprep.subr.bf16.mxu0 0
  %714 = vmatpush2.bf16.msra.mxu0 0
  %715 = vmatprep.subr.bf16.mxu0 0
  %716 = vmatpush2.bf16.msra.mxu0 0
  %717 = vmatprep.subr.bf16.mxu0 0
  %718 = vmatpush2.bf16.msra.mxu0 0
  %719 = vmatprep.subr.bf16.mxu0 0
  %720 = vmatpush2.bf16.msra.mxu0 0
  %721 = vmatprep.subr.bf16.mxu0 0
  %722 = vmatpush2.bf16.msra.mxu0 0
  %723 = vmatprep.subr.bf16.mxu0 0
  %724 = vmatpush2.bf16.msra.mxu0 0
  %725 = vmatprep.subr.bf16.mxu0 0
  %726 = vmatpush2.bf16.msra.mxu0 %v661
  %727 = vmatprep.mubr.bf16.mxu0 %v672
  %728 = vmatmul.mubr.bf16.gmra.mxu0 %v593
  %v729 = vpop.f32.mrf.mxu0
  %v730 = vadd.f32 0.0, %v729
  %v731 = vpop.f32.mrf.mxu0
  %v732 = vpop.f32.mrf.mxu0
  %v733 = vadd.f32 0.0, %v732
  %v734 = vpop.f32.mrf.mxu0
  %735 = vmatprep.mubr.bf16.mxu0 %v675
  %736 = vmatmul.mubr.bf16.gmra.mxu0 %v595
  %v737 = vpop.f32.mrf.mxu0
  %v738 = vadd.f32 0.0, %v737
  %v739 = vpop.f32.mrf.mxu0
  %v740 = vpop.f32.mrf.mxu0
  %v741 = vadd.f32 0.0, %v740
  %v742 = vpop.f32.mrf.mxu0
  %743 = vmatprep.mubr.bf16.mxu0 %v678
  %744 = vmatmul.mubr.bf16.gmra.mxu0 %v597
  %v745 = vpop.f32.mrf.mxu0
  %v746 = vadd.f32 0.0, %v745
  %v747 = vpop.f32.mrf.mxu0
  %v748 = vpop.f32.mrf.mxu0
  %v749 = vadd.f32 0.0, %v748
  %v750 = vpop.f32.mrf.mxu0
  %751 = vmatprep.mubr.bf16.mxu0 %v681
  %752 = vmatmul.mubr.bf16.gmra.mxu0 %v599
  %v753 = vpop.f32.mrf.mxu0
  %v754 = vadd.f32 0.0, %v753
  %v755 = vpop.f32.mrf.mxu0
  %v756 = vpop.f32.mrf.mxu0
  %v757 = vadd.f32 0.0, %v756
  %v758 = vpop.f32.mrf.mxu0
  %759 = vmatprep.mubr.bf16.mxu0 %v684
  %760 = vmatmul.mubr.bf16.gmra.mxu0 %v601
  %v761 = vpop.f32.mrf.mxu0
  %v762 = vadd.f32 0.0, %v761
  %v763 = vpop.f32.mrf.mxu0
  %v764 = vpop.f32.mrf.mxu0
  %v765 = vadd.f32 0.0, %v764
  %v766 = vpop.f32.mrf.mxu0
  %767 = vmatprep.mubr.bf16.mxu0 %v687
  %768 = vmatmul.mubr.bf16.gmra.mxu0 %v603
  %v769 = vpop.f32.mrf.mxu0
  %v770 = vadd.f32 0.0, %v769
  %v771 = vpop.f32.mrf.mxu0
  %v772 = vpop.f32.mrf.mxu0
  %v773 = vadd.f32 0.0, %v772
  %v774 = vpop.f32.mrf.mxu0
  %775 = vmatprep.mubr.bf16.mxu0 %v690
  %776 = vmatmul.mubr.bf16.gmra.mxu0 %v605
  %v777 = vpop.f32.mrf.mxu0
  %v778 = vadd.f32 0.0, %v777
  %v779 = vpop.f32.mrf.mxu0
  %v780 = vpop.f32.mrf.mxu0
  %v781 = vadd.f32 0.0, %v780
  %v782 = vpop.f32.mrf.mxu0
  %783 = vmatprep.mubr.bf16.mxu0 %v693
  %784 = vmatmul.mubr.bf16.gmra.mxu0 %v607
  %v785 = vpop.f32.mrf.mxu0
  %v786 = vadd.f32 0.0, %v785
  %v787 = vpop.f32.mrf.mxu0
  %v788 = vpop.f32.mrf.mxu0
  %v789 = vadd.f32 0.0, %v788
  %v790 = vpop.f32.mrf.mxu0
  %791 = vdwg.mxu0
  %v792 = vadd.f32 %v449, %v730
  %v793 = vadd.f32 %v452, %v733
  %v794 = vadd.f32 %v457, %v738
  %v795 = vadd.f32 %v460, %v741
  %v796 = vadd.f32 %v465, %v746
  %v797 = vadd.f32 %v468, %v749
  %v798 = vadd.f32 %v473, %v754
  %v799 = vadd.f32 %v476, %v757
  %v800 = vadd.f32 %v481, %v762
  %v801 = vadd.f32 %v484, %v765
  %v802 = vadd.f32 %v489, %v770
  %v803 = vadd.f32 %v492, %v773
  %v804 = vadd.f32 %v497, %v778
  %v805 = vadd.f32 %v500, %v781
  %v806 = vadd.f32 %v505, %v786
  %v807 = vadd.f32 %v508, %v789
  %v808 = vld [vmem:[%s6] sm:$0x1]
  %v810 = vlaneseq
  %v811 = vshrl.u32 %v810, 7
  %v812 = vsub.s32 0, %v811
  %v813 = vrot.slane %v808, %v812
  %v815 = vadd.f32 %v792, %v813
  %v816 = vadd.f32 %v793, %v813
  %v817 = vadd.f32 %v794, %v813
  %v818 = vadd.f32 %v795, %v813
  %v819 = vadd.f32 %v796, %v813
  %v820 = vadd.f32 %v797, %v813
  %v821 = vadd.f32 %v798, %v813
  %v822 = vadd.f32 %v799, %v813
  %v823 = vadd.f32 %v800, %v813
  %v824 = vadd.f32 %v801, %v813
  %v825 = vadd.f32 %v802, %v813
  %v826 = vadd.f32 %v803, %v813
  %v827 = vadd.f32 %v804, %v813
  %v828 = vadd.f32 %v805, %v813
  %v829 = vadd.f32 %v806, %v813
  %v830 = vadd.f32 %v807, %v813
  %v831 = vxor.u32 %v815, 2147483648
  %v832 = vxor.u32 %v816, 2147483648
  %v833 = vxor.u32 %v817, 2147483648
  %v834 = vxor.u32 %v818, 2147483648
  %v835 = vxor.u32 %v819, 2147483648
  %v836 = vxor.u32 %v820, 2147483648
  %v837 = vxor.u32 %v821, 2147483648
  %v838 = vxor.u32 %v822, 2147483648
  %v839 = vxor.u32 %v823, 2147483648
  %v840 = vxor.u32 %v824, 2147483648
  %v841 = vxor.u32 %v825, 2147483648
  %v842 = vxor.u32 %v826, 2147483648
  %v843 = vxor.u32 %v827, 2147483648
  %v844 = vxor.u32 %v828, 2147483648
  %v845 = vxor.u32 %v829, 2147483648
  %v846 = vxor.u32 %v830, 2147483648
  %v847 = vmul.f32 %v831, 1.442695
  %v848 = vpow.pop %v847
  %v849 = vmul.f32 %v832, 1.442695
  %v850 = vpow.pop %v849
  %v851 = vmul.f32 %v833, 1.442695
  %v852 = vpow.pop %v851
  %v853 = vmul.f32 %v834, 1.442695
  %v854 = vpow.pop %v853
  %v855 = vmul.f32 %v835, 1.442695
  %v856 = vpow.pop %v855
  %v857 = vmul.f32 %v836, 1.442695
  %v858 = vpow.pop %v857
  %v859 = vmul.f32 %v837, 1.442695
  %v860 = vpow.pop %v859
  %v861 = vmul.f32 %v838, 1.442695
  %v862 = vpow.pop %v861
  %v863 = vmul.f32 %v839, 1.442695
  %v864 = vpow.pop %v863
  %v865 = vmul.f32 %v840, 1.442695
  %v866 = vpow.pop %v865
  %v867 = vmul.f32 %v841, 1.442695
  %v868 = vpow.pop %v867
  %v869 = vmul.f32 %v842, 1.442695
  %v870 = vpow.pop %v869
  %v871 = vmul.f32 %v843, 1.442695
  %v872 = vpow.pop %v871
  %v873 = vmul.f32 %v844, 1.442695
  %v874 = vpow.pop %v873
  %v875 = vmul.f32 %v845, 1.442695
  %v876 = vpow.pop %v875
  %v877 = vmul.f32 %v846, 1.442695
  %v878 = vpow.pop %v877
  %v879 = vadd.f32 %v848, 1.0
  %v880 = vadd.f32 %v850, 1.0
  %v881 = vadd.f32 %v852, 1.0
  %v882 = vadd.f32 %v854, 1.0
  %v883 = vadd.f32 %v856, 1.0
  %v884 = vadd.f32 %v858, 1.0
  %v885 = vadd.f32 %v860, 1.0
  %v886 = vadd.f32 %v862, 1.0
  %v887 = vadd.f32 %v864, 1.0
  %v888 = vadd.f32 %v866, 1.0
  %v889 = vadd.f32 %v868, 1.0
  %v890 = vadd.f32 %v870, 1.0
  %v891 = vadd.f32 %v872, 1.0
  %v892 = vadd.f32 %v874, 1.0
  %v893 = vadd.f32 %v876, 1.0
  %v894 = vadd.f32 %v878, 1.0
  %v895 = vrcp.pop %v879
  %v896 = vmul.f32 1.0, %v895
  %v897 = vrcp.pop %v880
  %v898 = vmul.f32 1.0, %v897
  %v899 = vrcp.pop %v881
  %v900 = vmul.f32 1.0, %v899
  %v901 = vrcp.pop %v882
  %v902 = vmul.f32 1.0, %v901
  %v903 = vrcp.pop %v883
  %v904 = vmul.f32 1.0, %v903
  %v905 = vrcp.pop %v884
  %v906 = vmul.f32 1.0, %v905
  %v907 = vrcp.pop %v885
  %v908 = vmul.f32 1.0, %v907
  %v909 = vrcp.pop %v886
  %v910 = vmul.f32 1.0, %v909
  %v911 = vrcp.pop %v887
  %v912 = vmul.f32 1.0, %v911
  %v913 = vrcp.pop %v888
  %v914 = vmul.f32 1.0, %v913
  %v915 = vrcp.pop %v889
  %v916 = vmul.f32 1.0, %v915
  %v917 = vrcp.pop %v890
  %v918 = vmul.f32 1.0, %v917
  %v919 = vrcp.pop %v891
  %v920 = vmul.f32 1.0, %v919
  %v921 = vrcp.pop %v892
  %v922 = vmul.f32 1.0, %v921
  %v923 = vrcp.pop %v893
  %v924 = vmul.f32 1.0, %v923
  %v925 = vrcp.pop %v894
  %v926 = vmul.f32 1.0, %v925
  %927 = vst [vmem:[%s7] sm:$0xff] %v896
  %928 = vst [vmem:[%s7 + $0x8] sm:$0xff] %v898
  %929 = vst [vmem:[%s7 + $0x10] sm:$0xff] %v900
  %930 = vst [vmem:[%s7 + $0x18] sm:$0xff] %v902
  %931 = vst [vmem:[%s7 + $0x20] sm:$0xff] %v904
  %932 = vst [vmem:[%s7 + $0x28] sm:$0xff] %v906
  %933 = vst [vmem:[%s7 + $0x30] sm:$0xff] %v908
  %934 = vst [vmem:[%s7 + $0x38] sm:$0xff] %v910
  %935 = vst [vmem:[%s7 + $0x40] sm:$0xff] %v912
  %936 = vst [vmem:[%s7 + $0x48] sm:$0xff] %v914
  %937 = vst [vmem:[%s7 + $0x50] sm:$0xff] %v916
  %938 = vst [vmem:[%s7 + $0x58] sm:$0xff] %v918
  %939 = vst [vmem:[%s7 + $0x60] sm:$0xff] %v920
  %940 = vst [vmem:[%s7 + $0x68] sm:$0xff] %v922
  %941 = vst [vmem:[%s7 + $0x70] sm:$0xff] %v924
  %942 = vst [vmem:[%s7 + $0x78] sm:$0xff] %v926
  // Predicated region
  $region30: #{sparse_model_forward.15} parent=0 // pred_check
    _
  $region31: #{sparse_model_forward.15} parent=0 // pred_check_branch
    %944 = sbr.rel (0) target = $region33
  $region32: #{sparse_model_forward.15} parent=0 // pred_region
    _
  $region33: #{sparse_model_forward.15} parent=0 // pred_fallthru
    _
  // Predicated region
  $region34: #{sparse_model_forward.15} parent=0 // pred_check
    _
  $region35: #{sparse_model_forward.15} parent=0 // pred_check_branch
    %946 = sbr.rel (0) target = $region37
  $region36: #{sparse_model_forward.15} parent=0 // pred_region
    _
  $region37: #{sparse_model_forward.15} parent=0 // pred_fallthru
    _

</llo_original>
